<compile_context>
chip_gen: v7x
topology: tpu7x:2x2x1
jax: 0.10.0
libtpu: 0.0.40
codegen_flags: <defaults>
</compile_context>

<pallas_src>
import functools
import math

import jax
import jax.numpy as jnp
from jax.experimental import pallas as pl
from jax.experimental.pallas import tpu as pltpu

NEG_INF = -1e9  # finite large-negative, mirrors HF's (1-mask)*finfo.min additive mask
VMEM_LIMIT = 32 * 1024 * 1024  # safe on v5e/v6e (128 MiB phys) and v7x (64 MiB phys)


def _fit(dim, pref, align):
    """Largest tile <= pref that equals dim or is an `align`-multiple divisor of dim."""
    if dim <= pref:
        return dim
    t = (pref // align) * align
    while t >= align:
        if dim % t == 0:
            return t
        t -= align
    return dim


# ----------------------- fused dense (+bias, +GELU) kernel -----------------------

def _dense_kernel(x_ref, w_ref, b_ref, o_ref, acc_ref, *, n_k, activation, w_transposed):
    @pl.when(pl.program_id(2) == 0)
    def _():
        acc_ref[...] = jnp.zeros_like(acc_ref)

    x = x_ref[...].astype(jnp.bfloat16)
    w = w_ref[...].astype(jnp.bfloat16)
    if w_transposed:
        # w block is [tn, tk]; contract on its axis 1 (avoids materializing w.T in HBM).
        acc_ref[...] += jax.lax.dot_general(
            x, w, (((1,), (1,)), ((), ())), preferred_element_type=jnp.float32)
    else:
        acc_ref[...] += jnp.dot(x, w, preferred_element_type=jnp.float32)

    @pl.when(pl.program_id(2) == n_k - 1)
    def _():
        y = acc_ref[...] + b_ref[...]
        if activation == "gelu":
            # tanh-approx GELU fused into the matmul epilogue (EUP work, hides under MXU).
            # TODO(synk): HF BART uses exact erf GELU; tanh approximation used here.
            c = math.sqrt(2.0 / math.pi)
            y = 0.5 * y * (1.0 + jnp.tanh(c * (y + 0.044715 * y * y * y)))
        o_ref[...] = y


def dense(x, w, b, *, activation=None, w_transposed=False):
    """x:[M,K] @ w (+bias, +activation) -> [M,N] f32.  w is [K,N], or [N,K] if w_transposed."""
    M, K = x.shape
    N = w.shape[0] if w_transposed else w.shape[1]
    tm = _fit(M, 256, 8)
    tn = _fit(N, 512, 128)
    tk = _fit(K, 512, 128)
    grid = (M // tm, N // tn, K // tk)
    if w_transposed:
        w_spec = pl.BlockSpec((tn, tk), lambda i, j, k: (j, k))
    else:
        w_spec = pl.BlockSpec((tk, tn), lambda i, j, k: (k, j))
    return pl.pallas_call(
        functools.partial(_dense_kernel, n_k=grid[2], activation=activation,
                          w_transposed=w_transposed),
        out_shape=jax.ShapeDtypeStruct((M, N), jnp.float32),
        grid=grid,
        in_specs=[pl.BlockSpec((tm, tk), lambda i, j, k: (i, k)),
                  w_spec,
                  pl.BlockSpec((1, tn), lambda i, j, k: (0, j))],
        out_specs=pl.BlockSpec((tm, tn), lambda i, j, k: (i, j)),
        scratch_shapes=[pltpu.VMEM((tm, tn), jnp.float32)],
        compiler_params=pltpu.CompilerParams(
            dimension_semantics=("parallel", "parallel", "arbitrary"),
            vmem_limit_bytes=VMEM_LIMIT),
    )(x, w, b.reshape(1, N))


# ----------------------- fused (residual add +) LayerNorm kernel -----------------------

def _ln_kernel(*refs, eps, with_residual):
    if with_residual:
        x_ref, r_ref, g_ref, b_ref, o_ref = refs
        x = x_ref[...] + r_ref[...]
    else:
        x_ref, g_ref, b_ref, o_ref = refs
        x = x_ref[...]
    mu = jnp.mean(x, axis=-1, keepdims=True)
    var = jnp.mean(jnp.square(x - mu), axis=-1, keepdims=True)
    o_ref[...] = (x - mu) * jax.lax.rsqrt(var + eps) * g_ref[...] + b_ref[...]


def layernorm(x, g, b, residual=None, eps=1e-5):
    M, D = x.shape
    tm = _fit(M, 256, 8)
    grid = (M // tm,)
    in_specs = [pl.BlockSpec((tm, D), lambda i: (i, 0))]
    args = [x]
    if residual is not None:
        in_specs.append(pl.BlockSpec((tm, D), lambda i: (i, 0)))
        args.append(residual)
    in_specs += [pl.BlockSpec((1, D), lambda i: (0, 0)),
                 pl.BlockSpec((1, D), lambda i: (0, 0))]
    args += [g.reshape(1, D), b.reshape(1, D)]
    return pl.pallas_call(
        functools.partial(_ln_kernel, eps=eps, with_residual=residual is not None),
        out_shape=jax.ShapeDtypeStruct((M, D), jnp.float32),
        grid=grid,
        in_specs=in_specs,
        out_specs=pl.BlockSpec((tm, D), lambda i: (i, 0)),
        compiler_params=pltpu.CompilerParams(
            dimension_semantics=("parallel",),
            vmem_limit_bytes=VMEM_LIMIT),
    )(*args)


# ----------------------- fused multi-head attention kernel -----------------------
# One pallas_call does: fused QKV projection, head split, scores + in-kernel additive mask
# (pad + optional causal), softmax, PV, head merge, output projection.
# Grid = (B,), marked "parallel" so the two v7x TensorCores each take batches.

def _mha_kernel(hq_ref, hkv_ref, mask_ref, wqkv_ref, bqkv_ref, wo_ref, bo_ref,
                o_ref, ctx_ref, *, heads, scale, causal):
    Tq, D = hq_ref.shape[1], hq_ref.shape[2]
    Tk = hkv_ref.shape[1]
    Dh = D // heads

    hq = hq_ref[0].astype(jnp.bfloat16)        # (Tq, D)
    hkv = hkv_ref[0].astype(jnp.bfloat16)      # (Tk, D)
    wqkv = wqkv_ref[...]                       # bf16 (D, 3D)
    bqkv = bqkv_ref[...]                       # f32  (1, 3D)

    # fused projections: q from the query stream, k|v in one matmul from the key/value stream
    q = jnp.dot(hq, wqkv[:, :D], preferred_element_type=jnp.float32) + bqkv[:, :D]       # (Tq, D)
    kv = jnp.dot(hkv, wqkv[:, D:], preferred_element_type=jnp.float32) + bqkv[:, D:]     # (Tk, 2D)
    k = kv[:, :D]
    v = kv[:, D:]

    # additive key-padding bias built in-kernel from the {0,1} mask (no [B*H,Tq,Tk] HBM tensor)
    pad_bias = (1.0 - mask_ref[0]) * NEG_INF                     # (1, Tk)
    if causal:
        rows = jax.lax.broadcasted_iota(jnp.int32, (Tq, Tk), 0)
        cols = jax.lax.broadcasted_iota(jnp.int32, (Tq, Tk), 1)
        causal_bias = jnp.where(cols > rows, NEG_INF, 0.0)       # (Tq, Tk)

    for h in range(heads):                                       # static unroll over heads
        sl = slice(h * Dh, (h + 1) * Dh)
        qh = (q[:, sl] * scale).astype(jnp.bfloat16)             # (Tq, Dh)
        kh = k[:, sl].astype(jnp.bfloat16)                       # (Tk, Dh)
        vh = v[:, sl].astype(jnp.bfloat16)                       # (Tk, Dh)
        s = jax.lax.dot_general(qh, kh, (((1,), (1,)), ((), ())),
                                preferred_element_type=jnp.float32)   # (Tq, Tk)
        s = s + pad_bias
        if causal:
            s = s + causal_bias
        s = s - jnp.max(s, axis=-1, keepdims=True)               # stable softmax
        p = jnp.exp(s)
        denom = jnp.sum(p, axis=-1, keepdims=True)
        p = p * pl.reciprocal(denom, approx=True)
        ctx_ref[:, sl] = jnp.dot(p.astype(jnp.bfloat16), vh,
                                 preferred_element_type=jnp.float32)  # (Tq, Dh)

    ctx = ctx_ref[...].astype(jnp.bfloat16)                      # (Tq, D)
    o_ref[0] = (jnp.dot(ctx, wo_ref[...].astype(jnp.bfloat16),
                        preferred_element_type=jnp.float32) + bo_ref[...])


def mha(h_q, h_kv, mask_b1k, p, cfg, B, Tq, Tkv, causal):
    D, H = cfg.d_model, cfg.heads
    hq3 = h_q.reshape(B, Tq, D)
    hkv3 = h_kv.reshape(B, Tkv, D)
    out = pl.pallas_call(
        functools.partial(_mha_kernel, heads=H, scale=(D // H) ** -0.5, causal=causal),
        out_shape=jax.ShapeDtypeStruct((B, Tq, D), jnp.float32),
        grid=(B,),
        in_specs=[pl.BlockSpec((1, Tq, D), lambda b: (b, 0, 0)),
                  pl.BlockSpec((1, Tkv, D), lambda b: (b, 0, 0)),
                  pl.BlockSpec((1, 1, Tkv), lambda b: (b, 0, 0)),
                  pl.BlockSpec((D, 3 * D), lambda b: (0, 0)),
                  pl.BlockSpec((1, 3 * D), lambda b: (0, 0)),
                  pl.BlockSpec((D, D), lambda b: (0, 0)),
                  pl.BlockSpec((1, D), lambda b: (0, 0))],
        out_specs=pl.BlockSpec((1, Tq, D), lambda b: (b, 0, 0)),
        scratch_shapes=[pltpu.VMEM((Tq, D), jnp.float32)],
        compiler_params=pltpu.CompilerParams(
            dimension_semantics=("parallel",),
            vmem_limit_bytes=VMEM_LIMIT),
    )(hq3, hkv3, mask_b1k, p['wqkv'], p['bqkv'].reshape(1, 3 * D),
      p['wo'], p['bo'].reshape(1, D))
    return out.reshape(B * Tq, D)


# ------------------------------ Model (glue) --------------------------------

class Config:
    vocab = 64
    d_model = 32
    heads = 2
    ffn = 64
    enc_layers = 1
    dec_layers = 1
    max_pos = 32
    pos_offset = 2          # BART learned positional-embedding offset
    pad_id = 3              # kobart pad_token_id
    eps = 1e-5
    scale_embedding = False  # bart-base style


def init_params(key, cfg):
    keys = iter(jax.random.split(key, 128))

    def nrm(shape):
        return 0.02 * jax.random.normal(next(keys), shape, jnp.float32)

    def lin(din, dout):
        return nrm((din, dout)), jnp.zeros((dout,), jnp.float32)

    def ln():
        return (jnp.ones((cfg.d_model,), jnp.float32),
                jnp.zeros((cfg.d_model,), jnp.float32))

    def attn():
        wq, bq = lin(cfg.d_model, cfg.d_model)
        wk, bk = lin(cfg.d_model, cfg.d_model)
        wv, bv = lin(cfg.d_model, cfg.d_model)
        wo, bo = lin(cfg.d_model, cfg.d_model)
        return {
            # QKV fused once at init; weights stored bf16 (MXU-native), biases f32 (f32 accum)
            'wqkv': jnp.concatenate([wq, wk, wv], axis=1).astype(jnp.bfloat16),
            'bqkv': jnp.concatenate([bq, bk, bv]),
            'wo': wo.astype(jnp.bfloat16), 'bo': bo,
        }

    def enc_layer():
        p = {'self_attn': attn(), 'self_attn_ln': ln(), 'final_ln': ln()}
        fc1_w, p['fc1_b'] = lin(cfg.d_model, cfg.ffn)
        fc2_w, p['fc2_b'] = lin(cfg.ffn, cfg.d_model)
        p['fc1_w'] = fc1_w.astype(jnp.bfloat16)
        p['fc2_w'] = fc2_w.astype(jnp.bfloat16)
        return p

    def dec_layer():
        p = enc_layer()
        p['cross_attn'] = attn()
        p['cross_attn_ln'] = ln()
        return p

    return {
        'embed_tokens': nrm((cfg.vocab, cfg.d_model)).astype(jnp.bfloat16),  # shared / tied LM head
        'enc_pos': nrm((cfg.max_pos + cfg.pos_offset, cfg.d_model)),
        'dec_pos': nrm((cfg.max_pos + cfg.pos_offset, cfg.d_model)),
        'enc_ln_emb': ln(),
        'dec_ln_emb': ln(),
        'final_logits_bias': jnp.zeros((cfg.vocab,), jnp.float32),
        'enc_layers': [enc_layer() for _ in range(cfg.enc_layers)],
        'dec_layers': [dec_layer() for _ in range(cfg.dec_layers)],
    }


def make_mask(ids, pad_id):
    # mirrors: torch.where(src == pad_token_id, 0, 1)
    return jnp.where(ids == pad_id, 0, 1)


def embed(ids, tok_table, pos_table, cfg):
    # TODO(synk): embedding gather stays in XLA (jnp.take); no clean Pallas win at this size.
    B, T = ids.shape
    scale = math.sqrt(cfg.d_model) if cfg.scale_embedding else 1.0
    tok = jnp.take(tok_table, ids, axis=0).astype(jnp.float32) * scale   # [B,T,D]
    pos = jnp.take(pos_table, jnp.arange(T) + cfg.pos_offset, axis=0)    # [T,D]
    return (tok + pos[None, :, :]).reshape(B * T, cfg.d_model)


def ffn(h, p):
    x = dense(h, p['fc1_w'], p['fc1_b'], activation='gelu')   # GELU fused into matmul epilogue
    return dense(x, p['fc2_w'], p['fc2_b'])


def encoder_layer(h, enc_mask, p, cfg, B, T):
    r = h
    a = mha(h, h, enc_mask, p['self_attn'], cfg, B, T, T, causal=False)
    h = layernorm(a, *p['self_attn_ln'], residual=r, eps=cfg.eps)        # residual fused into LN
    r = h
    f = ffn(h, p)
    h = layernorm(f, *p['final_ln'], residual=r, eps=cfg.eps)
    return h


def decoder_layer(h, enc_h, dec_mask, enc_mask, p, cfg, B, Tt, Ts):
    r = h
    a = mha(h, h, dec_mask, p['self_attn'], cfg, B, Tt, Tt, causal=True)
    h = layernorm(a, *p['self_attn_ln'], residual=r, eps=cfg.eps)
    r = h
    a = mha(h, enc_h, enc_mask, p['cross_attn'], cfg, B, Tt, Ts, causal=False)
    h = layernorm(a, *p['cross_attn_ln'], residual=r, eps=cfg.eps)
    r = h
    f = ffn(h, p)
    h = layernorm(f, *p['final_ln'], residual=r, eps=cfg.eps)
    return h


def bart_forward(params, src, trg, cfg):
    """Equivalent of BART.forward(src, trg): returns logits [B, Tt, vocab]."""
    B, Ts = src.shape
    Tt = trg.shape[1]
    # {0,1} pad masks, passed as tiny [B,1,Tk] tensors; additive masks are built inside the kernel
    enc_mask = make_mask(src, cfg.pad_id).astype(jnp.float32).reshape(B, 1, Ts)
    dec_mask = make_mask(trg, cfg.pad_id).astype(jnp.float32).reshape(B, 1, Tt)

    # ---- encoder ----
    h = embed(src, params['embed_tokens'], params['enc_pos'], cfg)
    h = layernorm(h, *params['enc_ln_emb'], eps=cfg.eps)
    for lp in params['enc_layers']:
        h = encoder_layer(h, enc_mask, lp, cfg, B, Ts)
    enc_h = h                                            # [B*Ts, D]

    # ---- decoder ----
    d = embed(trg, params['embed_tokens'], params['dec_pos'], cfg)
    d = layernorm(d, *params['dec_ln_emb'], eps=cfg.eps)
    for lp in params['dec_layers']:
        d = decoder_layer(d, enc_h, dec_mask, enc_mask, lp, cfg, B, Tt, Ts)

    # ---- LM head: tied to untransposed token embedding (contract on its axis 1) + bias ----
    logits = dense(d, params['embed_tokens'], params['final_logits_bias'], w_transposed=True)
    return logits.reshape(B, Tt, cfg.vocab)


# TODO(synk): pretrained checkpoint loading ('gogamza/kobart-base-v2') and the tokenizer are
# replaced by deterministic synthetic weights and a fixed pad_token_id.

if __name__ == "__main__":
    cfg = Config()
    key = jax.random.PRNGKey(0)
    pkey, skey, tkey = jax.random.split(key, 3)
    params = init_params(pkey, cfg)

    B, Ts, Tt = 2, 8, 8
    src = jax.random.randint(skey, (B, Ts), 4, cfg.vocab, dtype=jnp.int32)
    trg = jax.random.randint(tkey, (B, Tt), 4, cfg.vocab, dtype=jnp.int32)
    # introduce padding so make_mask / attention masking is exercised
    src = src.at[0, 6:].set(cfg.pad_id)
    trg = trg.at[1, 5:].set(cfg.pad_id)

    fwd = jax.jit(functools.partial(bart_forward, cfg=cfg))
    logits = fwd(params, src, trg)
    logits = jax.block_until_ready(logits)

    assert logits.shape == (B, Tt, cfg.vocab)
    assert bool(jnp.all(jnp.isfinite(logits)))
    print("KERNEL_OK")
</pallas_src>

<mosaic_0001>
module attributes {stable_mosaic.version = 11 : i64} {
  func.func @_mha_kernel(%arg0: i32, %arg1: memref<1x8x32xf32, #tpu.memory_space<vmem>>, %arg2: memref<1x8x32xf32, #tpu.memory_space<vmem>>, %arg3: memref<1x1x8xf32, #tpu.memory_space<vmem>>, %arg4: memref<32x96xbf16, #tpu.memory_space<vmem>>, %arg5: memref<1x96xf32, #tpu.memory_space<vmem>>, %arg6: memref<32x32xbf16, #tpu.memory_space<vmem>>, %arg7: memref<1x32xf32, #tpu.memory_space<vmem>>, %arg8: memref<1x8x32xf32, #tpu.memory_space<vmem>>, %arg9: memref<8x32xf32, #tpu.memory_space<vmem>>) attributes {dimension_semantics = [#tpu.dimension_semantics<parallel>], iteration_bounds = array<i64: 2>, scalar_prefetch = 0 : i64, scratch_operands = 1 : i64, tpu.core_type = #tpu.core_type<tc>, window_params = [{transform_indices = @transform_0, window_bounds = array<i64: 1, 8, 32>}, {transform_indices = @transform_1, window_bounds = array<i64: 1, 8, 32>}, {transform_indices = @transform_2, window_bounds = array<i64: 1, 1, 8>}, {pipeline_mode = #tpu.pipeline_mode<synchronous>, transform_indices = @transform_3, window_bounds = array<i64: 32, 96>}, {pipeline_mode = #tpu.pipeline_mode<synchronous>, transform_indices = @transform_4, window_bounds = array<i64: 1, 96>}, {pipeline_mode = #tpu.pipeline_mode<synchronous>, transform_indices = @transform_5, window_bounds = array<i64: 32, 32>}, {pipeline_mode = #tpu.pipeline_mode<synchronous>, transform_indices = @transform_6, window_bounds = array<i64: 1, 32>}, {transform_indices = @transform_7, window_bounds = array<i64: 1, 8, 32>}]} {
    %c0 = arith.constant 0 : index
    %c0_0 = arith.constant 0 : index
    %c0_1 = arith.constant 0 : index
    %0 = vector.load %arg1[%c0, %c0_0, %c0_1] : memref<1x8x32xf32, #tpu.memory_space<vmem>>, vector<1x8x32xf32>
    %1 = vector.shape_cast %0 : vector<1x8x32xf32> to vector<8x32xf32>
    %2 = arith.truncf %1 : vector<8x32xf32> to vector<8x32xbf16>
    %c0_2 = arith.constant 0 : index
    %c0_3 = arith.constant 0 : index
    %c0_4 = arith.constant 0 : index
    %3 = vector.load %arg2[%c0_2, %c0_3, %c0_4] : memref<1x8x32xf32, #tpu.memory_space<vmem>>, vector<1x8x32xf32>
    %4 = vector.shape_cast %3 : vector<1x8x32xf32> to vector<8x32xf32>
    %5 = arith.truncf %4 : vector<8x32xf32> to vector<8x32xbf16>
    %c0_5 = arith.constant 0 : index
    %c0_6 = arith.constant 0 : index
    %6 = vector.load %arg4[%c0_5, %c0_6] : memref<32x96xbf16, #tpu.memory_space<vmem>>, vector<32x96xbf16>
    %c0_7 = arith.constant 0 : index
    %c0_8 = arith.constant 0 : index
    %7 = vector.load %arg5[%c0_7, %c0_8] : memref<1x96xf32, #tpu.memory_space<vmem>>, vector<1x96xf32>
    %8 = vector.extract_strided_slice %6 {offsets = [0, 0], sizes = [32, 32], strides = [1, 1]} : vector<32x96xbf16> to vector<32x32xbf16>
    %cst = arith.constant dense<0.000000e+00> : vector<8x32xf32>
    %9 = tpu.matmul %2, %8, %cst {dimension_numbers = #tpu.dot_dimension_numbers<[1], [0], [0], [1], [0, 0, 1, 1], [], []>} : vector<8x32xbf16>, vector<32x32xbf16>, vector<8x32xf32> -> vector<8x32xf32>
    %10 = vector.extract_strided_slice %7 {offsets = [0, 0], sizes = [1, 32], strides = [1, 1]} : vector<1x96xf32> to vector<1x32xf32>
    %11 = vector.broadcast %10 : vector<1x32xf32> to vector<8x32xf32>
    %12 = arith.addf %9, %11 : vector<8x32xf32>
    %13 = vector.extract_strided_slice %6 {offsets = [0, 32], sizes = [32, 64], strides = [1, 1]} : vector<32x96xbf16> to vector<32x64xbf16>
    %cst_9 = arith.constant dense<0.000000e+00> : vector<8x64xf32>
    %14 = tpu.matmul %5, %13, %cst_9 {dimension_numbers = #tpu.dot_dimension_numbers<[1], [0], [0], [1], [0, 0, 1, 1], [], []>} : vector<8x32xbf16>, vector<32x64xbf16>, vector<8x64xf32> -> vector<8x64xf32>
    %15 = vector.extract_strided_slice %7 {offsets = [0, 32], sizes = [1, 64], strides = [1, 1]} : vector<1x96xf32> to vector<1x64xf32>
    %16 = vector.broadcast %15 : vector<1x64xf32> to vector<8x64xf32>
    %17 = arith.addf %14, %16 : vector<8x64xf32>
    %18 = vector.extract_strided_slice %17 {offsets = [0, 0], sizes = [8, 32], strides = [1, 1]} : vector<8x64xf32> to vector<8x32xf32>
    %19 = vector.extract_strided_slice %17 {offsets = [0, 32], sizes = [8, 32], strides = [1, 1]} : vector<8x64xf32> to vector<8x32xf32>
    %c0_10 = arith.constant 0 : index
    %c0_11 = arith.constant 0 : index
    %c0_12 = arith.constant 0 : index
    %20 = vector.load %arg3[%c0_10, %c0_11, %c0_12] : memref<1x1x8xf32, #tpu.memory_space<vmem>>, vector<1x1x8xf32>
    %21 = vector.shape_cast %20 : vector<1x1x8xf32> to vector<1x8xf32>
    %cst_13 = arith.constant 1.000000e+00 : f32
    %22 = vector.broadcast %cst_13 : f32 to vector<1x8xf32>
    %23 = arith.subf %22, %21 : vector<1x8xf32>
    %cst_14 = arith.constant -1.000000e+09 : f32
    %24 = vector.broadcast %cst_14 : f32 to vector<1x8xf32>
    %25 = arith.mulf %23, %24 : vector<1x8xf32>
    %26 = vector.extract_strided_slice %12 {offsets = [0, 0], sizes = [8, 16], strides = [1, 1]} : vector<8x32xf32> to vector<8x16xf32>
    %cst_15 = arith.constant 2.500000e-01 : f32
    %27 = vector.broadcast %cst_15 : f32 to vector<8x16xf32>
    %28 = arith.mulf %26, %27 : vector<8x16xf32>
    %29 = arith.truncf %28 : vector<8x16xf32> to vector<8x16xbf16>
    %30 = vector.extract_strided_slice %18 {offsets = [0, 0], sizes = [8, 16], strides = [1, 1]} : vector<8x32xf32> to vector<8x16xf32>
    %31 = arith.truncf %30 : vector<8x16xf32> to vector<8x16xbf16>
    %32 = vector.extract_strided_slice %19 {offsets = [0, 0], sizes = [8, 16], strides = [1, 1]} : vector<8x32xf32> to vector<8x16xf32>
    %33 = arith.truncf %32 : vector<8x16xf32> to vector<8x16xbf16>
    %cst_16 = arith.constant dense<0.000000e+00> : vector<8x8xf32>
    %34 = tpu.matmul %29, %31, %cst_16 {dimension_numbers = #tpu.dot_dimension_numbers<[1], [1], [0], [0], [0, 0, 1, 0], [], []>} : vector<8x16xbf16>, vector<8x16xbf16>, vector<8x8xf32> -> vector<8x8xf32>
    %35 = vector.broadcast %25 : vector<1x8xf32> to vector<8x8xf32>
    %36 = arith.addf %34, %35 : vector<8x8xf32>
    %cst_17 = arith.constant dense<0xFF800000> : vector<8xf32>
    %37 = vector.multi_reduction <maximumf>, %36, %cst_17 [1] : vector<8x8xf32> to vector<8xf32>
    %38 = vector.shape_cast %37 : vector<8xf32> to vector<8x1xf32>
    %39 = vector.broadcast %38 : vector<8x1xf32> to vector<8x8xf32>
    %40 = arith.subf %36, %39 : vector<8x8xf32>
    %41 = math.exp %40 : vector<8x8xf32>
    %cst_18 = arith.constant dense<0.000000e+00> : vector<8xf32>
    %42 = vector.multi_reduction <add>, %41, %cst_18 [1] : vector<8x8xf32> to vector<8xf32>
    %43 = vector.shape_cast %42 : vector<8xf32> to vector<8x1xf32>
    %44 = tpu.reciprocal %43 {approx = true} : vector<8x1xf32> -> vector<8x1xf32>
    %45 = vector.broadcast %44 : vector<8x1xf32> to vector<8x8xf32>
    %46 = arith.mulf %41, %45 : vector<8x8xf32>
    %47 = arith.truncf %46 : vector<8x8xf32> to vector<8x8xbf16>
    %cst_19 = arith.constant dense<0.000000e+00> : vector<8x16xf32>
    %48 = tpu.matmul %47, %33, %cst_19 {dimension_numbers = #tpu.dot_dimension_numbers<[1], [0], [0], [1], [0, 0, 1, 1], [], []>} : vector<8x8xbf16>, vector<8x16xbf16>, vector<8x16xf32> -> vector<8x16xf32>
    %c0_20 = arith.constant 0 : index
    %c0_21 = arith.constant 0 : index
    %49 = vector.load %arg9[%c0_20, %c0_21] : memref<8x32xf32, #tpu.memory_space<vmem>>, vector<8x16xf32>
    tpu.vector_store %arg9[%c0_20, %c0_21], %48 {strides = array<i32>} : memref<8x32xf32, #tpu.memory_space<vmem>>, vector<8x16xf32>,
    %50 = vector.extract_strided_slice %12 {offsets = [0, 16], sizes = [8, 16], strides = [1, 1]} : vector<8x32xf32> to vector<8x16xf32>
    %cst_22 = arith.constant 2.500000e-01 : f32
    %51 = vector.broadcast %cst_22 : f32 to vector<8x16xf32>
    %52 = arith.mulf %50, %51 : vector<8x16xf32>
    %53 = arith.truncf %52 : vector<8x16xf32> to vector<8x16xbf16>
    %54 = vector.extract_strided_slice %18 {offsets = [0, 16], sizes = [8, 16], strides = [1, 1]} : vector<8x32xf32> to vector<8x16xf32>
    %55 = arith.truncf %54 : vector<8x16xf32> to vector<8x16xbf16>
    %56 = vector.extract_strided_slice %19 {offsets = [0, 16], sizes = [8, 16], strides = [1, 1]} : vector<8x32xf32> to vector<8x16xf32>
    %57 = arith.truncf %56 : vector<8x16xf32> to vector<8x16xbf16>
    %cst_23 = arith.constant dense<0.000000e+00> : vector<8x8xf32>
    %58 = tpu.matmul %53, %55, %cst_23 {dimension_numbers = #tpu.dot_dimension_numbers<[1], [1], [0], [0], [0, 0, 1, 0], [], []>} : vector<8x16xbf16>, vector<8x16xbf16>, vector<8x8xf32> -> vector<8x8xf32>
    %59 = vector.broadcast %25 : vector<1x8xf32> to vector<8x8xf32>
    %60 = arith.addf %58, %59 : vector<8x8xf32>
    %cst_24 = arith.constant dense<0xFF800000> : vector<8xf32>
    %61 = vector.multi_reduction <maximumf>, %60, %cst_24 [1] : vector<8x8xf32> to vector<8xf32>
    %62 = vector.shape_cast %61 : vector<8xf32> to vector<8x1xf32>
    %63 = vector.broadcast %62 : vector<8x1xf32> to vector<8x8xf32>
    %64 = arith.subf %60, %63 : vector<8x8xf32>
    %65 = math.exp %64 : vector<8x8xf32>
    %cst_25 = arith.constant dense<0.000000e+00> : vector<8xf32>
    %66 = vector.multi_reduction <add>, %65, %cst_25 [1] : vector<8x8xf32> to vector<8xf32>
    %67 = vector.shape_cast %66 : vector<8xf32> to vector<8x1xf32>
    %68 = tpu.reciprocal %67 {approx = true} : vector<8x1xf32> -> vector<8x1xf32>
    %69 = vector.broadcast %68 : vector<8x1xf32> to vector<8x8xf32>
    %70 = arith.mulf %65, %69 : vector<8x8xf32>
    %71 = arith.truncf %70 : vector<8x8xf32> to vector<8x8xbf16>
    %cst_26 = arith.constant dense<0.000000e+00> : vector<8x16xf32>
    %72 = tpu.matmul %71, %57, %cst_26 {dimension_numbers = #tpu.dot_dimension_numbers<[1], [0], [0], [1], [0, 0, 1, 1], [], []>} : vector<8x8xbf16>, vector<8x16xbf16>, vector<8x16xf32> -> vector<8x16xf32>
    %c0_27 = arith.constant 0 : index
    %c16 = arith.constant 16 : index
    %73 = vector.load %arg9[%c0_27, %c16] : memref<8x32xf32, #tpu.memory_space<vmem>>, vector<8x16xf32>
    tpu.vector_store %arg9[%c0_27, %c16], %72 {strides = array<i32>} : memref<8x32xf32, #tpu.memory_space<vmem>>, vector<8x16xf32>,
    %c0_28 = arith.constant 0 : index
    %c0_29 = arith.constant 0 : index
    %74 = vector.load %arg9[%c0_28, %c0_29] : memref<8x32xf32, #tpu.memory_space<vmem>>, vector<8x32xf32>
    %75 = arith.truncf %74 : vector<8x32xf32> to vector<8x32xbf16>
    %c0_30 = arith.constant 0 : index
    %c0_31 = arith.constant 0 : index
    %76 = vector.load %arg6[%c0_30, %c0_31] : memref<32x32xbf16, #tpu.memory_space<vmem>>, vector<32x32xbf16>
    %cst_32 = arith.constant dense<0.000000e+00> : vector<8x32xf32>
    %77 = tpu.matmul %75, %76, %cst_32 {dimension_numbers = #tpu.dot_dimension_numbers<[1], [0], [0], [1], [0, 0, 1, 1], [], []>} : vector<8x32xbf16>, vector<32x32xbf16>, vector<8x32xf32> -> vector<8x32xf32>
    %c0_33 = arith.constant 0 : index
    %c0_34 = arith.constant 0 : index
    %78 = vector.load %arg7[%c0_33, %c0_34] : memref<1x32xf32, #tpu.memory_space<vmem>>, vector<1x32xf32>
    %79 = vector.broadcast %78 : vector<1x32xf32> to vector<8x32xf32>
    %80 = arith.addf %77, %79 : vector<8x32xf32>
    %c0_35 = arith.constant 0 : index
    %c0_36 = arith.constant 0 : index
    %c0_37 = arith.constant 0 : index
    %81 = vector.load %arg8[%c0_35, %c0_36, %c0_37] : memref<1x8x32xf32, #tpu.memory_space<vmem>>, vector<1x8x32xf32>
    %82 = vector.shape_cast %81 : vector<1x8x32xf32> to vector<8x32xf32>
    %83 = vector.shape_cast %80 : vector<8x32xf32> to vector<1x8x32xf32>
    tpu.vector_store %arg8[%c0_35, %c0_36, %c0_37], %83 {strides = array<i32>} : memref<1x8x32xf32, #tpu.memory_space<vmem>>, vector<1x8x32xf32>,
    return
  }
  func.func @transform_0(%arg0: i32) -> (i32, i32, i32) {
    %c0_i32 = arith.constant 0 : i32
    %c0_i32_0 = arith.constant 0 : i32
    %c0_i32_1 = arith.constant 0 : i32
    return %arg0, %c0_i32, %c0_i32_0 : i32, i32, i32
  }
  func.func @transform_1(%arg0: i32) -> (i32, i32, i32) {
    %c0_i32 = arith.constant 0 : i32
    %c0_i32_0 = arith.constant 0 : i32
    %c0_i32_1 = arith.constant 0 : i32
    return %arg0, %c0_i32, %c0_i32_0 : i32, i32, i32
  }
  func.func @transform_2(%arg0: i32) -> (i32, i32, i32) {
    %c0_i32 = arith.constant 0 : i32
    %c0_i32_0 = arith.constant 0 : i32
    %c0_i32_1 = arith.constant 0 : i32
    return %arg0, %c0_i32, %c0_i32_0 : i32, i32, i32
  }
  func.func @transform_3(%arg0: i32) -> (i32, i32) {
    %c0_i32 = arith.constant 0 : i32
    %c0_i32_0 = arith.constant 0 : i32
    %c0_i32_1 = arith.constant 0 : i32
    return %c0_i32, %c0_i32_0 : i32, i32
  }
  func.func @transform_4(%arg0: i32) -> (i32, i32) {
    %c0_i32 = arith.constant 0 : i32
    %c0_i32_0 = arith.constant 0 : i32
    %c0_i32_1 = arith.constant 0 : i32
    return %c0_i32, %c0_i32_0 : i32, i32
  }
  func.func @transform_5(%arg0: i32) -> (i32, i32) {
    %c0_i32 = arith.constant 0 : i32
    %c0_i32_0 = arith.constant 0 : i32
    %c0_i32_1 = arith.constant 0 : i32
    return %c0_i32, %c0_i32_0 : i32, i32
  }
  func.func @transform_6(%arg0: i32) -> (i32, i32) {
    %c0_i32 = arith.constant 0 : i32
    %c0_i32_0 = arith.constant 0 : i32
    %c0_i32_1 = arith.constant 0 : i32
    return %c0_i32, %c0_i32_0 : i32, i32
  }
  func.func @transform_7(%arg0: i32) -> (i32, i32, i32) {
    %c0_i32 = arith.constant 0 : i32
    %c0_i32_0 = arith.constant 0 : i32
    %c0_i32_1 = arith.constant 0 : i32
    return %arg0, %c0_i32, %c0_i32_0 : i32, i32, i32
  }
}

module attributes {stable_mosaic.version = 11 : i64} {
  func.func @_ln_kernel(%arg0: i32, %arg1: memref<16x32xf32, #tpu.memory_space<vmem>>, %arg2: memref<1x32xf32, #tpu.memory_space<vmem>>, %arg3: memref<1x32xf32, #tpu.memory_space<vmem>>, %arg4: memref<16x32xf32, #tpu.memory_space<vmem>>) attributes {dimension_semantics = [#tpu.dimension_semantics<parallel>], iteration_bounds = array<i64: 1>, scalar_prefetch = 0 : i64, scratch_operands = 0 : i64, tpu.core_type = #tpu.core_type<tc>, window_params = [{transform_indices = @transform_0, window_bounds = array<i64: 16, 32>}, {pipeline_mode = #tpu.pipeline_mode<synchronous>, transform_indices = @transform_1, window_bounds = array<i64: 1, 32>}, {pipeline_mode = #tpu.pipeline_mode<synchronous>, transform_indices = @transform_2, window_bounds = array<i64: 1, 32>}, {transform_indices = @transform_3, window_bounds = array<i64: 16, 32>}]} {
    %c0 = arith.constant 0 : index
    %c0_0 = arith.constant 0 : index
    %0 = vector.load %arg1[%c0, %c0_0] : memref<16x32xf32, #tpu.memory_space<vmem>>, vector<16x32xf32>
    %cst = arith.constant dense<0.000000e+00> : vector<16xf32>
    %1 = vector.multi_reduction <add>, %0, %cst [1] : vector<16x32xf32> to vector<16xf32>
    %2 = vector.shape_cast %1 : vector<16xf32> to vector<16x1xf32>
    %cst_1 = arith.constant 3.200000e+01 : f32
    %3 = vector.broadcast %cst_1 : f32 to vector<16x1xf32>
    %4 = arith.divf %2, %3 : vector<16x1xf32>
    %5 = vector.broadcast %4 : vector<16x1xf32> to vector<16x32xf32>
    %6 = arith.subf %0, %5 : vector<16x32xf32>
    %7 = arith.mulf %6, %6 : vector<16x32xf32>
    %cst_2 = arith.constant dense<0.000000e+00> : vector<16xf32>
    %8 = vector.multi_reduction <add>, %7, %cst_2 [1] : vector<16x32xf32> to vector<16xf32>
    %9 = vector.shape_cast %8 : vector<16xf32> to vector<16x1xf32>
    %cst_3 = arith.constant 3.200000e+01 : f32
    %10 = vector.broadcast %cst_3 : f32 to vector<16x1xf32>
    %11 = arith.divf %9, %10 : vector<16x1xf32>
    %12 = vector.broadcast %4 : vector<16x1xf32> to vector<16x32xf32>
    %13 = arith.subf %0, %12 : vector<16x32xf32>
    %cst_4 = arith.constant 9.99999974E-6 : f32
    %14 = vector.broadcast %cst_4 : f32 to vector<16x1xf32>
    %15 = arith.addf %11, %14 : vector<16x1xf32>
    %16 = math.rsqrt %15 : vector<16x1xf32>
    %17 = vector.broadcast %16 : vector<16x1xf32> to vector<16x32xf32>
    %18 = arith.mulf %13, %17 : vector<16x32xf32>
    %c0_5 = arith.constant 0 : index
    %c0_6 = arith.constant 0 : index
    %19 = vector.load %arg2[%c0_5, %c0_6] : memref<1x32xf32, #tpu.memory_space<vmem>>, vector<1x32xf32>
    %20 = vector.broadcast %19 : vector<1x32xf32> to vector<16x32xf32>
    %21 = arith.mulf %18, %20 : vector<16x32xf32>
    %c0_7 = arith.constant 0 : index
    %c0_8 = arith.constant 0 : index
    %22 = vector.load %arg3[%c0_7, %c0_8] : memref<1x32xf32, #tpu.memory_space<vmem>>, vector<1x32xf32>
    %23 = vector.broadcast %22 : vector<1x32xf32> to vector<16x32xf32>
    %24 = arith.addf %21, %23 : vector<16x32xf32>
    %c0_9 = arith.constant 0 : index
    %c0_10 = arith.constant 0 : index
    %25 = vector.load %arg4[%c0_9, %c0_10] : memref<16x32xf32, #tpu.memory_space<vmem>>, vector<16x32xf32>
    tpu.vector_store %arg4[%c0_9, %c0_10], %24 {strides = array<i32>} : memref<16x32xf32, #tpu.memory_space<vmem>>, vector<16x32xf32>,
    return
  }
  func.func @transform_0(%arg0: i32) -> (i32, i32) {
    %c0_i32 = arith.constant 0 : i32
    %c0_i32_0 = arith.constant 0 : i32
    return %arg0, %c0_i32 : i32, i32
  }
  func.func @transform_1(%arg0: i32) -> (i32, i32) {
    %c0_i32 = arith.constant 0 : i32
    %c0_i32_0 = arith.constant 0 : i32
    %c0_i32_1 = arith.constant 0 : i32
    return %c0_i32, %c0_i32_0 : i32, i32
  }
  func.func @transform_2(%arg0: i32) -> (i32, i32) {
    %c0_i32 = arith.constant 0 : i32
    %c0_i32_0 = arith.constant 0 : i32
    %c0_i32_1 = arith.constant 0 : i32
    return %c0_i32, %c0_i32_0 : i32, i32
  }
  func.func @transform_3(%arg0: i32) -> (i32, i32) {
    %c0_i32 = arith.constant 0 : i32
    %c0_i32_0 = arith.constant 0 : i32
    return %arg0, %c0_i32 : i32, i32
  }
}

module attributes {stable_mosaic.version = 11 : i64} {
  func.func @_mha_kernel(%arg0: i32, %arg1: memref<1x8x32xf32, #tpu.memory_space<vmem>>, %arg2: memref<1x8x32xf32, #tpu.memory_space<vmem>>, %arg3: memref<1x1x8xf32, #tpu.memory_space<vmem>>, %arg4: memref<32x96xbf16, #tpu.memory_space<vmem>>, %arg5: memref<1x96xf32, #tpu.memory_space<vmem>>, %arg6: memref<32x32xbf16, #tpu.memory_space<vmem>>, %arg7: memref<1x32xf32, #tpu.memory_space<vmem>>, %arg8: memref<1x8x32xf32, #tpu.memory_space<vmem>>, %arg9: memref<8x32xf32, #tpu.memory_space<vmem>>) attributes {dimension_semantics = [#tpu.dimension_semantics<parallel>], iteration_bounds = array<i64: 2>, scalar_prefetch = 0 : i64, scratch_operands = 1 : i64, tpu.core_type = #tpu.core_type<tc>, window_params = [{transform_indices = @transform_0, window_bounds = array<i64: 1, 8, 32>}, {transform_indices = @transform_1, window_bounds = array<i64: 1, 8, 32>}, {transform_indices = @transform_2, window_bounds = array<i64: 1, 1, 8>}, {pipeline_mode = #tpu.pipeline_mode<synchronous>, transform_indices = @transform_3, window_bounds = array<i64: 32, 96>}, {pipeline_mode = #tpu.pipeline_mode<synchronous>, transform_indices = @transform_4, window_bounds = array<i64: 1, 96>}, {pipeline_mode = #tpu.pipeline_mode<synchronous>, transform_indices = @transform_5, window_bounds = array<i64: 32, 32>}, {pipeline_mode = #tpu.pipeline_mode<synchronous>, transform_indices = @transform_6, window_bounds = array<i64: 1, 32>}, {transform_indices = @transform_7, window_bounds = array<i64: 1, 8, 32>}]} {
    %c0 = arith.constant 0 : index
    %c0_0 = arith.constant 0 : index
    %c0_1 = arith.constant 0 : index
    %0 = vector.load %arg1[%c0, %c0_0, %c0_1] : memref<1x8x32xf32, #tpu.memory_space<vmem>>, vector<1x8x32xf32>
    %1 = vector.shape_cast %0 : vector<1x8x32xf32> to vector<8x32xf32>
    %2 = arith.truncf %1 : vector<8x32xf32> to vector<8x32xbf16>
    %c0_2 = arith.constant 0 : index
    %c0_3 = arith.constant 0 : index
    %c0_4 = arith.constant 0 : index
    %3 = vector.load %arg2[%c0_2, %c0_3, %c0_4] : memref<1x8x32xf32, #tpu.memory_space<vmem>>, vector<1x8x32xf32>
    %4 = vector.shape_cast %3 : vector<1x8x32xf32> to vector<8x32xf32>
    %5 = arith.truncf %4 : vector<8x32xf32> to vector<8x32xbf16>
    %c0_5 = arith.constant 0 : index
    %c0_6 = arith.constant 0 : index
    %6 = vector.load %arg4[%c0_5, %c0_6] : memref<32x96xbf16, #tpu.memory_space<vmem>>, vector<32x96xbf16>
    %c0_7 = arith.constant 0 : index
    %c0_8 = arith.constant 0 : index
    %7 = vector.load %arg5[%c0_7, %c0_8] : memref<1x96xf32, #tpu.memory_space<vmem>>, vector<1x96xf32>
    %8 = vector.extract_strided_slice %6 {offsets = [0, 0], sizes = [32, 32], strides = [1, 1]} : vector<32x96xbf16> to vector<32x32xbf16>
    %cst = arith.constant dense<0.000000e+00> : vector<8x32xf32>
    %9 = tpu.matmul %2, %8, %cst {dimension_numbers = #tpu.dot_dimension_numbers<[1], [0], [0], [1], [0, 0, 1, 1], [], []>} : vector<8x32xbf16>, vector<32x32xbf16>, vector<8x32xf32> -> vector<8x32xf32>
    %10 = vector.extract_strided_slice %7 {offsets = [0, 0], sizes = [1, 32], strides = [1, 1]} : vector<1x96xf32> to vector<1x32xf32>
    %11 = vector.broadcast %10 : vector<1x32xf32> to vector<8x32xf32>
    %12 = arith.addf %9, %11 : vector<8x32xf32>
    %13 = vector.extract_strided_slice %6 {offsets = [0, 32], sizes = [32, 64], strides = [1, 1]} : vector<32x96xbf16> to vector<32x64xbf16>
    %cst_9 = arith.constant dense<0.000000e+00> : vector<8x64xf32>
    %14 = tpu.matmul %5, %13, %cst_9 {dimension_numbers = #tpu.dot_dimension_numbers<[1], [0], [0], [1], [0, 0, 1, 1], [], []>} : vector<8x32xbf16>, vector<32x64xbf16>, vector<8x64xf32> -> vector<8x64xf32>
    %15 = vector.extract_strided_slice %7 {offsets = [0, 32], sizes = [1, 64], strides = [1, 1]} : vector<1x96xf32> to vector<1x64xf32>
    %16 = vector.broadcast %15 : vector<1x64xf32> to vector<8x64xf32>
    %17 = arith.addf %14, %16 : vector<8x64xf32>
    %18 = vector.extract_strided_slice %17 {offsets = [0, 0], sizes = [8, 32], strides = [1, 1]} : vector<8x64xf32> to vector<8x32xf32>
    %19 = vector.extract_strided_slice %17 {offsets = [0, 32], sizes = [8, 32], strides = [1, 1]} : vector<8x64xf32> to vector<8x32xf32>
    %c0_10 = arith.constant 0 : index
    %c0_11 = arith.constant 0 : index
    %c0_12 = arith.constant 0 : index
    %20 = vector.load %arg3[%c0_10, %c0_11, %c0_12] : memref<1x1x8xf32, #tpu.memory_space<vmem>>, vector<1x1x8xf32>
    %21 = vector.shape_cast %20 : vector<1x1x8xf32> to vector<1x8xf32>
    %cst_13 = arith.constant 1.000000e+00 : f32
    %22 = vector.broadcast %cst_13 : f32 to vector<1x8xf32>
    %23 = arith.subf %22, %21 : vector<1x8xf32>
    %cst_14 = arith.constant -1.000000e+09 : f32
    %24 = vector.broadcast %cst_14 : f32 to vector<1x8xf32>
    %25 = arith.mulf %23, %24 : vector<1x8xf32>
    %26 = tpu.iota {dimensions = array<i32: 0>} : vector<8x8xi32>
    %27 = tpu.iota {dimensions = array<i32: 1>} : vector<8x8xi32>
    %28 = arith.cmpi sgt, %27, %26 : vector<8x8xi32>
    %cst_15 = arith.constant -1.000000e+09 : f32
    %cst_16 = arith.constant 0.000000e+00 : f32
    %29 = vector.broadcast %cst_15 : f32 to vector<8x8xf32>
    %30 = vector.broadcast %cst_16 : f32 to vector<8x8xf32>
    %31 = arith.select %28, %29, %30 : vector<8x8xi1>, vector<8x8xf32>
    %32 = vector.extract_strided_slice %12 {offsets = [0, 0], sizes = [8, 16], strides = [1, 1]} : vector<8x32xf32> to vector<8x16xf32>
    %cst_17 = arith.constant 2.500000e-01 : f32
    %33 = vector.broadcast %cst_17 : f32 to vector<8x16xf32>
    %34 = arith.mulf %32, %33 : vector<8x16xf32>
    %35 = arith.truncf %34 : vector<8x16xf32> to vector<8x16xbf16>
    %36 = vector.extract_strided_slice %18 {offsets = [0, 0], sizes = [8, 16], strides = [1, 1]} : vector<8x32xf32> to vector<8x16xf32>
    %37 = arith.truncf %36 : vector<8x16xf32> to vector<8x16xbf16>
    %38 = vector.extract_strided_slice %19 {offsets = [0, 0], sizes = [8, 16], strides = [1, 1]} : vector<8x32xf32> to vector<8x16xf32>
    %39 = arith.truncf %38 : vector<8x16xf32> to vector<8x16xbf16>
    %cst_18 = arith.constant dense<0.000000e+00> : vector<8x8xf32>
    %40 = tpu.matmul %35, %37, %cst_18 {dimension_numbers = #tpu.dot_dimension_numbers<[1], [1], [0], [0], [0, 0, 1, 0], [], []>} : vector<8x16xbf16>, vector<8x16xbf16>, vector<8x8xf32> -> vector<8x8xf32>
    %41 = vector.broadcast %25 : vector<1x8xf32> to vector<8x8xf32>
    %42 = arith.addf %40, %41 : vector<8x8xf32>
    %43 = arith.addf %42, %31 : vector<8x8xf32>
    %cst_19 = arith.constant dense<0xFF800000> : vector<8xf32>
    %44 = vector.multi_reduction <maximumf>, %43, %cst_19 [1] : vector<8x8xf32> to vector<8xf32>
    %45 = vector.shape_cast %44 : vector<8xf32> to vector<8x1xf32>
    %46 = vector.broadcast %45 : vector<8x1xf32> to vector<8x8xf32>
    %47 = arith.subf %43, %46 : vector<8x8xf32>
    %48 = math.exp %47 : vector<8x8xf32>
    %cst_20 = arith.constant dense<0.000000e+00> : vector<8xf32>
    %49 = vector.multi_reduction <add>, %48, %cst_20 [1] : vector<8x8xf32> to vector<8xf32>
    %50 = vector.shape_cast %49 : vector<8xf32> to vector<8x1xf32>
    %51 = tpu.reciprocal %50 {approx = true} : vector<8x1xf32> -> vector<8x1xf32>
    %52 = vector.broadcast %51 : vector<8x1xf32> to vector<8x8xf32>
    %53 = arith.mulf %48, %52 : vector<8x8xf32>
    %54 = arith.truncf %53 : vector<8x8xf32> to vector<8x8xbf16>
    %cst_21 = arith.constant dense<0.000000e+00> : vector<8x16xf32>
    %55 = tpu.matmul %54, %39, %cst_21 {dimension_numbers = #tpu.dot_dimension_numbers<[1], [0], [0], [1], [0, 0, 1, 1], [], []>} : vector<8x8xbf16>, vector<8x16xbf16>, vector<8x16xf32> -> vector<8x16xf32>
    %c0_22 = arith.constant 0 : index
    %c0_23 = arith.constant 0 : index
    %56 = vector.load %arg9[%c0_22, %c0_23] : memref<8x32xf32, #tpu.memory_space<vmem>>, vector<8x16xf32>
    tpu.vector_store %arg9[%c0_22, %c0_23], %55 {strides = array<i32>} : memref<8x32xf32, #tpu.memory_space<vmem>>, vector<8x16xf32>,
    %57 = vector.extract_strided_slice %12 {offsets = [0, 16], sizes = [8, 16], strides = [1, 1]} : vector<8x32xf32> to vector<8x16xf32>
    %cst_24 = arith.constant 2.500000e-01 : f32
    %58 = vector.broadcast %cst_24 : f32 to vector<8x16xf32>
    %59 = arith.mulf %57, %58 : vector<8x16xf32>
    %60 = arith.truncf %59 : vector<8x16xf32> to vector<8x16xbf16>
    %61 = vector.extract_strided_slice %18 {offsets = [0, 16], sizes = [8, 16], strides = [1, 1]} : vector<8x32xf32> to vector<8x16xf32>
    %62 = arith.truncf %61 : vector<8x16xf32> to vector<8x16xbf16>
    %63 = vector.extract_strided_slice %19 {offsets = [0, 16], sizes = [8, 16], strides = [1, 1]} : vector<8x32xf32> to vector<8x16xf32>
    %64 = arith.truncf %63 : vector<8x16xf32> to vector<8x16xbf16>
    %cst_25 = arith.constant dense<0.000000e+00> : vector<8x8xf32>
    %65 = tpu.matmul %60, %62, %cst_25 {dimension_numbers = #tpu.dot_dimension_numbers<[1], [1], [0], [0], [0, 0, 1, 0], [], []>} : vector<8x16xbf16>, vector<8x16xbf16>, vector<8x8xf32> -> vector<8x8xf32>
    %66 = vector.broadcast %25 : vector<1x8xf32> to vector<8x8xf32>
    %67 = arith.addf %65, %66 : vector<8x8xf32>
    %68 = arith.addf %67, %31 : vector<8x8xf32>
    %cst_26 = arith.constant dense<0xFF800000> : vector<8xf32>
    %69 = vector.multi_reduction <maximumf>, %68, %cst_26 [1] : vector<8x8xf32> to vector<8xf32>
    %70 = vector.shape_cast %69 : vector<8xf32> to vector<8x1xf32>
    %71 = vector.broadcast %70 : vector<8x1xf32> to vector<8x8xf32>
    %72 = arith.subf %68, %71 : vector<8x8xf32>
    %73 = math.exp %72 : vector<8x8xf32>
    %cst_27 = arith.constant dense<0.000000e+00> : vector<8xf32>
    %74 = vector.multi_reduction <add>, %73, %cst_27 [1] : vector<8x8xf32> to vector<8xf32>
    %75 = vector.shape_cast %74 : vector<8xf32> to vector<8x1xf32>
    %76 = tpu.reciprocal %75 {approx = true} : vector<8x1xf32> -> vector<8x1xf32>
    %77 = vector.broadcast %76 : vector<8x1xf32> to vector<8x8xf32>
    %78 = arith.mulf %73, %77 : vector<8x8xf32>
    %79 = arith.truncf %78 : vector<8x8xf32> to vector<8x8xbf16>
    %cst_28 = arith.constant dense<0.000000e+00> : vector<8x16xf32>
    %80 = tpu.matmul %79, %64, %cst_28 {dimension_numbers = #tpu.dot_dimension_numbers<[1], [0], [0], [1], [0, 0, 1, 1], [], []>} : vector<8x8xbf16>, vector<8x16xbf16>, vector<8x16xf32> -> vector<8x16xf32>
    %c0_29 = arith.constant 0 : index
    %c16 = arith.constant 16 : index
    %81 = vector.load %arg9[%c0_29, %c16] : memref<8x32xf32, #tpu.memory_space<vmem>>, vector<8x16xf32>
    tpu.vector_store %arg9[%c0_29, %c16], %80 {strides = array<i32>} : memref<8x32xf32, #tpu.memory_space<vmem>>, vector<8x16xf32>,
    %c0_30 = arith.constant 0 : index
    %c0_31 = arith.constant 0 : index
    %82 = vector.load %arg9[%c0_30, %c0_31] : memref<8x32xf32, #tpu.memory_space<vmem>>, vector<8x32xf32>
    %83 = arith.truncf %82 : vector<8x32xf32> to vector<8x32xbf16>
    %c0_32 = arith.constant 0 : index
    %c0_33 = arith.constant 0 : index
    %84 = vector.load %arg6[%c0_32, %c0_33] : memref<32x32xbf16, #tpu.memory_space<vmem>>, vector<32x32xbf16>
    %cst_34 = arith.constant dense<0.000000e+00> : vector<8x32xf32>
    %85 = tpu.matmul %83, %84, %cst_34 {dimension_numbers = #tpu.dot_dimension_numbers<[1], [0], [0], [1], [0, 0, 1, 1], [], []>} : vector<8x32xbf16>, vector<32x32xbf16>, vector<8x32xf32> -> vector<8x32xf32>
    %c0_35 = arith.constant 0 : index
    %c0_36 = arith.constant 0 : index
    %86 = vector.load %arg7[%c0_35, %c0_36] : memref<1x32xf32, #tpu.memory_space<vmem>>, vector<1x32xf32>
    %87 = vector.broadcast %86 : vector<1x32xf32> to vector<8x32xf32>
    %88 = arith.addf %85, %87 : vector<8x32xf32>
    %c0_37 = arith.constant 0 : index
    %c0_38 = arith.constant 0 : index
    %c0_39 = arith.constant 0 : index
    %89 = vector.load %arg8[%c0_37, %c0_38, %c0_39] : memref<1x8x32xf32, #tpu.memory_space<vmem>>, vector<1x8x32xf32>
    %90 = vector.shape_cast %89 : vector<1x8x32xf32> to vector<8x32xf32>
    %91 = vector.shape_cast %88 : vector<8x32xf32> to vector<1x8x32xf32>
    tpu.vector_store %arg8[%c0_37, %c0_38, %c0_39], %91 {strides = array<i32>} : memref<1x8x32xf32, #tpu.memory_space<vmem>>, vector<1x8x32xf32>,
    return
  }
  func.func @transform_0(%arg0: i32) -> (i32, i32, i32) {
    %c0_i32 = arith.constant 0 : i32
    %c0_i32_0 = arith.constant 0 : i32
    %c0_i32_1 = arith.constant 0 : i32
    return %arg0, %c0_i32, %c0_i32_0 : i32, i32, i32
  }
  func.func @transform_1(%arg0: i32) -> (i32, i32, i32) {
    %c0_i32 = arith.constant 0 : i32
    %c0_i32_0 = arith.constant 0 : i32
    %c0_i32_1 = arith.constant 0 : i32
    return %arg0, %c0_i32, %c0_i32_0 : i32, i32, i32
  }
  func.func @transform_2(%arg0: i32) -> (i32, i32, i32) {
    %c0_i32 = arith.constant 0 : i32
    %c0_i32_0 = arith.constant 0 : i32
    %c0_i32_1 = arith.constant 0 : i32
    return %arg0, %c0_i32, %c0_i32_0 : i32, i32, i32
  }
  func.func @transform_3(%arg0: i32) -> (i32, i32) {
    %c0_i32 = arith.constant 0 : i32
    %c0_i32_0 = arith.constant 0 : i32
    %c0_i32_1 = arith.constant 0 : i32
    return %c0_i32, %c0_i32_0 : i32, i32
  }
  func.func @transform_4(%arg0: i32) -> (i32, i32) {
    %c0_i32 = arith.constant 0 : i32
    %c0_i32_0 = arith.constant 0 : i32
    %c0_i32_1 = arith.constant 0 : i32
    return %c0_i32, %c0_i32_0 : i32, i32
  }
  func.func @transform_5(%arg0: i32) -> (i32, i32) {
    %c0_i32 = arith.constant 0 : i32
    %c0_i32_0 = arith.constant 0 : i32
    %c0_i32_1 = arith.constant 0 : i32
    return %c0_i32, %c0_i32_0 : i32, i32
  }
  func.func @transform_6(%arg0: i32) -> (i32, i32) {
    %c0_i32 = arith.constant 0 : i32
    %c0_i32_0 = arith.constant 0 : i32
    %c0_i32_1 = arith.constant 0 : i32
    return %c0_i32, %c0_i32_0 : i32, i32
  }
  func.func @transform_7(%arg0: i32) -> (i32, i32, i32) {
    %c0_i32 = arith.constant 0 : i32
    %c0_i32_0 = arith.constant 0 : i32
    %c0_i32_1 = arith.constant 0 : i32
    return %arg0, %c0_i32, %c0_i32_0 : i32, i32, i32
  }
}

module attributes {stable_mosaic.version = 11 : i64} {
  func.func @_ln_kernel(%arg0: i32, %arg1: memref<16x32xf32, #tpu.memory_space<vmem>>, %arg2: memref<16x32xf32, #tpu.memory_space<vmem>>, %arg3: memref<1x32xf32, #tpu.memory_space<vmem>>, %arg4: memref<1x32xf32, #tpu.memory_space<vmem>>, %arg5: memref<16x32xf32, #tpu.memory_space<vmem>>) attributes {dimension_semantics = [#tpu.dimension_semantics<parallel>], iteration_bounds = array<i64: 1>, scalar_prefetch = 0 : i64, scratch_operands = 0 : i64, tpu.core_type = #tpu.core_type<tc>, window_params = [{transform_indices = @transform_0, window_bounds = array<i64: 16, 32>}, {transform_indices = @transform_1, window_bounds = array<i64: 16, 32>}, {pipeline_mode = #tpu.pipeline_mode<synchronous>, transform_indices = @transform_2, window_bounds = array<i64: 1, 32>}, {pipeline_mode = #tpu.pipeline_mode<synchronous>, transform_indices = @transform_3, window_bounds = array<i64: 1, 32>}, {transform_indices = @transform_4, window_bounds = array<i64: 16, 32>}]} {
    %c0 = arith.constant 0 : index
    %c0_0 = arith.constant 0 : index
    %0 = vector.load %arg1[%c0, %c0_0] : memref<16x32xf32, #tpu.memory_space<vmem>>, vector<16x32xf32>
    %c0_1 = arith.constant 0 : index
    %c0_2 = arith.constant 0 : index
    %1 = vector.load %arg2[%c0_1, %c0_2] : memref<16x32xf32, #tpu.memory_space<vmem>>, vector<16x32xf32>
    %2 = arith.addf %0, %1 : vector<16x32xf32>
    %cst = arith.constant dense<0.000000e+00> : vector<16xf32>
    %3 = vector.multi_reduction <add>, %2, %cst [1] : vector<16x32xf32> to vector<16xf32>
    %4 = vector.shape_cast %3 : vector<16xf32> to vector<16x1xf32>
    %cst_3 = arith.constant 3.200000e+01 : f32
    %5 = vector.broadcast %cst_3 : f32 to vector<16x1xf32>
    %6 = arith.divf %4, %5 : vector<16x1xf32>
    %7 = vector.broadcast %6 : vector<16x1xf32> to vector<16x32xf32>
    %8 = arith.subf %2, %7 : vector<16x32xf32>
    %9 = arith.mulf %8, %8 : vector<16x32xf32>
    %cst_4 = arith.constant dense<0.000000e+00> : vector<16xf32>
    %10 = vector.multi_reduction <add>, %9, %cst_4 [1] : vector<16x32xf32> to vector<16xf32>
    %11 = vector.shape_cast %10 : vector<16xf32> to vector<16x1xf32>
    %cst_5 = arith.constant 3.200000e+01 : f32
    %12 = vector.broadcast %cst_5 : f32 to vector<16x1xf32>
    %13 = arith.divf %11, %12 : vector<16x1xf32>
    %14 = vector.broadcast %6 : vector<16x1xf32> to vector<16x32xf32>
    %15 = arith.subf %2, %14 : vector<16x32xf32>
    %cst_6 = arith.constant 9.99999974E-6 : f32
    %16 = vector.broadcast %cst_6 : f32 to vector<16x1xf32>
    %17 = arith.addf %13, %16 : vector<16x1xf32>
    %18 = math.rsqrt %17 : vector<16x1xf32>
    %19 = vector.broadcast %18 : vector<16x1xf32> to vector<16x32xf32>
    %20 = arith.mulf %15, %19 : vector<16x32xf32>
    %c0_7 = arith.constant 0 : index
    %c0_8 = arith.constant 0 : index
    %21 = vector.load %arg3[%c0_7, %c0_8] : memref<1x32xf32, #tpu.memory_space<vmem>>, vector<1x32xf32>
    %22 = vector.broadcast %21 : vector<1x32xf32> to vector<16x32xf32>
    %23 = arith.mulf %20, %22 : vector<16x32xf32>
    %c0_9 = arith.constant 0 : index
    %c0_10 = arith.constant 0 : index
    %24 = vector.load %arg4[%c0_9, %c0_10] : memref<1x32xf32, #tpu.memory_space<vmem>>, vector<1x32xf32>
    %25 = vector.broadcast %24 : vector<1x32xf32> to vector<16x32xf32>
    %26 = arith.addf %23, %25 : vector<16x32xf32>
    %c0_11 = arith.constant 0 : index
    %c0_12 = arith.constant 0 : index
    %27 = vector.load %arg5[%c0_11, %c0_12] : memref<16x32xf32, #tpu.memory_space<vmem>>, vector<16x32xf32>
    tpu.vector_store %arg5[%c0_11, %c0_12], %26 {strides = array<i32>} : memref<16x32xf32, #tpu.memory_space<vmem>>, vector<16x32xf32>,
    return
  }
  func.func @transform_0(%arg0: i32) -> (i32, i32) {
    %c0_i32 = arith.constant 0 : i32
    %c0_i32_0 = arith.constant 0 : i32
    return %arg0, %c0_i32 : i32, i32
  }
  func.func @transform_1(%arg0: i32) -> (i32, i32) {
    %c0_i32 = arith.constant 0 : i32
    %c0_i32_0 = arith.constant 0 : i32
    return %arg0, %c0_i32 : i32, i32
  }
  func.func @transform_2(%arg0: i32) -> (i32, i32) {
    %c0_i32 = arith.constant 0 : i32
    %c0_i32_0 = arith.constant 0 : i32
    %c0_i32_1 = arith.constant 0 : i32
    return %c0_i32, %c0_i32_0 : i32, i32
  }
  func.func @transform_3(%arg0: i32) -> (i32, i32) {
    %c0_i32 = arith.constant 0 : i32
    %c0_i32_0 = arith.constant 0 : i32
    %c0_i32_1 = arith.constant 0 : i32
    return %c0_i32, %c0_i32_0 : i32, i32
  }
  func.func @transform_4(%arg0: i32) -> (i32, i32) {
    %c0_i32 = arith.constant 0 : i32
    %c0_i32_0 = arith.constant 0 : i32
    return %arg0, %c0_i32 : i32, i32
  }
}

module attributes {stable_mosaic.version = 11 : i64} {
  func.func @_dense_kernel(%arg0: i32, %arg1: i32, %arg2: i32, %arg3: memref<16x32xf32, #tpu.memory_space<vmem>>, %arg4: memref<32x64xbf16, #tpu.memory_space<vmem>>, %arg5: memref<1x64xf32, #tpu.memory_space<vmem>>, %arg6: memref<16x64xf32, #tpu.memory_space<vmem>>, %arg7: memref<16x64xf32, #tpu.memory_space<vmem>>) attributes {dimension_semantics = [#tpu.dimension_semantics<parallel>, #tpu.dimension_semantics<parallel>, #tpu.dimension_semantics<arbitrary>], iteration_bounds = array<i64: 1, 1, 1>, scalar_prefetch = 0 : i64, scratch_operands = 1 : i64, tpu.core_type = #tpu.core_type<tc>, window_params = [{transform_indices = @transform_0, window_bounds = array<i64: 16, 32>}, {transform_indices = @transform_1, window_bounds = array<i64: 32, 64>}, {transform_indices = @transform_2, window_bounds = array<i64: 1, 64>}, {transform_indices = @transform_3, window_bounds = array<i64: 16, 64>}]} {
    %c0_i32 = arith.constant 0 : i32
    %0 = arith.cmpi eq, %arg2, %c0_i32 : i32
    %1 = arith.extui %0 : i1 to i32
    %c0_i32_0 = arith.constant 0 : i32
    %2 = arith.cmpi ne, %1, %c0_i32_0 : i32
    scf.if %2 {
      %cst_10 = arith.constant 0.000000e+00 : f32
      %13 = vector.broadcast %cst_10 : f32 to vector<16x64xf32>
      %c0_11 = arith.constant 0 : index
      %c0_12 = arith.constant 0 : index
      %14 = vector.load %arg7[%c0_11, %c0_12] : memref<16x64xf32, #tpu.memory_space<vmem>>, vector<16x64xf32>
      tpu.vector_store %arg7[%c0_11, %c0_12], %13 {strides = array<i32>} : memref<16x64xf32, #tpu.memory_space<vmem>>, vector<16x64xf32>,
    } else {
    }
    %c0 = arith.constant 0 : index
    %c0_1 = arith.constant 0 : index
    %3 = vector.load %arg3[%c0, %c0_1] : memref<16x32xf32, #tpu.memory_space<vmem>>, vector<16x32xf32>
    %4 = arith.truncf %3 : vector<16x32xf32> to vector<16x32xbf16>
    %c0_2 = arith.constant 0 : index
    %c0_3 = arith.constant 0 : index
    %5 = vector.load %arg4[%c0_2, %c0_3] : memref<32x64xbf16, #tpu.memory_space<vmem>>, vector<32x64xbf16>
    %c0_4 = arith.constant 0 : index
    %c0_5 = arith.constant 0 : index
    %6 = vector.load %arg7[%c0_4, %c0_5] : memref<16x64xf32, #tpu.memory_space<vmem>>, vector<16x64xf32>
    %cst = arith.constant dense<0.000000e+00> : vector<16x64xf32>
    %7 = tpu.matmul %4, %5, %cst {dimension_numbers = #tpu.dot_dimension_numbers<[1], [0], [0], [1], [0, 0, 1, 1], [], []>} : vector<16x32xbf16>, vector<32x64xbf16>, vector<16x64xf32> -> vector<16x64xf32>
    %8 = arith.addf %6, %7 : vector<16x64xf32>
    %c0_6 = arith.constant 0 : index
    %c0_7 = arith.constant 0 : index
    %9 = vector.load %arg7[%c0_6, %c0_7] : memref<16x64xf32, #tpu.memory_space<vmem>>, vector<16x64xf32>
    tpu.vector_store %arg7[%c0_6, %c0_7], %8 {strides = array<i32>} : memref<16x64xf32, #tpu.memory_space<vmem>>, vector<16x64xf32>,
    %c0_i32_8 = arith.constant 0 : i32
    %10 = arith.cmpi eq, %arg2, %c0_i32_8 : i32
    %11 = arith.extui %10 : i1 to i32
    %c0_i32_9 = arith.constant 0 : i32
    %12 = arith.cmpi ne, %11, %c0_i32_9 : i32
    scf.if %12 {
      %c0_10 = arith.constant 0 : index
      %c0_11 = arith.constant 0 : index
      %13 = vector.load %arg7[%c0_10, %c0_11] : memref<16x64xf32, #tpu.memory_space<vmem>>, vector<16x64xf32>
      %c0_12 = arith.constant 0 : index
      %c0_13 = arith.constant 0 : index
      %14 = vector.load %arg5[%c0_12, %c0_13] : memref<1x64xf32, #tpu.memory_space<vmem>>, vector<1x64xf32>
      %15 = vector.broadcast %14 : vector<1x64xf32> to vector<16x64xf32>
      %16 = arith.addf %13, %15 : vector<16x64xf32>
      %cst_14 = arith.constant 5.000000e-01 : f32
      %17 = vector.broadcast %cst_14 : f32 to vector<16x64xf32>
      %18 = arith.mulf %17, %16 : vector<16x64xf32>
      %cst_15 = arith.constant 4.471500e-02 : f32
      %19 = vector.broadcast %cst_15 : f32 to vector<16x64xf32>
      %20 = arith.mulf %19, %16 : vector<16x64xf32>
      %21 = arith.mulf %20, %16 : vector<16x64xf32>
      %22 = arith.mulf %21, %16 : vector<16x64xf32>
      %23 = arith.addf %16, %22 : vector<16x64xf32>
      %cst_16 = arith.constant 0.797884583 : f32
      %24 = vector.broadcast %cst_16 : f32 to vector<16x64xf32>
      %25 = arith.mulf %24, %23 : vector<16x64xf32>
      %26 = math.tanh %25 : vector<16x64xf32>
      %cst_17 = arith.constant 1.000000e+00 : f32
      %27 = vector.broadcast %cst_17 : f32 to vector<16x64xf32>
      %28 = arith.addf %27, %26 : vector<16x64xf32>
      %29 = arith.mulf %18, %28 : vector<16x64xf32>
      %c0_18 = arith.constant 0 : index
      %c0_19 = arith.constant 0 : index
      %30 = vector.load %arg6[%c0_18, %c0_19] : memref<16x64xf32, #tpu.memory_space<vmem>>, vector<16x64xf32>
      tpu.vector_store %arg6[%c0_18, %c0_19], %29 {strides = array<i32>} : memref<16x64xf32, #tpu.memory_space<vmem>>, vector<16x64xf32>,
    } else {
    }
    return
  }
  func.func @transform_0(%arg0: i32, %arg1: i32, %arg2: i32) -> (i32, i32) {
    %c0_i32 = arith.constant 0 : i32
    return %arg0, %arg2 : i32, i32
  }
  func.func @transform_1(%arg0: i32, %arg1: i32, %arg2: i32) -> (i32, i32) {
    %c0_i32 = arith.constant 0 : i32
    return %arg2, %arg1 : i32, i32
  }
  func.func @transform_2(%arg0: i32, %arg1: i32, %arg2: i32) -> (i32, i32) {
    %c0_i32 = arith.constant 0 : i32
    %c0_i32_0 = arith.constant 0 : i32
    return %c0_i32, %arg1 : i32, i32
  }
  func.func @transform_3(%arg0: i32, %arg1: i32, %arg2: i32) -> (i32, i32) {
    %c0_i32 = arith.constant 0 : i32
    return %arg0, %arg1 : i32, i32
  }
}

module attributes {stable_mosaic.version = 11 : i64} {
  func.func @_dense_kernel(%arg0: i32, %arg1: i32, %arg2: i32, %arg3: memref<16x32xf32, #tpu.memory_space<vmem>>, %arg4: memref<64x32xbf16, #tpu.memory_space<vmem>>, %arg5: memref<1x64xf32, #tpu.memory_space<vmem>>, %arg6: memref<16x64xf32, #tpu.memory_space<vmem>>, %arg7: memref<16x64xf32, #tpu.memory_space<vmem>>) attributes {dimension_semantics = [#tpu.dimension_semantics<parallel>, #tpu.dimension_semantics<parallel>, #tpu.dimension_semantics<arbitrary>], iteration_bounds = array<i64: 1, 1, 1>, scalar_prefetch = 0 : i64, scratch_operands = 1 : i64, tpu.core_type = #tpu.core_type<tc>, window_params = [{transform_indices = @transform_0, window_bounds = array<i64: 16, 32>}, {transform_indices = @transform_1, window_bounds = array<i64: 64, 32>}, {transform_indices = @transform_2, window_bounds = array<i64: 1, 64>}, {transform_indices = @transform_3, window_bounds = array<i64: 16, 64>}]} {
    %c0_i32 = arith.constant 0 : i32
    %0 = arith.cmpi eq, %arg2, %c0_i32 : i32
    %1 = arith.extui %0 : i1 to i32
    %c0_i32_0 = arith.constant 0 : i32
    %2 = arith.cmpi ne, %1, %c0_i32_0 : i32
    scf.if %2 {
      %cst_10 = arith.constant 0.000000e+00 : f32
      %13 = vector.broadcast %cst_10 : f32 to vector<16x64xf32>
      %c0_11 = arith.constant 0 : index
      %c0_12 = arith.constant 0 : index
      %14 = vector.load %arg7[%c0_11, %c0_12] : memref<16x64xf32, #tpu.memory_space<vmem>>, vector<16x64xf32>
      tpu.vector_store %arg7[%c0_11, %c0_12], %13 {strides = array<i32>} : memref<16x64xf32, #tpu.memory_space<vmem>>, vector<16x64xf32>,
    } else {
    }
    %c0 = arith.constant 0 : index
    %c0_1 = arith.constant 0 : index
    %3 = vector.load %arg3[%c0, %c0_1] : memref<16x32xf32, #tpu.memory_space<vmem>>, vector<16x32xf32>
    %4 = arith.truncf %3 : vector<16x32xf32> to vector<16x32xbf16>
    %c0_2 = arith.constant 0 : index
    %c0_3 = arith.constant 0 : index
    %5 = vector.load %arg4[%c0_2, %c0_3] : memref<64x32xbf16, #tpu.memory_space<vmem>>, vector<64x32xbf16>
    %c0_4 = arith.constant 0 : index
    %c0_5 = arith.constant 0 : index
    %6 = vector.load %arg7[%c0_4, %c0_5] : memref<16x64xf32, #tpu.memory_space<vmem>>, vector<16x64xf32>
    %cst = arith.constant dense<0.000000e+00> : vector<16x64xf32>
    %7 = tpu.matmul %4, %5, %cst {dimension_numbers = #tpu.dot_dimension_numbers<[1], [1], [0], [0], [0, 0, 1, 0], [], []>} : vector<16x32xbf16>, vector<64x32xbf16>, vector<16x64xf32> -> vector<16x64xf32>
    %8 = arith.addf %6, %7 : vector<16x64xf32>
    %c0_6 = arith.constant 0 : index
    %c0_7 = arith.constant 0 : index
    %9 = vector.load %arg7[%c0_6, %c0_7] : memref<16x64xf32, #tpu.memory_space<vmem>>, vector<16x64xf32>
    tpu.vector_store %arg7[%c0_6, %c0_7], %8 {strides = array<i32>} : memref<16x64xf32, #tpu.memory_space<vmem>>, vector<16x64xf32>,
    %c0_i32_8 = arith.constant 0 : i32
    %10 = arith.cmpi eq, %arg2, %c0_i32_8 : i32
    %11 = arith.extui %10 : i1 to i32
    %c0_i32_9 = arith.constant 0 : i32
    %12 = arith.cmpi ne, %11, %c0_i32_9 : i32
    scf.if %12 {
      %c0_10 = arith.constant 0 : index
      %c0_11 = arith.constant 0 : index
      %13 = vector.load %arg7[%c0_10, %c0_11] : memref<16x64xf32, #tpu.memory_space<vmem>>, vector<16x64xf32>
      %c0_12 = arith.constant 0 : index
      %c0_13 = arith.constant 0 : index
      %14 = vector.load %arg5[%c0_12, %c0_13] : memref<1x64xf32, #tpu.memory_space<vmem>>, vector<1x64xf32>
      %15 = vector.broadcast %14 : vector<1x64xf32> to vector<16x64xf32>
      %16 = arith.addf %13, %15 : vector<16x64xf32>
      %c0_14 = arith.constant 0 : index
      %c0_15 = arith.constant 0 : index
      %17 = vector.load %arg6[%c0_14, %c0_15] : memref<16x64xf32, #tpu.memory_space<vmem>>, vector<16x64xf32>
      tpu.vector_store %arg6[%c0_14, %c0_15], %16 {strides = array<i32>} : memref<16x64xf32, #tpu.memory_space<vmem>>, vector<16x64xf32>,
    } else {
    }
    return
  }
  func.func @transform_0(%arg0: i32, %arg1: i32, %arg2: i32) -> (i32, i32) {
    %c0_i32 = arith.constant 0 : i32
    return %arg0, %arg2 : i32, i32
  }
  func.func @transform_1(%arg0: i32, %arg1: i32, %arg2: i32) -> (i32, i32) {
    %c0_i32 = arith.constant 0 : i32
    return %arg1, %arg2 : i32, i32
  }
  func.func @transform_2(%arg0: i32, %arg1: i32, %arg2: i32) -> (i32, i32) {
    %c0_i32 = arith.constant 0 : i32
    %c0_i32_0 = arith.constant 0 : i32
    return %c0_i32, %arg1 : i32, i32
  }
  func.func @transform_3(%arg0: i32, %arg1: i32, %arg2: i32) -> (i32, i32) {
    %c0_i32 = arith.constant 0 : i32
    return %arg0, %arg1 : i32, i32
  }
}

module attributes {stable_mosaic.version = 11 : i64} {
  func.func @_dense_kernel(%arg0: i32, %arg1: i32, %arg2: i32, %arg3: memref<16x64xf32, #tpu.memory_space<vmem>>, %arg4: memref<64x32xbf16, #tpu.memory_space<vmem>>, %arg5: memref<1x32xf32, #tpu.memory_space<vmem>>, %arg6: memref<16x32xf32, #tpu.memory_space<vmem>>, %arg7: memref<16x32xf32, #tpu.memory_space<vmem>>) attributes {dimension_semantics = [#tpu.dimension_semantics<parallel>, #tpu.dimension_semantics<parallel>, #tpu.dimension_semantics<arbitrary>], iteration_bounds = array<i64: 1, 1, 1>, scalar_prefetch = 0 : i64, scratch_operands = 1 : i64, tpu.core_type = #tpu.core_type<tc>, window_params = [{transform_indices = @transform_0, window_bounds = array<i64: 16, 64>}, {transform_indices = @transform_1, window_bounds = array<i64: 64, 32>}, {transform_indices = @transform_2, window_bounds = array<i64: 1, 32>}, {transform_indices = @transform_3, window_bounds = array<i64: 16, 32>}]} {
    %c0_i32 = arith.constant 0 : i32
    %0 = arith.cmpi eq, %arg2, %c0_i32 : i32
    %1 = arith.extui %0 : i1 to i32
    %c0_i32_0 = arith.constant 0 : i32
    %2 = arith.cmpi ne, %1, %c0_i32_0 : i32
    scf.if %2 {
      %cst_10 = arith.constant 0.000000e+00 : f32
      %13 = vector.broadcast %cst_10 : f32 to vector<16x32xf32>
      %c0_11 = arith.constant 0 : index
      %c0_12 = arith.constant 0 : index
      %14 = vector.load %arg7[%c0_11, %c0_12] : memref<16x32xf32, #tpu.memory_space<vmem>>, vector<16x32xf32>
      tpu.vector_store %arg7[%c0_11, %c0_12], %13 {strides = array<i32>} : memref<16x32xf32, #tpu.memory_space<vmem>>, vector<16x32xf32>,
    } else {
    }
    %c0 = arith.constant 0 : index
    %c0_1 = arith.constant 0 : index
    %3 = vector.load %arg3[%c0, %c0_1] : memref<16x64xf32, #tpu.memory_space<vmem>>, vector<16x64xf32>
    %4 = arith.truncf %3 : vector<16x64xf32> to vector<16x64xbf16>
    %c0_2 = arith.constant 0 : index
    %c0_3 = arith.constant 0 : index
    %5 = vector.load %arg4[%c0_2, %c0_3] : memref<64x32xbf16, #tpu.memory_space<vmem>>, vector<64x32xbf16>
    %c0_4 = arith.constant 0 : index
    %c0_5 = arith.constant 0 : index
    %6 = vector.load %arg7[%c0_4, %c0_5] : memref<16x32xf32, #tpu.memory_space<vmem>>, vector<16x32xf32>
    %cst = arith.constant dense<0.000000e+00> : vector<16x32xf32>
    %7 = tpu.matmul %4, %5, %cst {dimension_numbers = #tpu.dot_dimension_numbers<[1], [0], [0], [1], [0, 0, 1, 1], [], []>} : vector<16x64xbf16>, vector<64x32xbf16>, vector<16x32xf32> -> vector<16x32xf32>
    %8 = arith.addf %6, %7 : vector<16x32xf32>
    %c0_6 = arith.constant 0 : index
    %c0_7 = arith.constant 0 : index
    %9 = vector.load %arg7[%c0_6, %c0_7] : memref<16x32xf32, #tpu.memory_space<vmem>>, vector<16x32xf32>
    tpu.vector_store %arg7[%c0_6, %c0_7], %8 {strides = array<i32>} : memref<16x32xf32, #tpu.memory_space<vmem>>, vector<16x32xf32>,
    %c0_i32_8 = arith.constant 0 : i32
    %10 = arith.cmpi eq, %arg2, %c0_i32_8 : i32
    %11 = arith.extui %10 : i1 to i32
    %c0_i32_9 = arith.constant 0 : i32
    %12 = arith.cmpi ne, %11, %c0_i32_9 : i32
    scf.if %12 {
      %c0_10 = arith.constant 0 : index
      %c0_11 = arith.constant 0 : index
      %13 = vector.load %arg7[%c0_10, %c0_11] : memref<16x32xf32, #tpu.memory_space<vmem>>, vector<16x32xf32>
      %c0_12 = arith.constant 0 : index
      %c0_13 = arith.constant 0 : index
      %14 = vector.load %arg5[%c0_12, %c0_13] : memref<1x32xf32, #tpu.memory_space<vmem>>, vector<1x32xf32>
      %15 = vector.broadcast %14 : vector<1x32xf32> to vector<16x32xf32>
      %16 = arith.addf %13, %15 : vector<16x32xf32>
      %c0_14 = arith.constant 0 : index
      %c0_15 = arith.constant 0 : index
      %17 = vector.load %arg6[%c0_14, %c0_15] : memref<16x32xf32, #tpu.memory_space<vmem>>, vector<16x32xf32>
      tpu.vector_store %arg6[%c0_14, %c0_15], %16 {strides = array<i32>} : memref<16x32xf32, #tpu.memory_space<vmem>>, vector<16x32xf32>,
    } else {
    }
    return
  }
  func.func @transform_0(%arg0: i32, %arg1: i32, %arg2: i32) -> (i32, i32) {
    %c0_i32 = arith.constant 0 : i32
    return %arg0, %arg2 : i32, i32
  }
  func.func @transform_1(%arg0: i32, %arg1: i32, %arg2: i32) -> (i32, i32) {
    %c0_i32 = arith.constant 0 : i32
    return %arg2, %arg1 : i32, i32
  }
  func.func @transform_2(%arg0: i32, %arg1: i32, %arg2: i32) -> (i32, i32) {
    %c0_i32 = arith.constant 0 : i32
    %c0_i32_0 = arith.constant 0 : i32
    return %c0_i32, %arg1 : i32, i32
  }
  func.func @transform_3(%arg0: i32, %arg1: i32, %arg2: i32) -> (i32, i32) {
    %c0_i32 = arith.constant 0 : i32
    return %arg0, %arg1 : i32, i32
  }
}

</mosaic_0001>

<llo_original>
// kernel: bart_forward.21
$region0: #{bart_forward.21}
  #allocation0 [shape = 'u32[]', space=smem, size = 0x4, offset = 0x4, fixed_abs, tag = 'smem constant byte address 0x4 - core index']
  #allocation1 [shape = 'u32[144,128]{1,0:T(1,128)}', space=vmem, size = 0x12000, scoped, tag = 'internal scratch']
  %s0 = inlined_call_operand.vmem [shape: f32[16,32], index: 0, kind: input, shape index: {}]
  %s1 = inlined_call_operand.vmem [shape: f32[1,32], index: 1, kind: input, shape index: {}]
  %s2 = inlined_call_operand.vmem [shape: f32[1,32], index: 2, kind: input, shape index: {}]
  %s3 = inlined_call_operand.vmem [shape: f32[16,32], index: 3, kind: output, shape index: {}]
  %s4 = sld [smem:[#allocation0]]
  $region22: #{bart_forward.21} parent=0
    _
  %s6 = ssub.s32 1, %s4
  %s7 = scalar_select 0, %s6, %s4
  // Predicated region
  $region2: #{bart_forward.21} parent=0 // pred_check
    _
  $region3: #{bart_forward.21} parent=0 // pred_check_branch
    %9 = sbr.rel (0) target = $region5
  $region4: #{bart_forward.21} parent=0 // pred_region
    _
  $region5: #{bart_forward.21} parent=0 // pred_fallthru
    _
  // Predicated region
  $region6: #{bart_forward.21} parent=0 // pred_check
    _
  $region7: #{bart_forward.21} parent=0 // pred_check_branch
    %11 = sbr.rel (0) target = $region9
  $region8: #{bart_forward.21} parent=0 // pred_region
    _
  $region9: #{bart_forward.21} parent=0 // pred_fallthru
    _
  // Predicated region
  $region10: #{bart_forward.21} parent=0 // pred_check
    _
  $region11: #{bart_forward.21} parent=0 // pred_check_branch
    %13 = sbr.rel (0) target = $region13
  $region12: #{bart_forward.21} parent=0 // pred_region
    _
  $region13: #{bart_forward.21} parent=0 // pred_fallthru
    _
  %v14 = vld [vmem:[%s0] sm:$0xff]
  %v15 = vld [vmem:[%s0 + $0x8] sm:$0xff]
  %vm16 = vcmask 261120
  %v17 = vsel %vm16, %v14, 0.0
  %18 = vadd.xlane.f32.xlu0 %v17
  %v19 = vpop.xlane.xlu0 %18
  %v20 = vsel %vm16, %v15, 0.0
  %21 = vadd.xlane.f32.xlu0 %v20
  %v22 = vpop.xlane.xlu0 %21
  %v23 = vrcp.pop 32.0
  %v24 = vmul.f32 %v19, %v23
  %v25 = vmul.f32 %v22, %v23
  %v26 = vsub.f32 %v14, %v24
  %v27 = vsub.f32 %v15, %v25
  %v28 = vmul.f32 %v26, %v26
  %v29 = vmul.f32 %v27, %v27
  %v30 = vsel %vm16, %v28, 0.0
  %31 = vadd.xlane.f32.xlu0 %v30
  %v32 = vpop.xlane.xlu0 %31
  %v33 = vsel %vm16, %v29, 0.0
  %34 = vadd.xlane.f32.xlu0 %v33
  %v35 = vpop.xlane.xlu0 %34
  %v36 = vmul.f32 %v32, %v23
  %v37 = vmul.f32 %v35, %v23
  %v38 = vadd.f32 %v36, 1e-05
  %v39 = vadd.f32 %v37, 1e-05
  %v40 = vrsqrt.pop %v38
  %v41 = vrsqrt.pop %v39
  %v42 = vmul.f32 %v26, %v40
  %v43 = vmul.f32 %v27, %v41
  %v44 = vld [vmem:[%s1] sm:$0x1]
  %v46 = vlaneseq
  %v47 = vshrl.u32 %v46, 7
  %v48 = vsub.s32 0, %v47
  %v49 = vrot.slane %v44, %v48
  %v51 = vmul.f32 %v42, %v49
  %v52 = vmul.f32 %v43, %v49
  %v53 = vld [vmem:[%s2] sm:$0x1]
  %v55 = vlaneseq
  %v56 = vshrl.u32 %v55, 7
  %v57 = vsub.s32 0, %v56
  %v58 = vrot.slane %v53, %v57
  %v60 = vadd.f32 %v51, %v58
  %v61 = vadd.f32 %v52, %v58
  %62 = vst.msk [vmem:[%s3] sm:$0xff] %vm16, %v60
  %63 = vst.msk [vmem:[%s3 + $0x8] sm:$0xff] %vm16, %v61
  // Predicated region
  $region14: #{bart_forward.21} parent=0 // pred_check
    _
  $region15: #{bart_forward.21} parent=0 // pred_check_branch
    %65 = sbr.rel (0) target = $region17
  $region16: #{bart_forward.21} parent=0 // pred_region
    _
  $region17: #{bart_forward.21} parent=0 // pred_fallthru
    _
  // Predicated region
  $region18: #{bart_forward.21} parent=0 // pred_check
    _
  $region19: #{bart_forward.21} parent=0 // pred_check_branch
    %67 = sbr.rel (0) target = $region21
  $region20: #{bart_forward.21} parent=0 // pred_region
    _
  $region21: #{bart_forward.21} parent=0 // pred_fallthru
    _

// kernel: bart_forward.23
$region0: #{bart_forward.23}
  #allocation0 [shape = 'u32[]', space=smem, size = 0x4, offset = 0x4, fixed_abs, tag = 'smem constant byte address 0x4 - core index']
  #allocation1 [shape = 'u32[144,128]{1,0:T(1,128)}', space=vmem, size = 0x12000, scoped, tag = 'internal scratch']
  %s0 = inlined_call_operand.vmem [shape: f32[16,32], index: 0, kind: input, shape index: {}]
  %s1 = inlined_call_operand.vmem [shape: f32[16,32], index: 1, kind: input, shape index: {}]
  %s2 = inlined_call_operand.vmem [shape: f32[1,32], index: 2, kind: input, shape index: {}]
  %s3 = inlined_call_operand.vmem [shape: f32[1,32], index: 3, kind: input, shape index: {}]
  %s4 = inlined_call_operand.vmem [shape: f32[16,32], index: 4, kind: output, shape index: {}]
  %s5 = sld [smem:[#allocation0]]
  $region26: #{bart_forward.23} parent=0
    _
  %s7 = ssub.s32 1, %s5
  %s8 = scalar_select 0, %s7, %s5
  // Predicated region
  $region2: #{bart_forward.23} parent=0 // pred_check
    _
  $region3: #{bart_forward.23} parent=0 // pred_check_branch
    %10 = sbr.rel (0) target = $region5
  $region4: #{bart_forward.23} parent=0 // pred_region
    _
  $region5: #{bart_forward.23} parent=0 // pred_fallthru
    _
  // Predicated region
  $region6: #{bart_forward.23} parent=0 // pred_check
    _
  $region7: #{bart_forward.23} parent=0 // pred_check_branch
    %12 = sbr.rel (0) target = $region9
  $region8: #{bart_forward.23} parent=0 // pred_region
    _
  $region9: #{bart_forward.23} parent=0 // pred_fallthru
    _
  // Predicated region
  $region10: #{bart_forward.23} parent=0 // pred_check
    _
  $region11: #{bart_forward.23} parent=0 // pred_check_branch
    %14 = sbr.rel (0) target = $region13
  $region12: #{bart_forward.23} parent=0 // pred_region
    _
  $region13: #{bart_forward.23} parent=0 // pred_fallthru
    _
  // Predicated region
  $region14: #{bart_forward.23} parent=0 // pred_check
    _
  $region15: #{bart_forward.23} parent=0 // pred_check_branch
    %16 = sbr.rel (0) target = $region17
  $region16: #{bart_forward.23} parent=0 // pred_region
    _
  $region17: #{bart_forward.23} parent=0 // pred_fallthru
    _
  %v17 = vld [vmem:[%s0] sm:$0xff]
  %v18 = vld [vmem:[%s0 + $0x8] sm:$0xff]
  %v19 = vld [vmem:[%s1] sm:$0xff]
  %v20 = vld [vmem:[%s1 + $0x8] sm:$0xff]
  %v21 = vadd.f32 %v17, %v19
  %v22 = vadd.f32 %v18, %v20
  %vm23 = vcmask 261120
  %v24 = vsel %vm23, %v21, 0.0
  %25 = vadd.xlane.f32.xlu0 %v24
  %v26 = vpop.xlane.xlu0 %25
  %v27 = vsel %vm23, %v22, 0.0
  %28 = vadd.xlane.f32.xlu0 %v27
  %v29 = vpop.xlane.xlu0 %28
  %v30 = vrcp.pop 32.0
  %v31 = vmul.f32 %v26, %v30
  %v32 = vmul.f32 %v29, %v30
  %v33 = vsub.f32 %v21, %v31
  %v34 = vsub.f32 %v22, %v32
  %v35 = vmul.f32 %v33, %v33
  %v36 = vmul.f32 %v34, %v34
  %v37 = vsel %vm23, %v35, 0.0
  %38 = vadd.xlane.f32.xlu0 %v37
  %v39 = vpop.xlane.xlu0 %38
  %v40 = vsel %vm23, %v36, 0.0
  %41 = vadd.xlane.f32.xlu0 %v40
  %v42 = vpop.xlane.xlu0 %41
  %v43 = vmul.f32 %v39, %v30
  %v44 = vmul.f32 %v42, %v30
  %v45 = vadd.f32 %v43, 1e-05
  %v46 = vadd.f32 %v44, 1e-05
  %v47 = vrsqrt.pop %v45
  %v48 = vrsqrt.pop %v46
  %v49 = vmul.f32 %v33, %v47
  %v50 = vmul.f32 %v34, %v48
  %v51 = vld [vmem:[%s2] sm:$0x1]
  %v53 = vlaneseq
  %v54 = vshrl.u32 %v53, 7
  %v55 = vsub.s32 0, %v54
  %v56 = vrot.slane %v51, %v55
  %v58 = vmul.f32 %v49, %v56
  %v59 = vmul.f32 %v50, %v56
  %v60 = vld [vmem:[%s3] sm:$0x1]
  %v62 = vlaneseq
  %v63 = vshrl.u32 %v62, 7
  %v64 = vsub.s32 0, %v63
  %v65 = vrot.slane %v60, %v64
  %v67 = vadd.f32 %v58, %v65
  %v68 = vadd.f32 %v59, %v65
  %69 = vst.msk [vmem:[%s4] sm:$0xff] %vm23, %v67
  %70 = vst.msk [vmem:[%s4 + $0x8] sm:$0xff] %vm23, %v68
  // Predicated region
  $region18: #{bart_forward.23} parent=0 // pred_check
    _
  $region19: #{bart_forward.23} parent=0 // pred_check_branch
    %72 = sbr.rel (0) target = $region21
  $region20: #{bart_forward.23} parent=0 // pred_region
    _
  $region21: #{bart_forward.23} parent=0 // pred_fallthru
    _
  // Predicated region
  $region22: #{bart_forward.23} parent=0 // pred_check
    _
  $region23: #{bart_forward.23} parent=0 // pred_check_branch
    %74 = sbr.rel (0) target = $region25
  $region24: #{bart_forward.23} parent=0 // pred_region
    _
  $region25: #{bart_forward.23} parent=0 // pred_fallthru
    _

// kernel: bart_forward.16
$region0: #{bart_forward.16}
  #allocation0 [shape = 'u32[]', space=smem, size = 0x4, offset = 0x4, fixed_abs, tag = 'smem constant byte address 0x4 - core index']
  #allocation1 [shape = 'u32[144,128]{1,0:T(1,128)}', space=vmem, size = 0x12000, scoped, tag = 'internal scratch']
  #allocation2 [shape = 'f32[8,32]{1,0:T(8,128)}', space=vmem, size = 0x1000, scoped, tag = 'scratch operand']
  %s0 = inlined_call_operand.vmem [shape: f32[2,8,32], index: 0, kind: input, shape index: {}, may-alias: {0,1}]
  %s1 = inlined_call_operand.vmem [shape: f32[2,8,32], index: 1, kind: input, shape index: {}, may-alias: {0,1}]
  %s2 = inlined_call_operand.vmem [shape: f32[2,1,8], index: 2, kind: input, shape index: {}]
  %s3 = inlined_call_operand.vmem [shape: bf16[32,96], index: 3, kind: input, shape index: {}]
  %s4 = inlined_call_operand.vmem [shape: f32[1,96], index: 4, kind: input, shape index: {}]
  %s5 = inlined_call_operand.vmem [shape: bf16[32,32], index: 5, kind: input, shape index: {}]
  %s6 = inlined_call_operand.vmem [shape: f32[1,32], index: 6, kind: input, shape index: {}]
  %s7 = inlined_call_operand.vmem [shape: f32[2,8,32], index: 7, kind: output, shape index: {}]
  %s8 = sld [smem:[#allocation0]]
  $region61: #{bart_forward.16} parent=0
    _
  %s10 = ssub.s32 1, %s8
  %s11 = scalar_select 0, %s10, %s8
  loop: start=0, step=1, limit=4
  $region2: #{bart_forward.16} parent=0 // loop_pre_header
    _
  $region3: #{bart_forward.16} parent=0 // loop_header
    %s13 = sphi 0, %s17
    %p14 = scmp.ge.s32.totalorder %s13, 4
    %s23 = sphi 0, %s25
    %s26 = sphi 0, %s23
    %s27 = sphi 0, %s26
    %s43 = sphi 0, %s27
    %s49 = sphi 0, %s51
    %s52 = sphi 0, %s49
    %s53 = sphi 0, %s52
    %s69 = sphi 0, %s53
    %s75 = sphi 0, %s77
    %s78 = sphi 0, %s75
    %s79 = sphi 0, %s78
    %s95 = sphi 0, %s79
    %s99 = sphi 0, %s99
    %s101 = sphi 0, %s99
    %s102 = sphi 0, %s101
    %s116 = sphi 0, %s102
    %s120 = sphi 0, %s120
    %s122 = sphi 0, %s120
    %s123 = sphi 0, %s122
    %s137 = sphi 0, %s123
    %s141 = sphi 0, %s141
    %s143 = sphi 0, %s141
    %s144 = sphi 0, %s143
    %s158 = sphi 0, %s144
    %s162 = sphi 0, %s162
    %s164 = sphi 0, %s162
    %s165 = sphi 0, %s164
    %s179 = sphi 0, %s165
    %s185 = sphi 0, %s187
    %s188 = sphi 0, %s185
    %s189 = sphi 0, %s188
    %s205 = sphi 0, %s189
  $region4: #{bart_forward.16} parent=0 // loop_header_branch
    %16 = sbr.rel (%p14) target = $region8
  $region5: #{bart_forward.16} parent=0 // loop_body
    %s18 = ssub.s32 %s13, 1
    %s19 = ssub.s32 %s13, 2
    %s20 = sadd.s32 %s13, 1
    %s21 = ssub.s32 %s13, %s20
    %p22 = scmp.eq.s32.totalorder %s21, 0
    %s24 = sadd.s32 %s23, 1
    %s25 = scalar_select %p22, %s23, %s24
    %p28 = pneg %p22
    %p29 = scmp.eq.s32.totalorder %s13, 1
    %p30 = por %p28, %p29
    %p31 = scmp.ne.s32.totalorder %s23, %s26
    %p32 = scmp.eq.s32.totalorder %s13, 0
    %p33 = por %p31, %p32
    %p34 = scmp.ne.s32.totalorder %s23, %s26
    %p35 = scmp.eq.s32.totalorder %s18, 1
    %p36 = por %p34, %p35
    %p37 = scmp.ne.s32.totalorder %s26, %s27
    %p38 = scmp.eq.s32.totalorder %s18, 0
    %p39 = por %p37, %p38
    %p40 = scmp.ne.s32.totalorder %s26, %s27
    %p41 = scmp.eq.s32.totalorder %s19, 1
    %p42 = por %p40, %p41
    %p44 = scmp.ne.s32.totalorder %s27, %s43
    %p45 = scmp.eq.s32.totalorder %s19, 0
    %p46 = por %p44, %p45
    %s47 = ssub.s32 %s13, %s20
    %p48 = scmp.eq.s32.totalorder %s47, 0
    %s50 = sadd.s32 %s49, 1
    %s51 = scalar_select %p48, %s49, %s50
    %p54 = pneg %p48
    %p55 = scmp.eq.s32.totalorder %s13, 1
    %p56 = por %p54, %p55
    %p57 = scmp.ne.s32.totalorder %s49, %s52
    %p58 = scmp.eq.s32.totalorder %s13, 0
    %p59 = por %p57, %p58
    %p60 = scmp.ne.s32.totalorder %s49, %s52
    %p61 = scmp.eq.s32.totalorder %s18, 1
    %p62 = por %p60, %p61
    %p63 = scmp.ne.s32.totalorder %s52, %s53
    %p64 = scmp.eq.s32.totalorder %s18, 0
    %p65 = por %p63, %p64
    %p66 = scmp.ne.s32.totalorder %s52, %s53
    %p67 = scmp.eq.s32.totalorder %s19, 1
    %p68 = por %p66, %p67
    %p70 = scmp.ne.s32.totalorder %s53, %s69
    %p71 = scmp.eq.s32.totalorder %s19, 0
    %p72 = por %p70, %p71
    %s73 = ssub.s32 %s13, %s20
    %p74 = scmp.eq.s32.totalorder %s73, 0
    %s76 = sadd.s32 %s75, 1
    %s77 = scalar_select %p74, %s75, %s76
    %p80 = pneg %p74
    %p81 = scmp.eq.s32.totalorder %s13, 1
    %p82 = por %p80, %p81
    %p83 = scmp.ne.s32.totalorder %s75, %s78
    %p84 = scmp.eq.s32.totalorder %s13, 0
    %p85 = por %p83, %p84
    %p86 = scmp.ne.s32.totalorder %s75, %s78
    %p87 = scmp.eq.s32.totalorder %s18, 1
    %p88 = por %p86, %p87
    %p89 = scmp.ne.s32.totalorder %s78, %s79
    %p90 = scmp.eq.s32.totalorder %s18, 0
    %p91 = por %p89, %p90
    %p92 = scmp.ne.s32.totalorder %s78, %s79
    %p93 = scmp.eq.s32.totalorder %s19, 1
    %p94 = por %p92, %p93
    %p96 = scmp.ne.s32.totalorder %s79, %s95
    %p97 = scmp.eq.s32.totalorder %s19, 0
    %p98 = por %p96, %p97
    %s100 = sadd.s32 %s99, 1
    %p103 = scmp.eq.s32.totalorder %s13, 1
    %p104 = scmp.ne.s32.totalorder %s99, %s101
    %p105 = scmp.eq.s32.totalorder %s13, 0
    %p106 = por %p104, %p105
    %p107 = scmp.ne.s32.totalorder %s99, %s101
    %p108 = scmp.eq.s32.totalorder %s18, 1
    %p109 = por %p107, %p108
    %p110 = scmp.ne.s32.totalorder %s101, %s102
    %p111 = scmp.eq.s32.totalorder %s18, 0
    %p112 = por %p110, %p111
    %p113 = scmp.ne.s32.totalorder %s101, %s102
    %p114 = scmp.eq.s32.totalorder %s19, 1
    %p115 = por %p113, %p114
    %p117 = scmp.ne.s32.totalorder %s102, %s116
    %p118 = scmp.eq.s32.totalorder %s19, 0
    %p119 = por %p117, %p118
    %s121 = sadd.s32 %s120, 1
    %p124 = scmp.eq.s32.totalorder %s13, 1
    %p125 = scmp.ne.s32.totalorder %s120, %s122
    %p126 = scmp.eq.s32.totalorder %s13, 0
    %p127 = por %p125, %p126
    %p128 = scmp.ne.s32.totalorder %s120, %s122
    %p129 = scmp.eq.s32.totalorder %s18, 1
    %p130 = por %p128, %p129
    %p131 = scmp.ne.s32.totalorder %s122, %s123
    %p132 = scmp.eq.s32.totalorder %s18, 0
    %p133 = por %p131, %p132
    %p134 = scmp.ne.s32.totalorder %s122, %s123
    %p135 = scmp.eq.s32.totalorder %s19, 1
    %p136 = por %p134, %p135
    %p138 = scmp.ne.s32.totalorder %s123, %s137
    %p139 = scmp.eq.s32.totalorder %s19, 0
    %p140 = por %p138, %p139
    %s142 = sadd.s32 %s141, 1
    %p145 = scmp.eq.s32.totalorder %s13, 1
    %p146 = scmp.ne.s32.totalorder %s141, %s143
    %p147 = scmp.eq.s32.totalorder %s13, 0
    %p148 = por %p146, %p147
    %p149 = scmp.ne.s32.totalorder %s141, %s143
    %p150 = scmp.eq.s32.totalorder %s18, 1
    %p151 = por %p149, %p150
    %p152 = scmp.ne.s32.totalorder %s143, %s144
    %p153 = scmp.eq.s32.totalorder %s18, 0
    %p154 = por %p152, %p153
    %p155 = scmp.ne.s32.totalorder %s143, %s144
    %p156 = scmp.eq.s32.totalorder %s19, 1
    %p157 = por %p155, %p156
    %p159 = scmp.ne.s32.totalorder %s144, %s158
    %p160 = scmp.eq.s32.totalorder %s19, 0
    %p161 = por %p159, %p160
    %s163 = sadd.s32 %s162, 1
    %p166 = scmp.eq.s32.totalorder %s13, 1
    %p167 = scmp.ne.s32.totalorder %s162, %s164
    %p168 = scmp.eq.s32.totalorder %s13, 0
    %p169 = por %p167, %p168
    %p170 = scmp.ne.s32.totalorder %s162, %s164
    %p171 = scmp.eq.s32.totalorder %s18, 1
    %p172 = por %p170, %p171
    %p173 = scmp.ne.s32.totalorder %s164, %s165
    %p174 = scmp.eq.s32.totalorder %s18, 0
    %p175 = por %p173, %p174
    %p176 = scmp.ne.s32.totalorder %s164, %s165
    %p177 = scmp.eq.s32.totalorder %s19, 1
    %p178 = por %p176, %p177
    %p180 = scmp.ne.s32.totalorder %s165, %s179
    %p181 = scmp.eq.s32.totalorder %s19, 0
    %p182 = por %p180, %p181
    %s183 = ssub.s32 %s13, %s20
    %p184 = scmp.eq.s32.totalorder %s183, 0
    %s186 = sadd.s32 %s185, 1
    %s187 = scalar_select %p184, %s185, %s186
    %p190 = pneg %p184
    %p191 = scmp.eq.s32.totalorder %s13, 1
    %p192 = por %p190, %p191
    %p193 = scmp.ne.s32.totalorder %s185, %s188
    %p194 = scmp.eq.s32.totalorder %s13, 0
    %p195 = por %p193, %p194
    %p196 = scmp.ne.s32.totalorder %s185, %s188
    %p197 = scmp.eq.s32.totalorder %s18, 1
    %p198 = por %p196, %p197
    %p199 = scmp.ne.s32.totalorder %s188, %s189
    %p200 = scmp.eq.s32.totalorder %s18, 0
    %p201 = por %p199, %p200
    %p202 = scmp.ne.s32.totalorder %s188, %s189
    %p203 = scmp.eq.s32.totalorder %s19, 1
    %p204 = por %p202, %p203
    %p206 = scmp.ne.s32.totalorder %s189, %s205
    %p207 = scmp.eq.s32.totalorder %s19, 0
    %p208 = por %p206, %p207
    %p209 = scmp.le.s32.totalorder 1, %s13
    %p210 = scmp.lt.s32.totalorder %s13, 3
    %p211 = pnand %p209, %p210
    %p212 = pneg %p211
    // Predicated region
    $region9: #{bart_forward.16} parent=5 // pred_check
      _
    $region10: #{bart_forward.16} parent=5 // pred_check_branch
      %214 = sbr.rel (%p211) target = $region12
    $region11: #{bart_forward.16} parent=5 // pred_region
      %s215 = ssub.s32 %s13, 1
      // Predicated region
      $region13: #{bart_forward.16} parent=11 // pred_check
        %p216 = pneg %p112
      $region14: #{bart_forward.16} parent=11 // pred_check_branch
        %218 = sbr.rel (%p216) target = $region16
      $region15: #{bart_forward.16} parent=11 // pred_region
        _
      $region16: #{bart_forward.16} parent=11 // pred_fallthru
        _
      // Predicated region
      $region17: #{bart_forward.16} parent=11 // pred_check
        %p219 = pneg %p133
      $region18: #{bart_forward.16} parent=11 // pred_check_branch
        %221 = sbr.rel (%p219) target = $region20
      $region19: #{bart_forward.16} parent=11 // pred_region
        _
      $region20: #{bart_forward.16} parent=11 // pred_fallthru
        _
      // Predicated region
      $region21: #{bart_forward.16} parent=11 // pred_check
        %p222 = pneg %p154
      $region22: #{bart_forward.16} parent=11 // pred_check_branch
        %224 = sbr.rel (%p222) target = $region24
      $region23: #{bart_forward.16} parent=11 // pred_region
        _
      $region24: #{bart_forward.16} parent=11 // pred_fallthru
        _
      // Predicated region
      $region25: #{bart_forward.16} parent=11 // pred_check
        %p225 = pneg %p175
      $region26: #{bart_forward.16} parent=11 // pred_check_branch
        %227 = sbr.rel (%p225) target = $region28
      $region27: #{bart_forward.16} parent=11 // pred_region
        _
      $region28: #{bart_forward.16} parent=11 // pred_fallthru
        _
    $region12: #{bart_forward.16} parent=5 // pred_fallthru
      _
    %p228 = scmp.lt.s32.totalorder %s13, 2
    // Predicated region
    $region29: #{bart_forward.16} parent=5 // pred_check
      %p229 = pneg %p228
    $region30: #{bart_forward.16} parent=5 // pred_check_branch
      %231 = sbr.rel (%p229) target = $region32
    $region31: #{bart_forward.16} parent=5 // pred_region
      // Predicated region
      $region33: #{bart_forward.16} parent=31 // pred_check
        %p232 = pneg %p33
      $region34: #{bart_forward.16} parent=31 // pred_check_branch
        %234 = sbr.rel (%p232) target = $region36
      $region35: #{bart_forward.16} parent=31 // pred_region
        %p235 = scmp.lt.s32.totalorder %s13, 1
        %s236 = scalar_select %p235, %s13, 1
        %s237 = smul.addr %s236, 8
        %s238 = scalar_lea.vmem %s0, %s237
      $region36: #{bart_forward.16} parent=31 // pred_fallthru
        _
      // Predicated region
      $region37: #{bart_forward.16} parent=31 // pred_check
        %p239 = pneg %p59
      $region38: #{bart_forward.16} parent=31 // pred_check_branch
        %241 = sbr.rel (%p239) target = $region40
      $region39: #{bart_forward.16} parent=31 // pred_region
        %p242 = scmp.lt.s32.totalorder %s13, 1
        %s243 = scalar_select %p242, %s13, 1
        %s244 = smul.addr %s243, 8
        %s245 = scalar_lea.vmem %s1, %s244
      $region40: #{bart_forward.16} parent=31 // pred_fallthru
        _
      // Predicated region
      $region41: #{bart_forward.16} parent=31 // pred_check
        %p246 = pneg %p85
      $region42: #{bart_forward.16} parent=31 // pred_check_branch
        %248 = sbr.rel (%p246) target = $region44
      $region43: #{bart_forward.16} parent=31 // pred_region
        %p249 = scmp.lt.s32.totalorder %s13, 1
        %s250 = scalar_select %p249, %s13, 1
        %s251 = scalar_lea.vmem %s2, %s250
      $region44: #{bart_forward.16} parent=31 // pred_fallthru
        _
    $region32: #{bart_forward.16} parent=5 // pred_fallthru
      _
    %p252 = scmp.le.s32.totalorder 1, %s13
    %p253 = scmp.lt.s32.totalorder %s13, 3
    %p254 = pnand %p252, %p253
    %p255 = pneg %p254
    // Predicated region
    $region45: #{bart_forward.16} parent=5 // pred_check
      _
    $region46: #{bart_forward.16} parent=5 // pred_check_branch
      %257 = sbr.rel (%p254) target = $region48
    $region47: #{bart_forward.16} parent=5 // pred_region
      %s258 = ssub.s32 %s13, 1
      %p259 = scmp.lt.s32.totalorder %s18, 1
      %s260 = scalar_select %p259, %s18, 1
      %s261 = smul.addr %s260, 8
      %s262 = scalar_lea.vmem %s0, %s261
      %p263 = pneg %p39
      %p264 = pneg %p36
      %p265 = scmp.lt.s32.totalorder %s18, 1
      %s266 = scalar_select %p265, %s18, 1
      %s267 = smul.addr %s266, 8
      %s268 = scalar_lea.vmem %s1, %s267
      %p269 = pneg %p65
      %p270 = pneg %p62
      %p271 = scmp.lt.s32.totalorder %s18, 1
      %s272 = scalar_select %p271, %s18, 1
      %s273 = scalar_lea.vmem %s2, %s272
      %p274 = pneg %p91
      %p275 = pneg %p88
      %p276 = pneg %p112
      %p277 = pneg %p109
      %p278 = pneg %p133
      %p279 = pneg %p130
      %p280 = pneg %p154
      %p281 = pneg %p151
      %p282 = pneg %p175
      %p283 = pneg %p172
      %p284 = pneg %p201
      %p285 = pneg %p198
      %p286 = scmp.lt.s32.totalorder %s18, 1
      %s287 = scalar_select %p286, %s18, 1
      %s288 = smul.addr %s287, 8
      %s289 = scalar_lea.vmem %s7, %s288
      %p290 = scmp.lt.s32.totalorder %s18, 1
      %s291 = scalar_select %p290, %s18, 1
      %s292 = smul.addr %s291, 8
      %s293 = scalar_lea.vmem %s0, %s292
      %p294 = scmp.lt.s32.totalorder %s18, 1
      %s295 = scalar_select %p294, %s18, 1
      %s296 = smul.addr %s295, 8
      %s297 = scalar_lea.vmem %s1, %s296
      %p298 = scmp.lt.s32.totalorder %s18, 1
      %s299 = scalar_select %p298, %s18, 1
      %s300 = scalar_lea.vmem %s2, %s299
      %p301 = scmp.lt.s32.totalorder %s18, 1
      %s302 = scalar_select %p301, %s18, 1
      %s303 = smul.addr %s302, 8
      %s304 = scalar_lea.vmem %s7, %s303
      %v306 = vld [vmem:[%s293] sm:$0xff]
      %v307 = vpack.c.bf16 %v306, %v306
      %v308 = vld [vmem:[%s297] sm:$0xff]
      %v309 = vpack.c.bf16 %v308, %v308
      %v310 = vld [vmem:[%s3] sm:$0xf]
      %v311 = vld [vmem:[%s3 + $0x4] sm:$0xf]
      %v312 = vld [vmem:[%s3 + $0x8] sm:$0xf]
      %v313 = vld [vmem:[%s3 + $0xc] sm:$0xf]
      %v314 = vld [vmem:[%s4] sm:$0x1]
      %v316 = vlaneseq
      %v317 = vshrl.u32 %v316, 7
      %v318 = vsub.s32 0, %v317
      %v319 = vrot.slane %v314, %v318
      %v325 = vunpack.c.l.b16 %v310
      %v326 = vunpack.c.l.b16 %v311
      %v327 = vunpack.c.l.b16 %v312
      %v328 = vunpack.c.l.b16 %v313
      %v329 = vpack.c.b16 %v326, %v325
      %v330 = vpack.c.b16 %v328, %v327
      %vm333 = vcmask 261120
      %v335 = vsel %vm333, %v307, 0
      %337 = vmatprep.subr.bf16.mxu0 0
      %338 = vmatpush1.bf16.msra.mxu0 %v329
      %339 = vmatprep.subr.bf16.mxu0 0
      %340 = vmatpush1.bf16.msra.mxu0 %v330
      %341 = vmatprep.subr.bf16.mxu0 0
      %342 = vmatpush1.bf16.msra.mxu0 0
      %343 = vmatprep.subr.bf16.mxu0 0
      %344 = vmatpush1.bf16.msra.mxu0 0
      %345 = vmatprep.subr.bf16.mxu0 0
      %346 = vmatpush1.bf16.msra.mxu0 0
      %347 = vmatprep.subr.bf16.mxu0 0
      %348 = vmatpush1.bf16.msra.mxu0 0
      %349 = vmatprep.subr.bf16.mxu0 0
      %350 = vmatpush1.bf16.msra.mxu0 0
      %351 = vmatprep.subr.bf16.mxu0 0
      %352 = vmatpush1.bf16.msra.mxu0 0
      %353 = vmatprep.subr.bf16.mxu0 0
      %354 = vmatpush1.bf16.msra.mxu0 0
      %355 = vmatprep.subr.bf16.mxu0 0
      %356 = vmatpush1.bf16.msra.mxu0 0
      %357 = vmatprep.subr.bf16.mxu0 0
      %358 = vmatpush1.bf16.msra.mxu0 0
      %359 = vmatprep.subr.bf16.mxu0 0
      %360 = vmatpush1.bf16.msra.mxu0 0
      %361 = vmatprep.subr.bf16.mxu0 0
      %362 = vmatpush1.bf16.msra.mxu0 0
      %363 = vmatprep.subr.bf16.mxu0 0
      %364 = vmatpush1.bf16.msra.mxu0 0
      %365 = vmatprep.subr.bf16.mxu0 0
      %366 = vmatpush1.bf16.msra.mxu0 0
      %367 = vmatprep.subr.bf16.mxu0 0
      %368 = vmatpush1.bf16.msra.mxu0 0
      %369 = vmatprep.mubr.bf16.mxu0 0
      %370 = vmatmul.mubr.bf16.gmra.mrb[0].mxu0 %v335
      %v371 = vpop.f32.mrb[0].mxu0
      %v372 = vadd.f32 %v319, %v371
      %v373 = vpop.f32.mrb[0].mxu0
      %v374 = vpop.f32.mrb[0].mxu0
      %v375 = vpop.f32.mrb[0].mxu0
      %376 = vdwg.mxu0
      %377 = vrot.lane.b32.xlu0 %v329, 96
      %v378 = vpop.permute.xlu0 %377
      %379 = vrot.lane.b32.xlu0 %v330, 96
      %v380 = vpop.permute.xlu0 %379
      %383 = vrot.lane.b32.xlu0 %v319, 96
      %v384 = vpop.permute.xlu0 %383
      %v387 = vsel %vm333, %v309, 0
      %389 = vmatprep.subr.bf16.mxu0 0
      %390 = vmatpush1.bf16.msra.mxu0 %v378
      %391 = vmatprep.subr.bf16.mxu0 0
      %392 = vmatpush1.bf16.msra.mxu0 %v380
      %393 = vmatprep.subr.bf16.mxu0 0
      %394 = vmatpush1.bf16.msra.mxu0 0
      %395 = vmatprep.subr.bf16.mxu0 0
      %396 = vmatpush1.bf16.msra.mxu0 0
      %397 = vmatprep.subr.bf16.mxu0 0
      %398 = vmatpush1.bf16.msra.mxu0 0
      %399 = vmatprep.subr.bf16.mxu0 0
      %400 = vmatpush1.bf16.msra.mxu0 0
      %401 = vmatprep.subr.bf16.mxu0 0
      %402 = vmatpush1.bf16.msra.mxu0 0
      %403 = vmatprep.subr.bf16.mxu0 0
      %404 = vmatpush1.bf16.msra.mxu0 0
      %405 = vmatprep.subr.bf16.mxu0 0
      %406 = vmatpush1.bf16.msra.mxu0 0
      %407 = vmatprep.subr.bf16.mxu0 0
      %408 = vmatpush1.bf16.msra.mxu0 0
      %409 = vmatprep.subr.bf16.mxu0 0
      %410 = vmatpush1.bf16.msra.mxu0 0
      %411 = vmatprep.subr.bf16.mxu0 0
      %412 = vmatpush1.bf16.msra.mxu0 0
      %413 = vmatprep.subr.bf16.mxu0 0
      %414 = vmatpush1.bf16.msra.mxu0 0
      %415 = vmatprep.subr.bf16.mxu0 0
      %416 = vmatpush1.bf16.msra.mxu0 0
      %417 = vmatprep.subr.bf16.mxu0 0
      %418 = vmatpush1.bf16.msra.mxu0 0
      %419 = vmatprep.subr.bf16.mxu0 0
      %420 = vmatpush1.bf16.msra.mxu0 0
      %421 = vmatprep.mubr.bf16.mxu0 0
      %422 = vmatmul.mubr.bf16.gmra.mrb[0].mxu0 %v387
      %v423 = vpop.f32.mrb[0].mxu0
      %v424 = vadd.f32 %v384, %v423
      %v425 = vpop.f32.mrb[0].mxu0
      %v426 = vpop.f32.mrb[0].mxu0
      %v427 = vpop.f32.mrb[0].mxu0
      %428 = vdwg.mxu0
      %v429 = vld [vmem:[%s300] sm:$0x1]
      %v430 = vsub.f32 1.0, %v429
      %v431 = vmul.f32 %v430, -1e+09
      %v432 = vmul.f32 %v372, 0.25
      %v433 = vpack.c.bf16 %v432, %v432
      %v434 = vpack.c.bf16 %v424, %v424
      %v436 = vlaneseq
      %v437 = vshrl.u32 %v436, 7
      %v438 = vsub.s32 0, %v437
      %v439 = vrot.slane %v431, %v438
      %vm441 = vcmask 130048
      %v443 = vsel %vm441, %v433, 0
      %v446 = vsel %vm441, %v434, 0
      %448 = vmatprep.subr.bf16.mxu0 0
      %449 = vmatpush1.bf16.xpose.msra.mxu0 %v446
      %450 = vmatprep.subr.bf16.mxu0 0
      %451 = vmatpush1.bf16.xpose.msra.mxu0 0
      %452 = vmatprep.subr.bf16.mxu0 0
      %453 = vmatpush1.bf16.xpose.msra.mxu0 0
      %454 = vmatprep.subr.bf16.mxu0 0
      %455 = vmatpush1.bf16.xpose.msra.mxu0 0
      %456 = vmatprep.subr.bf16.mxu0 0
      %457 = vmatpush1.bf16.xpose.msra.mxu0 0
      %458 = vmatprep.subr.bf16.mxu0 0
      %459 = vmatpush1.bf16.xpose.msra.mxu0 0
      %460 = vmatprep.subr.bf16.mxu0 0
      %461 = vmatpush1.bf16.xpose.msra.mxu0 0
      %462 = vmatprep.subr.bf16.mxu0 0
      %463 = vmatpush1.bf16.xpose.msra.mxu0 0
      %464 = vmatprep.subr.bf16.mxu0 0
      %465 = vmatpush1.bf16.xpose.msra.mxu0 0
      %466 = vmatprep.subr.bf16.mxu0 0
      %467 = vmatpush1.bf16.xpose.msra.mxu0 0
      %468 = vmatprep.subr.bf16.mxu0 0
      %469 = vmatpush1.bf16.xpose.msra.mxu0 0
      %470 = vmatprep.subr.bf16.mxu0 0
      %471 = vmatpush1.bf16.xpose.msra.mxu0 0
      %472 = vmatprep.subr.bf16.mxu0 0
      %473 = vmatpush1.bf16.xpose.msra.mxu0 0
      %474 = vmatprep.subr.bf16.mxu0 0
      %475 = vmatpush1.bf16.xpose.msra.mxu0 0
      %476 = vmatprep.subr.bf16.mxu0 0
      %477 = vmatpush1.bf16.xpose.msra.mxu0 0
      %478 = vmatprep.subr.bf16.mxu0 0
      %479 = vmatpush1.bf16.xpose.msra.mxu0 0
      %480 = vmatprep.mubr.bf16.mxu0 0
      %481 = vmatmul.mubr.bf16.gmra.mrb[0].mxu0 %v443
      %v482 = vpop.f32.mrb[0].mxu0
      %v483 = vadd.f32 %v439, %v482
      %v484 = vpop.f32.mrb[0].mxu0
      %v485 = vpop.f32.mrb[0].mxu0
      %v486 = vpop.f32.mrb[0].mxu0
      %487 = vdwg.mxu0
      %vm488 = vcmask 64512
      %v489 = vsel %vm488, %v483, -inf
      %490 = vmax.xlane.f32.xlu0 %v489
      %v491 = vpop.xlane.xlu0 %490
      %v492 = vsub.f32 %v483, %v491
      %v493 = vmul.f32 %v492, 1.442695
      %v494 = vpow.pop %v493
      %v495 = vsel %vm488, %v494, 0.0
      %496 = vadd.xlane.f32.xlu0 %v495
      %v497 = vpop.xlane.xlu0 %496
      %v498 = vrcp.pop %v497
      %v499 = vmul.f32 %v494, %v498
      %v500 = vpack.c.bf16 %v499, %v499
      %502 = vrot.lane.b32.xlu0 %v434, 96
      %v503 = vpop.permute.xlu0 %502
      %v505 = vsel %vm488, %v500, 0
      %vm507 = vcmask 1043456
      %v509 = vsel %vm507, %v503, 0
      %511 = vmatprep.subr.bf16.mxu0 0
      %512 = vmatpush1.bf16.msra.mxu0 %v509
      %513 = vmatprep.subr.bf16.mxu0 0
      %514 = vmatpush1.bf16.msra.mxu0 0
      %515 = vmatprep.subr.bf16.mxu0 0
      %516 = vmatpush1.bf16.msra.mxu0 0
      %517 = vmatprep.subr.bf16.mxu0 0
      %518 = vmatpush1.bf16.msra.mxu0 0
      %519 = vmatprep.subr.bf16.mxu0 0
      %520 = vmatpush1.bf16.msra.mxu0 0
      %521 = vmatprep.subr.bf16.mxu0 0
      %522 = vmatpush1.bf16.msra.mxu0 0
      %523 = vmatprep.subr.bf16.mxu0 0
      %524 = vmatpush1.bf16.msra.mxu0 0
      %525 = vmatprep.subr.bf16.mxu0 0
      %526 = vmatpush1.bf16.msra.mxu0 0
      %527 = vmatprep.subr.bf16.mxu0 0
      %528 = vmatpush1.bf16.msra.mxu0 0
      %529 = vmatprep.subr.bf16.mxu0 0
      %530 = vmatpush1.bf16.msra.mxu0 0
      %531 = vmatprep.subr.bf16.mxu0 0
      %532 = vmatpush1.bf16.msra.mxu0 0
      %533 = vmatprep.subr.bf16.mxu0 0
      %534 = vmatpush1.bf16.msra.mxu0 0
      %535 = vmatprep.subr.bf16.mxu0 0
      %536 = vmatpush1.bf16.msra.mxu0 0
      %537 = vmatprep.subr.bf16.mxu0 0
      %538 = vmatpush1.bf16.msra.mxu0 0
      %539 = vmatprep.subr.bf16.mxu0 0
      %540 = vmatpush1.bf16.msra.mxu0 0
      %541 = vmatprep.subr.bf16.mxu0 0
      %542 = vmatpush1.bf16.msra.mxu0 0
      %543 = vmatprep.mubr.bf16.mxu0 0
      %544 = vmatmul.mubr.bf16.gmra.mrb[0].mxu0 %v505
      %v545 = vpop.f32.mrb[0].mxu0
      %v546 = vadd.f32 0.0, %v545
      %v547 = vpop.f32.mrb[0].mxu0
      %v548 = vpop.f32.mrb[0].mxu0
      %v549 = vpop.f32.mrb[0].mxu0
      %550 = vdwg.mxu0
      %551 = vst.msk [vmem:[#allocation2] sm:$0xff] %vm441, %v546
      %553 = vrot.lane.b32.xlu0 %v433, 112
      %v554 = vpop.permute.xlu0 %553
      %555 = vrot.lane.b32.xlu0 %v434, 112
      %v556 = vpop.permute.xlu0 %555
      %v558 = vsel %vm441, %v554, 0
      %v561 = vsel %vm441, %v556, 0
      %563 = vmatprep.subr.bf16.mxu0 0
      %564 = vmatpush1.bf16.xpose.msra.mxu0 %v561
      %565 = vmatprep.subr.bf16.mxu0 0
      %566 = vmatpush1.bf16.xpose.msra.mxu0 0
      %567 = vmatprep.subr.bf16.mxu0 0
      %568 = vmatpush1.bf16.xpose.msra.mxu0 0
      %569 = vmatprep.subr.bf16.mxu0 0
      %570 = vmatpush1.bf16.xpose.msra.mxu0 0
      %571 = vmatprep.subr.bf16.mxu0 0
      %572 = vmatpush1.bf16.xpose.msra.mxu0 0
      %573 = vmatprep.subr.bf16.mxu0 0
      %574 = vmatpush1.bf16.xpose.msra.mxu0 0
      %575 = vmatprep.subr.bf16.mxu0 0
      %576 = vmatpush1.bf16.xpose.msra.mxu0 0
      %577 = vmatprep.subr.bf16.mxu0 0
      %578 = vmatpush1.bf16.xpose.msra.mxu0 0
      %579 = vmatprep.subr.bf16.mxu0 0
      %580 = vmatpush1.bf16.xpose.msra.mxu0 0
      %581 = vmatprep.subr.bf16.mxu0 0
      %582 = vmatpush1.bf16.xpose.msra.mxu0 0
      %583 = vmatprep.subr.bf16.mxu0 0
      %584 = vmatpush1.bf16.xpose.msra.mxu0 0
      %585 = vmatprep.subr.bf16.mxu0 0
      %586 = vmatpush1.bf16.xpose.msra.mxu0 0
      %587 = vmatprep.subr.bf16.mxu0 0
      %588 = vmatpush1.bf16.xpose.msra.mxu0 0
      %589 = vmatprep.subr.bf16.mxu0 0
      %590 = vmatpush1.bf16.xpose.msra.mxu0 0
      %591 = vmatprep.subr.bf16.mxu0 0
      %592 = vmatpush1.bf16.xpose.msra.mxu0 0
      %593 = vmatprep.subr.bf16.mxu0 0
      %594 = vmatpush1.bf16.xpose.msra.mxu0 0
      %595 = vmatprep.mubr.bf16.mxu0 0
      %596 = vmatmul.mubr.bf16.gmra.mrb[0].mxu0 %v558
      %v597 = vpop.f32.mrb[0].mxu0
      %v598 = vadd.f32 %v439, %v597
      %v599 = vpop.f32.mrb[0].mxu0
      %v600 = vpop.f32.mrb[0].mxu0
      %v601 = vpop.f32.mrb[0].mxu0
      %602 = vdwg.mxu0
      %v603 = vsel %vm488, %v598, -inf
      %604 = vmax.xlane.f32.xlu0 %v603
      %v605 = vpop.xlane.xlu0 %604
      %v606 = vsub.f32 %v598, %v605
      %v607 = vmul.f32 %v606, 1.442695
      %v608 = vpow.pop %v607
      %v609 = vsel %vm488, %v608, 0.0
      %610 = vadd.xlane.f32.xlu0 %v609
      %v611 = vpop.xlane.xlu0 %610
      %v612 = vrcp.pop %v611
      %v613 = vmul.f32 %v608, %v612
      %v614 = vpack.c.bf16 %v613, %v613
      %615 = vrot.lane.b32.xlu0 %v434, 80
      %v616 = vpop.permute.xlu0 %615
      %v618 = vsel %vm488, %v614, 0
      %v621 = vsel %vm507, %v616, 0
      %623 = vmatprep.subr.bf16.mxu0 0
      %624 = vmatpush1.bf16.msra.mxu0 %v621
      %625 = vmatprep.subr.bf16.mxu0 0
      %626 = vmatpush1.bf16.msra.mxu0 0
      %627 = vmatprep.subr.bf16.mxu0 0
      %628 = vmatpush1.bf16.msra.mxu0 0
      %629 = vmatprep.subr.bf16.mxu0 0
      %630 = vmatpush1.bf16.msra.mxu0 0
      %631 = vmatprep.subr.bf16.mxu0 0
      %632 = vmatpush1.bf16.msra.mxu0 0
      %633 = vmatprep.subr.bf16.mxu0 0
      %634 = vmatpush1.bf16.msra.mxu0 0
      %635 = vmatprep.subr.bf16.mxu0 0
      %636 = vmatpush1.bf16.msra.mxu0 0
      %637 = vmatprep.subr.bf16.mxu0 0
      %638 = vmatpush1.bf16.msra.mxu0 0
      %639 = vmatprep.subr.bf16.mxu0 0
      %640 = vmatpush1.bf16.msra.mxu0 0
      %641 = vmatprep.subr.bf16.mxu0 0
      %642 = vmatpush1.bf16.msra.mxu0 0
      %643 = vmatprep.subr.bf16.mxu0 0
      %644 = vmatpush1.bf16.msra.mxu0 0
      %645 = vmatprep.subr.bf16.mxu0 0
      %646 = vmatpush1.bf16.msra.mxu0 0
      %647 = vmatprep.subr.bf16.mxu0 0
      %648 = vmatpush1.bf16.msra.mxu0 0
      %649 = vmatprep.subr.bf16.mxu0 0
      %650 = vmatpush1.bf16.msra.mxu0 0
      %651 = vmatprep.subr.bf16.mxu0 0
      %652 = vmatpush1.bf16.msra.mxu0 0
      %653 = vmatprep.subr.bf16.mxu0 0
      %654 = vmatpush1.bf16.msra.mxu0 0
      %655 = vmatprep.mubr.bf16.mxu0 0
      %656 = vmatmul.mubr.bf16.gmra.mrb[0].mxu0 %v618
      %v657 = vpop.f32.mrb[0].mxu0
      %v658 = vadd.f32 0.0, %v657
      %v659 = vpop.f32.mrb[0].mxu0
      %v660 = vpop.f32.mrb[0].mxu0
      %v661 = vpop.f32.mrb[0].mxu0
      %662 = vdwg.mxu0
      %664 = vrot.lane.b32.xlu0 %v658, 16
      %v665 = vpop.permute.xlu0 %664
      %vm667 = vcmask 261248
      %668 = vst.msk [vmem:[#allocation2] sm:$0xff] %vm667, %v665
      %v669 = vld [vmem:[#allocation2] sm:$0xff]
      %v670 = vpack.c.bf16 %v669, %v669
      %v671 = vld [vmem:[%s5] sm:$0xf]
      %v672 = vld [vmem:[%s5 + $0x4] sm:$0xf]
      %v673 = vld [vmem:[%s5 + $0x8] sm:$0xf]
      %v674 = vld [vmem:[%s5 + $0xc] sm:$0xf]
      %v675 = vld [vmem:[%s6] sm:$0x1]
      %v677 = vlaneseq
      %v678 = vshrl.u32 %v677, 7
      %v679 = vsub.s32 0, %v678
      %v680 = vrot.slane %v675, %v679
      %v686 = vunpack.c.l.b16 %v671
      %v687 = vunpack.c.l.b16 %v672
      %v688 = vunpack.c.l.b16 %v673
      %v689 = vunpack.c.l.b16 %v674
      %v690 = vpack.c.b16 %v687, %v686
      %v691 = vpack.c.b16 %v689, %v688
      %v695 = vsel %vm333, %v670, 0
      %697 = vmatprep.subr.bf16.mxu0 0
      %698 = vmatpush1.bf16.msra.mxu0 %v690
      %699 = vmatprep.subr.bf16.mxu0 0
      %700 = vmatpush1.bf16.msra.mxu0 %v691
      %701 = vmatprep.subr.bf16.mxu0 0
      %702 = vmatpush1.bf16.msra.mxu0 0
      %703 = vmatprep.subr.bf16.mxu0 0
      %704 = vmatpush1.bf16.msra.mxu0 0
      %705 = vmatprep.subr.bf16.mxu0 0
      %706 = vmatpush1.bf16.msra.mxu0 0
      %707 = vmatprep.subr.bf16.mxu0 0
      %708 = vmatpush1.bf16.msra.mxu0 0
      %709 = vmatprep.subr.bf16.mxu0 0
      %710 = vmatpush1.bf16.msra.mxu0 0
      %711 = vmatprep.subr.bf16.mxu0 0
      %712 = vmatpush1.bf16.msra.mxu0 0
      %713 = vmatprep.subr.bf16.mxu0 0
      %714 = vmatpush1.bf16.msra.mxu0 0
      %715 = vmatprep.subr.bf16.mxu0 0
      %716 = vmatpush1.bf16.msra.mxu0 0
      %717 = vmatprep.subr.bf16.mxu0 0
      %718 = vmatpush1.bf16.msra.mxu0 0
      %719 = vmatprep.subr.bf16.mxu0 0
      %720 = vmatpush1.bf16.msra.mxu0 0
      %721 = vmatprep.subr.bf16.mxu0 0
      %722 = vmatpush1.bf16.msra.mxu0 0
      %723 = vmatprep.subr.bf16.mxu0 0
      %724 = vmatpush1.bf16.msra.mxu0 0
      %725 = vmatprep.subr.bf16.mxu0 0
      %726 = vmatpush1.bf16.msra.mxu0 0
      %727 = vmatprep.subr.bf16.mxu0 0
      %728 = vmatpush1.bf16.msra.mxu0 0
      %729 = vmatprep.mubr.bf16.mxu0 0
      %730 = vmatmul.mubr.bf16.gmra.mrb[0].mxu0 %v695
      %v731 = vpop.f32.mrb[0].mxu0
      %v732 = vadd.f32 %v680, %v731
      %v733 = vpop.f32.mrb[0].mxu0
      %v734 = vpop.f32.mrb[0].mxu0
      %v735 = vpop.f32.mrb[0].mxu0
      %736 = vdwg.mxu0
      %737 = vst.msk [vmem:[%s304] sm:$0xff] %vm333, %v732
      %p738 = scmp.lt.s32.totalorder %s18, 1
      %s739 = scalar_select %p738, %s18, 1
      %s740 = smul.addr %s739, 8
      %s741 = scalar_lea.vmem %s7, %s740
      // Predicated region
      $region49: #{bart_forward.16} parent=47 // pred_check
        %p742 = pneg %p198
      $region50: #{bart_forward.16} parent=47 // pred_check_branch
        %744 = sbr.rel (%p742) target = $region52
      $region51: #{bart_forward.16} parent=47 // pred_region
        _
      $region52: #{bart_forward.16} parent=47 // pred_fallthru
        _
    $region48: #{bart_forward.16} parent=5 // pred_fallthru
      _
    %p745 = scmp.le.s32.totalorder 2, %s13
    // Predicated region
    $region53: #{bart_forward.16} parent=5 // pred_check
      %p746 = pneg %p745
    $region54: #{bart_forward.16} parent=5 // pred_check_branch
      %748 = sbr.rel (%p746) target = $region56
    $region55: #{bart_forward.16} parent=5 // pred_region
      %s749 = ssub.s32 %s13, 2
      // Predicated region
      $region57: #{bart_forward.16} parent=55 // pred_check
        %p750 = pneg %p204
      $region58: #{bart_forward.16} parent=55 // pred_check_branch
        %752 = sbr.rel (%p750) target = $region60
      $region59: #{bart_forward.16} parent=55 // pred_region
        %p753 = scmp.lt.s32.totalorder %s19, 1
        %s754 = scalar_select %p753, %s19, 1
        %s755 = smul.addr %s754, 8
        %s756 = scalar_lea.vmem %s7, %s755
      $region60: #{bart_forward.16} parent=55 // pred_fallthru
        _
    $region56: #{bart_forward.16} parent=5 // pred_fallthru
      _
  $region6: #{bart_forward.16} parent=0 // loop_footer
    %s17 = sadd.s32 1, %s13
  $region7: #{bart_forward.16} parent=0 // loop_footer_branch
    %12 = sbr.rel target = $region3
  $region8: #{bart_forward.16} parent=0 // loop_exit
    _

// kernel: bart_forward.22
$region0: #{bart_forward.22}
  #allocation0 [shape = 'u32[]', space=smem, size = 0x4, offset = 0x4, fixed_abs, tag = 'smem constant byte address 0x4 - core index']
  #allocation1 [shape = 'u32[144,128]{1,0:T(1,128)}', space=vmem, size = 0x12000, scoped, tag = 'internal scratch']
  #allocation2 [shape = 'f32[8,32]{1,0:T(8,128)}', space=vmem, size = 0x1000, scoped, tag = 'scratch operand']
  %s0 = inlined_call_operand.vmem [shape: f32[2,8,32], index: 0, kind: input, shape index: {}, may-alias: {0,1}]
  %s1 = inlined_call_operand.vmem [shape: f32[2,8,32], index: 1, kind: input, shape index: {}, may-alias: {0,1}]
  %s2 = inlined_call_operand.vmem [shape: f32[2,1,8], index: 2, kind: input, shape index: {}]
  %s3 = inlined_call_operand.vmem [shape: bf16[32,96], index: 3, kind: input, shape index: {}]
  %s4 = inlined_call_operand.vmem [shape: f32[1,96], index: 4, kind: input, shape index: {}]
  %s5 = inlined_call_operand.vmem [shape: bf16[32,32], index: 5, kind: input, shape index: {}]
  %s6 = inlined_call_operand.vmem [shape: f32[1,32], index: 6, kind: input, shape index: {}]
  %s7 = inlined_call_operand.vmem [shape: f32[2,8,32], index: 7, kind: output, shape index: {}]
  %s8 = sld [smem:[#allocation0]]
  $region61: #{bart_forward.22} parent=0
    _
  %s10 = ssub.s32 1, %s8
  %s11 = scalar_select 0, %s10, %s8
  loop: start=0, step=1, limit=4
  $region2: #{bart_forward.22} parent=0 // loop_pre_header
    _
  $region3: #{bart_forward.22} parent=0 // loop_header
    %s13 = sphi 0, %s17
    %p14 = scmp.ge.s32.totalorder %s13, 4
    %s23 = sphi 0, %s25
    %s26 = sphi 0, %s23
    %s27 = sphi 0, %s26
    %s43 = sphi 0, %s27
    %s49 = sphi 0, %s51
    %s52 = sphi 0, %s49
    %s53 = sphi 0, %s52
    %s69 = sphi 0, %s53
    %s75 = sphi 0, %s77
    %s78 = sphi 0, %s75
    %s79 = sphi 0, %s78
    %s95 = sphi 0, %s79
    %s99 = sphi 0, %s99
    %s101 = sphi 0, %s99
    %s102 = sphi 0, %s101
    %s116 = sphi 0, %s102
    %s120 = sphi 0, %s120
    %s122 = sphi 0, %s120
    %s123 = sphi 0, %s122
    %s137 = sphi 0, %s123
    %s141 = sphi 0, %s141
    %s143 = sphi 0, %s141
    %s144 = sphi 0, %s143
    %s158 = sphi 0, %s144
    %s162 = sphi 0, %s162
    %s164 = sphi 0, %s162
    %s165 = sphi 0, %s164
    %s179 = sphi 0, %s165
    %s185 = sphi 0, %s187
    %s188 = sphi 0, %s185
    %s189 = sphi 0, %s188
    %s205 = sphi 0, %s189
  $region4: #{bart_forward.22} parent=0 // loop_header_branch
    %16 = sbr.rel (%p14) target = $region8
  $region5: #{bart_forward.22} parent=0 // loop_body
    %s18 = ssub.s32 %s13, 1
    %s19 = ssub.s32 %s13, 2
    %s20 = sadd.s32 %s13, 1
    %s21 = ssub.s32 %s13, %s20
    %p22 = scmp.eq.s32.totalorder %s21, 0
    %s24 = sadd.s32 %s23, 1
    %s25 = scalar_select %p22, %s23, %s24
    %p28 = pneg %p22
    %p29 = scmp.eq.s32.totalorder %s13, 1
    %p30 = por %p28, %p29
    %p31 = scmp.ne.s32.totalorder %s23, %s26
    %p32 = scmp.eq.s32.totalorder %s13, 0
    %p33 = por %p31, %p32
    %p34 = scmp.ne.s32.totalorder %s23, %s26
    %p35 = scmp.eq.s32.totalorder %s18, 1
    %p36 = por %p34, %p35
    %p37 = scmp.ne.s32.totalorder %s26, %s27
    %p38 = scmp.eq.s32.totalorder %s18, 0
    %p39 = por %p37, %p38
    %p40 = scmp.ne.s32.totalorder %s26, %s27
    %p41 = scmp.eq.s32.totalorder %s19, 1
    %p42 = por %p40, %p41
    %p44 = scmp.ne.s32.totalorder %s27, %s43
    %p45 = scmp.eq.s32.totalorder %s19, 0
    %p46 = por %p44, %p45
    %s47 = ssub.s32 %s13, %s20
    %p48 = scmp.eq.s32.totalorder %s47, 0
    %s50 = sadd.s32 %s49, 1
    %s51 = scalar_select %p48, %s49, %s50
    %p54 = pneg %p48
    %p55 = scmp.eq.s32.totalorder %s13, 1
    %p56 = por %p54, %p55
    %p57 = scmp.ne.s32.totalorder %s49, %s52
    %p58 = scmp.eq.s32.totalorder %s13, 0
    %p59 = por %p57, %p58
    %p60 = scmp.ne.s32.totalorder %s49, %s52
    %p61 = scmp.eq.s32.totalorder %s18, 1
    %p62 = por %p60, %p61
    %p63 = scmp.ne.s32.totalorder %s52, %s53
    %p64 = scmp.eq.s32.totalorder %s18, 0
    %p65 = por %p63, %p64
    %p66 = scmp.ne.s32.totalorder %s52, %s53
    %p67 = scmp.eq.s32.totalorder %s19, 1
    %p68 = por %p66, %p67
    %p70 = scmp.ne.s32.totalorder %s53, %s69
    %p71 = scmp.eq.s32.totalorder %s19, 0
    %p72 = por %p70, %p71
    %s73 = ssub.s32 %s13, %s20
    %p74 = scmp.eq.s32.totalorder %s73, 0
    %s76 = sadd.s32 %s75, 1
    %s77 = scalar_select %p74, %s75, %s76
    %p80 = pneg %p74
    %p81 = scmp.eq.s32.totalorder %s13, 1
    %p82 = por %p80, %p81
    %p83 = scmp.ne.s32.totalorder %s75, %s78
    %p84 = scmp.eq.s32.totalorder %s13, 0
    %p85 = por %p83, %p84
    %p86 = scmp.ne.s32.totalorder %s75, %s78
    %p87 = scmp.eq.s32.totalorder %s18, 1
    %p88 = por %p86, %p87
    %p89 = scmp.ne.s32.totalorder %s78, %s79
    %p90 = scmp.eq.s32.totalorder %s18, 0
    %p91 = por %p89, %p90
    %p92 = scmp.ne.s32.totalorder %s78, %s79
    %p93 = scmp.eq.s32.totalorder %s19, 1
    %p94 = por %p92, %p93
    %p96 = scmp.ne.s32.totalorder %s79, %s95
    %p97 = scmp.eq.s32.totalorder %s19, 0
    %p98 = por %p96, %p97
    %s100 = sadd.s32 %s99, 1
    %p103 = scmp.eq.s32.totalorder %s13, 1
    %p104 = scmp.ne.s32.totalorder %s99, %s101
    %p105 = scmp.eq.s32.totalorder %s13, 0
    %p106 = por %p104, %p105
    %p107 = scmp.ne.s32.totalorder %s99, %s101
    %p108 = scmp.eq.s32.totalorder %s18, 1
    %p109 = por %p107, %p108
    %p110 = scmp.ne.s32.totalorder %s101, %s102
    %p111 = scmp.eq.s32.totalorder %s18, 0
    %p112 = por %p110, %p111
    %p113 = scmp.ne.s32.totalorder %s101, %s102
    %p114 = scmp.eq.s32.totalorder %s19, 1
    %p115 = por %p113, %p114
    %p117 = scmp.ne.s32.totalorder %s102, %s116
    %p118 = scmp.eq.s32.totalorder %s19, 0
    %p119 = por %p117, %p118
    %s121 = sadd.s32 %s120, 1
    %p124 = scmp.eq.s32.totalorder %s13, 1
    %p125 = scmp.ne.s32.totalorder %s120, %s122
    %p126 = scmp.eq.s32.totalorder %s13, 0
    %p127 = por %p125, %p126
    %p128 = scmp.ne.s32.totalorder %s120, %s122
    %p129 = scmp.eq.s32.totalorder %s18, 1
    %p130 = por %p128, %p129
    %p131 = scmp.ne.s32.totalorder %s122, %s123
    %p132 = scmp.eq.s32.totalorder %s18, 0
    %p133 = por %p131, %p132
    %p134 = scmp.ne.s32.totalorder %s122, %s123
    %p135 = scmp.eq.s32.totalorder %s19, 1
    %p136 = por %p134, %p135
    %p138 = scmp.ne.s32.totalorder %s123, %s137
    %p139 = scmp.eq.s32.totalorder %s19, 0
    %p140 = por %p138, %p139
    %s142 = sadd.s32 %s141, 1
    %p145 = scmp.eq.s32.totalorder %s13, 1
    %p146 = scmp.ne.s32.totalorder %s141, %s143
    %p147 = scmp.eq.s32.totalorder %s13, 0
    %p148 = por %p146, %p147
    %p149 = scmp.ne.s32.totalorder %s141, %s143
    %p150 = scmp.eq.s32.totalorder %s18, 1
    %p151 = por %p149, %p150
    %p152 = scmp.ne.s32.totalorder %s143, %s144
    %p153 = scmp.eq.s32.totalorder %s18, 0
    %p154 = por %p152, %p153
    %p155 = scmp.ne.s32.totalorder %s143, %s144
    %p156 = scmp.eq.s32.totalorder %s19, 1
    %p157 = por %p155, %p156
    %p159 = scmp.ne.s32.totalorder %s144, %s158
    %p160 = scmp.eq.s32.totalorder %s19, 0
    %p161 = por %p159, %p160
    %s163 = sadd.s32 %s162, 1
    %p166 = scmp.eq.s32.totalorder %s13, 1
    %p167 = scmp.ne.s32.totalorder %s162, %s164
    %p168 = scmp.eq.s32.totalorder %s13, 0
    %p169 = por %p167, %p168
    %p170 = scmp.ne.s32.totalorder %s162, %s164
    %p171 = scmp.eq.s32.totalorder %s18, 1
    %p172 = por %p170, %p171
    %p173 = scmp.ne.s32.totalorder %s164, %s165
    %p174 = scmp.eq.s32.totalorder %s18, 0
    %p175 = por %p173, %p174
    %p176 = scmp.ne.s32.totalorder %s164, %s165
    %p177 = scmp.eq.s32.totalorder %s19, 1
    %p178 = por %p176, %p177
    %p180 = scmp.ne.s32.totalorder %s165, %s179
    %p181 = scmp.eq.s32.totalorder %s19, 0
    %p182 = por %p180, %p181
    %s183 = ssub.s32 %s13, %s20
    %p184 = scmp.eq.s32.totalorder %s183, 0
    %s186 = sadd.s32 %s185, 1
    %s187 = scalar_select %p184, %s185, %s186
    %p190 = pneg %p184
    %p191 = scmp.eq.s32.totalorder %s13, 1
    %p192 = por %p190, %p191
    %p193 = scmp.ne.s32.totalorder %s185, %s188
    %p194 = scmp.eq.s32.totalorder %s13, 0
    %p195 = por %p193, %p194
    %p196 = scmp.ne.s32.totalorder %s185, %s188
    %p197 = scmp.eq.s32.totalorder %s18, 1
    %p198 = por %p196, %p197
    %p199 = scmp.ne.s32.totalorder %s188, %s189
    %p200 = scmp.eq.s32.totalorder %s18, 0
    %p201 = por %p199, %p200
    %p202 = scmp.ne.s32.totalorder %s188, %s189
    %p203 = scmp.eq.s32.totalorder %s19, 1
    %p204 = por %p202, %p203
    %p206 = scmp.ne.s32.totalorder %s189, %s205
    %p207 = scmp.eq.s32.totalorder %s19, 0
    %p208 = por %p206, %p207
    %p209 = scmp.le.s32.totalorder 1, %s13
    %p210 = scmp.lt.s32.totalorder %s13, 3
    %p211 = pnand %p209, %p210
    %p212 = pneg %p211
    // Predicated region
    $region9: #{bart_forward.22} parent=5 // pred_check
      _
    $region10: #{bart_forward.22} parent=5 // pred_check_branch
      %214 = sbr.rel (%p211) target = $region12
    $region11: #{bart_forward.22} parent=5 // pred_region
      %s215 = ssub.s32 %s13, 1
      // Predicated region
      $region13: #{bart_forward.22} parent=11 // pred_check
        %p216 = pneg %p112
      $region14: #{bart_forward.22} parent=11 // pred_check_branch
        %218 = sbr.rel (%p216) target = $region16
      $region15: #{bart_forward.22} parent=11 // pred_region
        _
      $region16: #{bart_forward.22} parent=11 // pred_fallthru
        _
      // Predicated region
      $region17: #{bart_forward.22} parent=11 // pred_check
        %p219 = pneg %p133
      $region18: #{bart_forward.22} parent=11 // pred_check_branch
        %221 = sbr.rel (%p219) target = $region20
      $region19: #{bart_forward.22} parent=11 // pred_region
        _
      $region20: #{bart_forward.22} parent=11 // pred_fallthru
        _
      // Predicated region
      $region21: #{bart_forward.22} parent=11 // pred_check
        %p222 = pneg %p154
      $region22: #{bart_forward.22} parent=11 // pred_check_branch
        %224 = sbr.rel (%p222) target = $region24
      $region23: #{bart_forward.22} parent=11 // pred_region
        _
      $region24: #{bart_forward.22} parent=11 // pred_fallthru
        _
      // Predicated region
      $region25: #{bart_forward.22} parent=11 // pred_check
        %p225 = pneg %p175
      $region26: #{bart_forward.22} parent=11 // pred_check_branch
        %227 = sbr.rel (%p225) target = $region28
      $region27: #{bart_forward.22} parent=11 // pred_region
        _
      $region28: #{bart_forward.22} parent=11 // pred_fallthru
        _
    $region12: #{bart_forward.22} parent=5 // pred_fallthru
      _
    %p228 = scmp.lt.s32.totalorder %s13, 2
    // Predicated region
    $region29: #{bart_forward.22} parent=5 // pred_check
      %p229 = pneg %p228
    $region30: #{bart_forward.22} parent=5 // pred_check_branch
      %231 = sbr.rel (%p229) target = $region32
    $region31: #{bart_forward.22} parent=5 // pred_region
      // Predicated region
      $region33: #{bart_forward.22} parent=31 // pred_check
        %p232 = pneg %p33
      $region34: #{bart_forward.22} parent=31 // pred_check_branch
        %234 = sbr.rel (%p232) target = $region36
      $region35: #{bart_forward.22} parent=31 // pred_region
        %p235 = scmp.lt.s32.totalorder %s13, 1
        %s236 = scalar_select %p235, %s13, 1
        %s237 = smul.addr %s236, 8
        %s238 = scalar_lea.vmem %s0, %s237
      $region36: #{bart_forward.22} parent=31 // pred_fallthru
        _
      // Predicated region
      $region37: #{bart_forward.22} parent=31 // pred_check
        %p239 = pneg %p59
      $region38: #{bart_forward.22} parent=31 // pred_check_branch
        %241 = sbr.rel (%p239) target = $region40
      $region39: #{bart_forward.22} parent=31 // pred_region
        %p242 = scmp.lt.s32.totalorder %s13, 1
        %s243 = scalar_select %p242, %s13, 1
        %s244 = smul.addr %s243, 8
        %s245 = scalar_lea.vmem %s1, %s244
      $region40: #{bart_forward.22} parent=31 // pred_fallthru
        _
      // Predicated region
      $region41: #{bart_forward.22} parent=31 // pred_check
        %p246 = pneg %p85
      $region42: #{bart_forward.22} parent=31 // pred_check_branch
        %248 = sbr.rel (%p246) target = $region44
      $region43: #{bart_forward.22} parent=31 // pred_region
        %p249 = scmp.lt.s32.totalorder %s13, 1
        %s250 = scalar_select %p249, %s13, 1
        %s251 = scalar_lea.vmem %s2, %s250
      $region44: #{bart_forward.22} parent=31 // pred_fallthru
        _
    $region32: #{bart_forward.22} parent=5 // pred_fallthru
      _
    %p252 = scmp.le.s32.totalorder 1, %s13
    %p253 = scmp.lt.s32.totalorder %s13, 3
    %p254 = pnand %p252, %p253
    %p255 = pneg %p254
    // Predicated region
    $region45: #{bart_forward.22} parent=5 // pred_check
      _
    $region46: #{bart_forward.22} parent=5 // pred_check_branch
      %257 = sbr.rel (%p254) target = $region48
    $region47: #{bart_forward.22} parent=5 // pred_region
      %s258 = ssub.s32 %s13, 1
      %p259 = scmp.lt.s32.totalorder %s18, 1
      %s260 = scalar_select %p259, %s18, 1
      %s261 = smul.addr %s260, 8
      %s262 = scalar_lea.vmem %s0, %s261
      %p263 = pneg %p39
      %p264 = pneg %p36
      %p265 = scmp.lt.s32.totalorder %s18, 1
      %s266 = scalar_select %p265, %s18, 1
      %s267 = smul.addr %s266, 8
      %s268 = scalar_lea.vmem %s1, %s267
      %p269 = pneg %p65
      %p270 = pneg %p62
      %p271 = scmp.lt.s32.totalorder %s18, 1
      %s272 = scalar_select %p271, %s18, 1
      %s273 = scalar_lea.vmem %s2, %s272
      %p274 = pneg %p91
      %p275 = pneg %p88
      %p276 = pneg %p112
      %p277 = pneg %p109
      %p278 = pneg %p133
      %p279 = pneg %p130
      %p280 = pneg %p154
      %p281 = pneg %p151
      %p282 = pneg %p175
      %p283 = pneg %p172
      %p284 = pneg %p201
      %p285 = pneg %p198
      %p286 = scmp.lt.s32.totalorder %s18, 1
      %s287 = scalar_select %p286, %s18, 1
      %s288 = smul.addr %s287, 8
      %s289 = scalar_lea.vmem %s7, %s288
      %p290 = scmp.lt.s32.totalorder %s18, 1
      %s291 = scalar_select %p290, %s18, 1
      %s292 = smul.addr %s291, 8
      %s293 = scalar_lea.vmem %s0, %s292
      %p294 = scmp.lt.s32.totalorder %s18, 1
      %s295 = scalar_select %p294, %s18, 1
      %s296 = smul.addr %s295, 8
      %s297 = scalar_lea.vmem %s1, %s296
      %p298 = scmp.lt.s32.totalorder %s18, 1
      %s299 = scalar_select %p298, %s18, 1
      %s300 = scalar_lea.vmem %s2, %s299
      %p301 = scmp.lt.s32.totalorder %s18, 1
      %s302 = scalar_select %p301, %s18, 1
      %s303 = smul.addr %s302, 8
      %s304 = scalar_lea.vmem %s7, %s303
      %v306 = vld [vmem:[%s293] sm:$0xff]
      %v307 = vpack.c.bf16 %v306, %v306
      %v308 = vld [vmem:[%s297] sm:$0xff]
      %v309 = vpack.c.bf16 %v308, %v308
      %v310 = vld [vmem:[%s3] sm:$0xf]
      %v311 = vld [vmem:[%s3 + $0x4] sm:$0xf]
      %v312 = vld [vmem:[%s3 + $0x8] sm:$0xf]
      %v313 = vld [vmem:[%s3 + $0xc] sm:$0xf]
      %v314 = vld [vmem:[%s4] sm:$0x1]
      %v316 = vlaneseq
      %v317 = vshrl.u32 %v316, 7
      %v318 = vsub.s32 0, %v317
      %v319 = vrot.slane %v314, %v318
      %v325 = vunpack.c.l.b16 %v310
      %v326 = vunpack.c.l.b16 %v311
      %v327 = vunpack.c.l.b16 %v312
      %v328 = vunpack.c.l.b16 %v313
      %v329 = vpack.c.b16 %v326, %v325
      %v330 = vpack.c.b16 %v328, %v327
      %vm333 = vcmask 261120
      %v335 = vsel %vm333, %v307, 0
      %337 = vmatprep.subr.bf16.mxu0 0
      %338 = vmatpush1.bf16.msra.mxu0 %v329
      %339 = vmatprep.subr.bf16.mxu0 0
      %340 = vmatpush1.bf16.msra.mxu0 %v330
      %341 = vmatprep.subr.bf16.mxu0 0
      %342 = vmatpush1.bf16.msra.mxu0 0
      %343 = vmatprep.subr.bf16.mxu0 0
      %344 = vmatpush1.bf16.msra.mxu0 0
      %345 = vmatprep.subr.bf16.mxu0 0
      %346 = vmatpush1.bf16.msra.mxu0 0
      %347 = vmatprep.subr.bf16.mxu0 0
      %348 = vmatpush1.bf16.msra.mxu0 0
      %349 = vmatprep.subr.bf16.mxu0 0
      %350 = vmatpush1.bf16.msra.mxu0 0
      %351 = vmatprep.subr.bf16.mxu0 0
      %352 = vmatpush1.bf16.msra.mxu0 0
      %353 = vmatprep.subr.bf16.mxu0 0
      %354 = vmatpush1.bf16.msra.mxu0 0
      %355 = vmatprep.subr.bf16.mxu0 0
      %356 = vmatpush1.bf16.msra.mxu0 0
      %357 = vmatprep.subr.bf16.mxu0 0
      %358 = vmatpush1.bf16.msra.mxu0 0
      %359 = vmatprep.subr.bf16.mxu0 0
      %360 = vmatpush1.bf16.msra.mxu0 0
      %361 = vmatprep.subr.bf16.mxu0 0
      %362 = vmatpush1.bf16.msra.mxu0 0
      %363 = vmatprep.subr.bf16.mxu0 0
      %364 = vmatpush1.bf16.msra.mxu0 0
      %365 = vmatprep.subr.bf16.mxu0 0
      %366 = vmatpush1.bf16.msra.mxu0 0
      %367 = vmatprep.subr.bf16.mxu0 0
      %368 = vmatpush1.bf16.msra.mxu0 0
      %369 = vmatprep.mubr.bf16.mxu0 0
      %370 = vmatmul.mubr.bf16.gmra.mrb[0].mxu0 %v335
      %v371 = vpop.f32.mrb[0].mxu0
      %v372 = vadd.f32 %v319, %v371
      %v373 = vpop.f32.mrb[0].mxu0
      %v374 = vpop.f32.mrb[0].mxu0
      %v375 = vpop.f32.mrb[0].mxu0
      %376 = vdwg.mxu0
      %377 = vrot.lane.b32.xlu0 %v329, 96
      %v378 = vpop.permute.xlu0 %377
      %379 = vrot.lane.b32.xlu0 %v330, 96
      %v380 = vpop.permute.xlu0 %379
      %383 = vrot.lane.b32.xlu0 %v319, 96
      %v384 = vpop.permute.xlu0 %383
      %v387 = vsel %vm333, %v309, 0
      %389 = vmatprep.subr.bf16.mxu0 0
      %390 = vmatpush1.bf16.msra.mxu0 %v378
      %391 = vmatprep.subr.bf16.mxu0 0
      %392 = vmatpush1.bf16.msra.mxu0 %v380
      %393 = vmatprep.subr.bf16.mxu0 0
      %394 = vmatpush1.bf16.msra.mxu0 0
      %395 = vmatprep.subr.bf16.mxu0 0
      %396 = vmatpush1.bf16.msra.mxu0 0
      %397 = vmatprep.subr.bf16.mxu0 0
      %398 = vmatpush1.bf16.msra.mxu0 0
      %399 = vmatprep.subr.bf16.mxu0 0
      %400 = vmatpush1.bf16.msra.mxu0 0
      %401 = vmatprep.subr.bf16.mxu0 0
      %402 = vmatpush1.bf16.msra.mxu0 0
      %403 = vmatprep.subr.bf16.mxu0 0
      %404 = vmatpush1.bf16.msra.mxu0 0
      %405 = vmatprep.subr.bf16.mxu0 0
      %406 = vmatpush1.bf16.msra.mxu0 0
      %407 = vmatprep.subr.bf16.mxu0 0
      %408 = vmatpush1.bf16.msra.mxu0 0
      %409 = vmatprep.subr.bf16.mxu0 0
      %410 = vmatpush1.bf16.msra.mxu0 0
      %411 = vmatprep.subr.bf16.mxu0 0
      %412 = vmatpush1.bf16.msra.mxu0 0
      %413 = vmatprep.subr.bf16.mxu0 0
      %414 = vmatpush1.bf16.msra.mxu0 0
      %415 = vmatprep.subr.bf16.mxu0 0
      %416 = vmatpush1.bf16.msra.mxu0 0
      %417 = vmatprep.subr.bf16.mxu0 0
      %418 = vmatpush1.bf16.msra.mxu0 0
      %419 = vmatprep.subr.bf16.mxu0 0
      %420 = vmatpush1.bf16.msra.mxu0 0
      %421 = vmatprep.mubr.bf16.mxu0 0
      %422 = vmatmul.mubr.bf16.gmra.mrb[0].mxu0 %v387
      %v423 = vpop.f32.mrb[0].mxu0
      %v424 = vadd.f32 %v384, %v423
      %v425 = vpop.f32.mrb[0].mxu0
      %v426 = vpop.f32.mrb[0].mxu0
      %v427 = vpop.f32.mrb[0].mxu0
      %428 = vdwg.mxu0
      %v429 = vld [vmem:[%s300] sm:$0x1]
      %v430 = vsub.f32 1.0, %v429
      %v431 = vmul.f32 %v430, -1e+09
      %v432 = vlaneseq
      %v433 = vshrl.u32 %v432, 7
      %v434 = vlaneseq
      %v435 = vand.u32 %v434, 127
      %vm436 = vcmp.gt.s32.totalorder %v435, %v433
      %v437 = vsel %vm436, -1e+09, 0.0
      %v438 = vmul.f32 %v372, 0.25
      %v439 = vpack.c.bf16 %v438, %v438
      %v440 = vpack.c.bf16 %v424, %v424
      %v442 = vlaneseq
      %v443 = vshrl.u32 %v442, 7
      %v444 = vsub.s32 0, %v443
      %v445 = vrot.slane %v431, %v444
      %vm447 = vcmask 130048
      %v449 = vsel %vm447, %v439, 0
      %v452 = vsel %vm447, %v440, 0
      %454 = vmatprep.subr.bf16.mxu0 0
      %455 = vmatpush1.bf16.xpose.msra.mxu0 %v452
      %456 = vmatprep.subr.bf16.mxu0 0
      %457 = vmatpush1.bf16.xpose.msra.mxu0 0
      %458 = vmatprep.subr.bf16.mxu0 0
      %459 = vmatpush1.bf16.xpose.msra.mxu0 0
      %460 = vmatprep.subr.bf16.mxu0 0
      %461 = vmatpush1.bf16.xpose.msra.mxu0 0
      %462 = vmatprep.subr.bf16.mxu0 0
      %463 = vmatpush1.bf16.xpose.msra.mxu0 0
      %464 = vmatprep.subr.bf16.mxu0 0
      %465 = vmatpush1.bf16.xpose.msra.mxu0 0
      %466 = vmatprep.subr.bf16.mxu0 0
      %467 = vmatpush1.bf16.xpose.msra.mxu0 0
      %468 = vmatprep.subr.bf16.mxu0 0
      %469 = vmatpush1.bf16.xpose.msra.mxu0 0
      %470 = vmatprep.subr.bf16.mxu0 0
      %471 = vmatpush1.bf16.xpose.msra.mxu0 0
      %472 = vmatprep.subr.bf16.mxu0 0
      %473 = vmatpush1.bf16.xpose.msra.mxu0 0
      %474 = vmatprep.subr.bf16.mxu0 0
      %475 = vmatpush1.bf16.xpose.msra.mxu0 0
      %476 = vmatprep.subr.bf16.mxu0 0
      %477 = vmatpush1.bf16.xpose.msra.mxu0 0
      %478 = vmatprep.subr.bf16.mxu0 0
      %479 = vmatpush1.bf16.xpose.msra.mxu0 0
      %480 = vmatprep.subr.bf16.mxu0 0
      %481 = vmatpush1.bf16.xpose.msra.mxu0 0
      %482 = vmatprep.subr.bf16.mxu0 0
      %483 = vmatpush1.bf16.xpose.msra.mxu0 0
      %484 = vmatprep.subr.bf16.mxu0 0
      %485 = vmatpush1.bf16.xpose.msra.mxu0 0
      %486 = vmatprep.mubr.bf16.mxu0 0
      %487 = vmatmul.mubr.bf16.gmra.mrb[0].mxu0 %v449
      %v488 = vpop.f32.mrb[0].mxu0
      %v489 = vadd.f32 %v445, %v488
      %v490 = vpop.f32.mrb[0].mxu0
      %v491 = vpop.f32.mrb[0].mxu0
      %v492 = vpop.f32.mrb[0].mxu0
      %493 = vdwg.mxu0
      %v494 = vadd.f32 %v489, %v437
      %vm495 = vcmask 64512
      %v496 = vsel %vm495, %v494, -inf
      %497 = vmax.xlane.f32.xlu0 %v496
      %v498 = vpop.xlane.xlu0 %497
      %v499 = vsub.f32 %v494, %v498
      %v500 = vmul.f32 %v499, 1.442695
      %v501 = vpow.pop %v500
      %v502 = vsel %vm495, %v501, 0.0
      %503 = vadd.xlane.f32.xlu0 %v502
      %v504 = vpop.xlane.xlu0 %503
      %v505 = vrcp.pop %v504
      %v506 = vmul.f32 %v501, %v505
      %v507 = vpack.c.bf16 %v506, %v506
      %509 = vrot.lane.b32.xlu0 %v440, 96
      %v510 = vpop.permute.xlu0 %509
      %v512 = vsel %vm495, %v507, 0
      %vm514 = vcmask 1043456
      %v516 = vsel %vm514, %v510, 0
      %518 = vmatprep.subr.bf16.mxu0 0
      %519 = vmatpush1.bf16.msra.mxu0 %v516
      %520 = vmatprep.subr.bf16.mxu0 0
      %521 = vmatpush1.bf16.msra.mxu0 0
      %522 = vmatprep.subr.bf16.mxu0 0
      %523 = vmatpush1.bf16.msra.mxu0 0
      %524 = vmatprep.subr.bf16.mxu0 0
      %525 = vmatpush1.bf16.msra.mxu0 0
      %526 = vmatprep.subr.bf16.mxu0 0
      %527 = vmatpush1.bf16.msra.mxu0 0
      %528 = vmatprep.subr.bf16.mxu0 0
      %529 = vmatpush1.bf16.msra.mxu0 0
      %530 = vmatprep.subr.bf16.mxu0 0
      %531 = vmatpush1.bf16.msra.mxu0 0
      %532 = vmatprep.subr.bf16.mxu0 0
      %533 = vmatpush1.bf16.msra.mxu0 0
      %534 = vmatprep.subr.bf16.mxu0 0
      %535 = vmatpush1.bf16.msra.mxu0 0
      %536 = vmatprep.subr.bf16.mxu0 0
      %537 = vmatpush1.bf16.msra.mxu0 0
      %538 = vmatprep.subr.bf16.mxu0 0
      %539 = vmatpush1.bf16.msra.mxu0 0
      %540 = vmatprep.subr.bf16.mxu0 0
      %541 = vmatpush1.bf16.msra.mxu0 0
      %542 = vmatprep.subr.bf16.mxu0 0
      %543 = vmatpush1.bf16.msra.mxu0 0
      %544 = vmatprep.subr.bf16.mxu0 0
      %545 = vmatpush1.bf16.msra.mxu0 0
      %546 = vmatprep.subr.bf16.mxu0 0
      %547 = vmatpush1.bf16.msra.mxu0 0
      %548 = vmatprep.subr.bf16.mxu0 0
      %549 = vmatpush1.bf16.msra.mxu0 0
      %550 = vmatprep.mubr.bf16.mxu0 0
      %551 = vmatmul.mubr.bf16.gmra.mrb[0].mxu0 %v512
      %v552 = vpop.f32.mrb[0].mxu0
      %v553 = vadd.f32 0.0, %v552
      %v554 = vpop.f32.mrb[0].mxu0
      %v555 = vpop.f32.mrb[0].mxu0
      %v556 = vpop.f32.mrb[0].mxu0
      %557 = vdwg.mxu0
      %558 = vst.msk [vmem:[#allocation2] sm:$0xff] %vm447, %v553
      %560 = vrot.lane.b32.xlu0 %v439, 112
      %v561 = vpop.permute.xlu0 %560
      %562 = vrot.lane.b32.xlu0 %v440, 112
      %v563 = vpop.permute.xlu0 %562
      %v565 = vsel %vm447, %v561, 0
      %v568 = vsel %vm447, %v563, 0
      %570 = vmatprep.subr.bf16.mxu0 0
      %571 = vmatpush1.bf16.xpose.msra.mxu0 %v568
      %572 = vmatprep.subr.bf16.mxu0 0
      %573 = vmatpush1.bf16.xpose.msra.mxu0 0
      %574 = vmatprep.subr.bf16.mxu0 0
      %575 = vmatpush1.bf16.xpose.msra.mxu0 0
      %576 = vmatprep.subr.bf16.mxu0 0
      %577 = vmatpush1.bf16.xpose.msra.mxu0 0
      %578 = vmatprep.subr.bf16.mxu0 0
      %579 = vmatpush1.bf16.xpose.msra.mxu0 0
      %580 = vmatprep.subr.bf16.mxu0 0
      %581 = vmatpush1.bf16.xpose.msra.mxu0 0
      %582 = vmatprep.subr.bf16.mxu0 0
      %583 = vmatpush1.bf16.xpose.msra.mxu0 0
      %584 = vmatprep.subr.bf16.mxu0 0
      %585 = vmatpush1.bf16.xpose.msra.mxu0 0
      %586 = vmatprep.subr.bf16.mxu0 0
      %587 = vmatpush1.bf16.xpose.msra.mxu0 0
      %588 = vmatprep.subr.bf16.mxu0 0
      %589 = vmatpush1.bf16.xpose.msra.mxu0 0
      %590 = vmatprep.subr.bf16.mxu0 0
      %591 = vmatpush1.bf16.xpose.msra.mxu0 0
      %592 = vmatprep.subr.bf16.mxu0 0
      %593 = vmatpush1.bf16.xpose.msra.mxu0 0
      %594 = vmatprep.subr.bf16.mxu0 0
      %595 = vmatpush1.bf16.xpose.msra.mxu0 0
      %596 = vmatprep.subr.bf16.mxu0 0
      %597 = vmatpush1.bf16.xpose.msra.mxu0 0
      %598 = vmatprep.subr.bf16.mxu0 0
      %599 = vmatpush1.bf16.xpose.msra.mxu0 0
      %600 = vmatprep.subr.bf16.mxu0 0
      %601 = vmatpush1.bf16.xpose.msra.mxu0 0
      %602 = vmatprep.mubr.bf16.mxu0 0
      %603 = vmatmul.mubr.bf16.gmra.mrb[0].mxu0 %v565
      %v604 = vpop.f32.mrb[0].mxu0
      %v605 = vadd.f32 %v445, %v604
      %v606 = vpop.f32.mrb[0].mxu0
      %v607 = vpop.f32.mrb[0].mxu0
      %v608 = vpop.f32.mrb[0].mxu0
      %609 = vdwg.mxu0
      %v610 = vadd.f32 %v605, %v437
      %v611 = vsel %vm495, %v610, -inf
      %612 = vmax.xlane.f32.xlu0 %v611
      %v613 = vpop.xlane.xlu0 %612
      %v614 = vsub.f32 %v610, %v613
      %v615 = vmul.f32 %v614, 1.442695
      %v616 = vpow.pop %v615
      %v617 = vsel %vm495, %v616, 0.0
      %618 = vadd.xlane.f32.xlu0 %v617
      %v619 = vpop.xlane.xlu0 %618
      %v620 = vrcp.pop %v619
      %v621 = vmul.f32 %v616, %v620
      %v622 = vpack.c.bf16 %v621, %v621
      %623 = vrot.lane.b32.xlu0 %v440, 80
      %v624 = vpop.permute.xlu0 %623
      %v626 = vsel %vm495, %v622, 0
      %v629 = vsel %vm514, %v624, 0
      %631 = vmatprep.subr.bf16.mxu0 0
      %632 = vmatpush1.bf16.msra.mxu0 %v629
      %633 = vmatprep.subr.bf16.mxu0 0
      %634 = vmatpush1.bf16.msra.mxu0 0
      %635 = vmatprep.subr.bf16.mxu0 0
      %636 = vmatpush1.bf16.msra.mxu0 0
      %637 = vmatprep.subr.bf16.mxu0 0
      %638 = vmatpush1.bf16.msra.mxu0 0
      %639 = vmatprep.subr.bf16.mxu0 0
      %640 = vmatpush1.bf16.msra.mxu0 0
      %641 = vmatprep.subr.bf16.mxu0 0
      %642 = vmatpush1.bf16.msra.mxu0 0
      %643 = vmatprep.subr.bf16.mxu0 0
      %644 = vmatpush1.bf16.msra.mxu0 0
      %645 = vmatprep.subr.bf16.mxu0 0
      %646 = vmatpush1.bf16.msra.mxu0 0
      %647 = vmatprep.subr.bf16.mxu0 0
      %648 = vmatpush1.bf16.msra.mxu0 0
      %649 = vmatprep.subr.bf16.mxu0 0
      %650 = vmatpush1.bf16.msra.mxu0 0
      %651 = vmatprep.subr.bf16.mxu0 0
      %652 = vmatpush1.bf16.msra.mxu0 0
      %653 = vmatprep.subr.bf16.mxu0 0
      %654 = vmatpush1.bf16.msra.mxu0 0
      %655 = vmatprep.subr.bf16.mxu0 0
      %656 = vmatpush1.bf16.msra.mxu0 0
      %657 = vmatprep.subr.bf16.mxu0 0
      %658 = vmatpush1.bf16.msra.mxu0 0
      %659 = vmatprep.subr.bf16.mxu0 0
      %660 = vmatpush1.bf16.msra.mxu0 0
      %661 = vmatprep.subr.bf16.mxu0 0
      %662 = vmatpush1.bf16.msra.mxu0 0
      %663 = vmatprep.mubr.bf16.mxu0 0
      %664 = vmatmul.mubr.bf16.gmra.mrb[0].mxu0 %v626
      %v665 = vpop.f32.mrb[0].mxu0
      %v666 = vadd.f32 0.0, %v665
      %v667 = vpop.f32.mrb[0].mxu0
      %v668 = vpop.f32.mrb[0].mxu0
      %v669 = vpop.f32.mrb[0].mxu0
      %670 = vdwg.mxu0
      %672 = vrot.lane.b32.xlu0 %v666, 16
      %v673 = vpop.permute.xlu0 %672
      %vm675 = vcmask 261248
      %676 = vst.msk [vmem:[#allocation2] sm:$0xff] %vm675, %v673
      %v677 = vld [vmem:[#allocation2] sm:$0xff]
      %v678 = vpack.c.bf16 %v677, %v677
      %v679 = vld [vmem:[%s5] sm:$0xf]
      %v680 = vld [vmem:[%s5 + $0x4] sm:$0xf]
      %v681 = vld [vmem:[%s5 + $0x8] sm:$0xf]
      %v682 = vld [vmem:[%s5 + $0xc] sm:$0xf]
      %v683 = vld [vmem:[%s6] sm:$0x1]
      %v685 = vlaneseq
      %v686 = vshrl.u32 %v685, 7
      %v687 = vsub.s32 0, %v686
      %v688 = vrot.slane %v683, %v687
      %v694 = vunpack.c.l.b16 %v679
      %v695 = vunpack.c.l.b16 %v680
      %v696 = vunpack.c.l.b16 %v681
      %v697 = vunpack.c.l.b16 %v682
      %v698 = vpack.c.b16 %v695, %v694
      %v699 = vpack.c.b16 %v697, %v696
      %v703 = vsel %vm333, %v678, 0
      %705 = vmatprep.subr.bf16.mxu0 0
      %706 = vmatpush1.bf16.msra.mxu0 %v698
      %707 = vmatprep.subr.bf16.mxu0 0
      %708 = vmatpush1.bf16.msra.mxu0 %v699
      %709 = vmatprep.subr.bf16.mxu0 0
      %710 = vmatpush1.bf16.msra.mxu0 0
      %711 = vmatprep.subr.bf16.mxu0 0
      %712 = vmatpush1.bf16.msra.mxu0 0
      %713 = vmatprep.subr.bf16.mxu0 0
      %714 = vmatpush1.bf16.msra.mxu0 0
      %715 = vmatprep.subr.bf16.mxu0 0
      %716 = vmatpush1.bf16.msra.mxu0 0
      %717 = vmatprep.subr.bf16.mxu0 0
      %718 = vmatpush1.bf16.msra.mxu0 0
      %719 = vmatprep.subr.bf16.mxu0 0
      %720 = vmatpush1.bf16.msra.mxu0 0
      %721 = vmatprep.subr.bf16.mxu0 0
      %722 = vmatpush1.bf16.msra.mxu0 0
      %723 = vmatprep.subr.bf16.mxu0 0
      %724 = vmatpush1.bf16.msra.mxu0 0
      %725 = vmatprep.subr.bf16.mxu0 0
      %726 = vmatpush1.bf16.msra.mxu0 0
      %727 = vmatprep.subr.bf16.mxu0 0
      %728 = vmatpush1.bf16.msra.mxu0 0
      %729 = vmatprep.subr.bf16.mxu0 0
      %730 = vmatpush1.bf16.msra.mxu0 0
      %731 = vmatprep.subr.bf16.mxu0 0
      %732 = vmatpush1.bf16.msra.mxu0 0
      %733 = vmatprep.subr.bf16.mxu0 0
      %734 = vmatpush1.bf16.msra.mxu0 0
      %735 = vmatprep.subr.bf16.mxu0 0
      %736 = vmatpush1.bf16.msra.mxu0 0
      %737 = vmatprep.mubr.bf16.mxu0 0
      %738 = vmatmul.mubr.bf16.gmra.mrb[0].mxu0 %v703
      %v739 = vpop.f32.mrb[0].mxu0
      %v740 = vadd.f32 %v688, %v739
      %v741 = vpop.f32.mrb[0].mxu0
      %v742 = vpop.f32.mrb[0].mxu0
      %v743 = vpop.f32.mrb[0].mxu0
      %744 = vdwg.mxu0
      %745 = vst.msk [vmem:[%s304] sm:$0xff] %vm333, %v740
      %p746 = scmp.lt.s32.totalorder %s18, 1
      %s747 = scalar_select %p746, %s18, 1
      %s748 = smul.addr %s747, 8
      %s749 = scalar_lea.vmem %s7, %s748
      // Predicated region
      $region49: #{bart_forward.22} parent=47 // pred_check
        %p750 = pneg %p198
      $region50: #{bart_forward.22} parent=47 // pred_check_branch
        %752 = sbr.rel (%p750) target = $region52
      $region51: #{bart_forward.22} parent=47 // pred_region
        _
      $region52: #{bart_forward.22} parent=47 // pred_fallthru
        _
    $region48: #{bart_forward.22} parent=5 // pred_fallthru
      _
    %p753 = scmp.le.s32.totalorder 2, %s13
    // Predicated region
    $region53: #{bart_forward.22} parent=5 // pred_check
      %p754 = pneg %p753
    $region54: #{bart_forward.22} parent=5 // pred_check_branch
      %756 = sbr.rel (%p754) target = $region56
    $region55: #{bart_forward.22} parent=5 // pred_region
      %s757 = ssub.s32 %s13, 2
      // Predicated region
      $region57: #{bart_forward.22} parent=55 // pred_check
        %p758 = pneg %p204
      $region58: #{bart_forward.22} parent=55 // pred_check_branch
        %760 = sbr.rel (%p758) target = $region60
      $region59: #{bart_forward.22} parent=55 // pred_region
        %p761 = scmp.lt.s32.totalorder %s19, 1
        %s762 = scalar_select %p761, %s19, 1
        %s763 = smul.addr %s762, 8
        %s764 = scalar_lea.vmem %s7, %s763
      $region60: #{bart_forward.22} parent=55 // pred_fallthru
        _
    $region56: #{bart_forward.22} parent=5 // pred_fallthru
      _
  $region6: #{bart_forward.22} parent=0 // loop_footer
    %s17 = sadd.s32 1, %s13
  $region7: #{bart_forward.22} parent=0 // loop_footer_branch
    %12 = sbr.rel target = $region3
  $region8: #{bart_forward.22} parent=0 // loop_exit
    _

// kernel: bart_forward.18
$region0: #{bart_forward.18}
  #allocation0 [shape = 'u32[]', space=smem, size = 0x4, offset = 0x4, fixed_abs, tag = 'smem constant byte address 0x4 - core index']
  #allocation1 [shape = 'u32[144,128]{1,0:T(1,128)}', space=vmem, size = 0x12000, scoped, tag = 'internal scratch']
  #allocation2 [shape = 'f32[16,64]{1,0:T(8,128)}', space=vmem, size = 0x2000, scoped, tag = 'scratch operand']
  %s0 = inlined_call_operand.vmem [shape: f32[16,32], index: 0, kind: input, shape index: {}]
  %s1 = inlined_call_operand.vmem [shape: bf16[32,64], index: 1, kind: input, shape index: {}]
  %s2 = inlined_call_operand.vmem [shape: f32[1,64], index: 2, kind: input, shape index: {}]
  %s3 = inlined_call_operand.vmem [shape: f32[16,64], index: 3, kind: output, shape index: {}]
  %s4 = sld [smem:[#allocation0]]
  $region30: #{bart_forward.18} parent=0
    _
  %s6 = ssub.s32 1, %s4
  %s7 = scalar_select 0, %s6, %s4
  // Predicated region
  $region2: #{bart_forward.18} parent=0 // pred_check
    _
  $region3: #{bart_forward.18} parent=0 // pred_check_branch
    %9 = sbr.rel (0) target = $region5
  $region4: #{bart_forward.18} parent=0 // pred_region
    _
  $region5: #{bart_forward.18} parent=0 // pred_fallthru
    _
  // Predicated region
  $region6: #{bart_forward.18} parent=0 // pred_check
    _
  $region7: #{bart_forward.18} parent=0 // pred_check_branch
    %11 = sbr.rel (0) target = $region9
  $region8: #{bart_forward.18} parent=0 // pred_region
    _
  $region9: #{bart_forward.18} parent=0 // pred_fallthru
    _
  // Predicated region
  $region10: #{bart_forward.18} parent=0 // pred_check
    _
  $region11: #{bart_forward.18} parent=0 // pred_check_branch
    %13 = sbr.rel (0) target = $region13
  $region12: #{bart_forward.18} parent=0 // pred_region
    _
  $region13: #{bart_forward.18} parent=0 // pred_fallthru
    _
  %p15 = scmp.eq.s32.totalorder 0, 0
  // Predicated region
  $region14: #{bart_forward.18} parent=0 // pred_check
    %p16 = pneg %p15
  $region15: #{bart_forward.18} parent=0 // pred_check_branch
    %18 = sbr.rel (%p16) target = $region17
  $region16: #{bart_forward.18} parent=0 // pred_region
    %vm19 = vcmask 523264
    %20 = vst.msk [vmem:[#allocation2] sm:$0xff] %vm19, 0.0
    %21 = vst.msk [vmem:[#allocation2 + $0x8] sm:$0xff] %vm19, 0.0
  $region17: #{bart_forward.18} parent=0 // pred_fallthru
    _
  %v22 = vld [vmem:[%s0] sm:$0xff]
  %v23 = vld [vmem:[%s0 + $0x8] sm:$0xff]
  %v24 = vpack.c.bf16 %v23, %v22
  %v25 = vld [vmem:[%s1] sm:$0xf]
  %v26 = vld [vmem:[%s1 + $0x4] sm:$0xf]
  %v27 = vld [vmem:[%s1 + $0x8] sm:$0xf]
  %v28 = vld [vmem:[%s1 + $0xc] sm:$0xf]
  %v29 = vld [vmem:[#allocation2] sm:$0xff]
  %v30 = vld [vmem:[#allocation2 + $0x8] sm:$0xff]
  %v35 = vunpack.c.l.b16 %v25
  %v36 = vunpack.c.l.b16 %v26
  %v37 = vunpack.c.l.b16 %v27
  %v38 = vunpack.c.l.b16 %v28
  %v39 = vpack.c.b16 %v36, %v35
  %v40 = vpack.c.b16 %v38, %v37
  %vm43 = vcmask 261120
  %v45 = vsel %vm43, %v24, 0
  %47 = vmatprep.subr.bf16.mxu0 0
  %48 = vmatpush1.bf16.msra.mxu0 %v39
  %49 = vmatprep.subr.bf16.mxu0 0
  %50 = vmatpush1.bf16.msra.mxu0 %v40
  %51 = vmatprep.subr.bf16.mxu0 0
  %52 = vmatpush1.bf16.msra.mxu0 0
  %53 = vmatprep.subr.bf16.mxu0 0
  %54 = vmatpush1.bf16.msra.mxu0 0
  %55 = vmatprep.subr.bf16.mxu0 0
  %56 = vmatpush1.bf16.msra.mxu0 0
  %57 = vmatprep.subr.bf16.mxu0 0
  %58 = vmatpush1.bf16.msra.mxu0 0
  %59 = vmatprep.subr.bf16.mxu0 0
  %60 = vmatpush1.bf16.msra.mxu0 0
  %61 = vmatprep.subr.bf16.mxu0 0
  %62 = vmatpush1.bf16.msra.mxu0 0
  %63 = vmatprep.subr.bf16.mxu0 0
  %64 = vmatpush1.bf16.msra.mxu0 0
  %65 = vmatprep.subr.bf16.mxu0 0
  %66 = vmatpush1.bf16.msra.mxu0 0
  %67 = vmatprep.subr.bf16.mxu0 0
  %68 = vmatpush1.bf16.msra.mxu0 0
  %69 = vmatprep.subr.bf16.mxu0 0
  %70 = vmatpush1.bf16.msra.mxu0 0
  %71 = vmatprep.subr.bf16.mxu0 0
  %72 = vmatpush1.bf16.msra.mxu0 0
  %73 = vmatprep.subr.bf16.mxu0 0
  %74 = vmatpush1.bf16.msra.mxu0 0
  %75 = vmatprep.subr.bf16.mxu0 0
  %76 = vmatpush1.bf16.msra.mxu0 0
  %77 = vmatprep.subr.bf16.mxu0 0
  %78 = vmatpush1.bf16.msra.mxu0 0
  %79 = vmatprep.mubr.bf16.mxu0 0
  %80 = vmatmul.mubr.bf16.gmra.mrb[0].mxu0 %v45
  %v81 = vpop.f32.mrb[0].mxu0
  %v82 = vadd.f32 0.0, %v81
  %v83 = vpop.f32.mrb[0].mxu0
  %v84 = vpop.f32.mrb[0].mxu0
  %v85 = vadd.f32 0.0, %v84
  %v86 = vpop.f32.mrb[0].mxu0
  %87 = vdwg.mxu0
  %v88 = vadd.f32 %v29, %v82
  %v89 = vadd.f32 %v30, %v85
  %vm90 = vcmask 523264
  %91 = vst.msk [vmem:[#allocation2] sm:$0xff] %vm90, %v88
  %92 = vst.msk [vmem:[#allocation2 + $0x8] sm:$0xff] %vm90, %v89
  // Predicated region
  $region18: #{bart_forward.18} parent=0 // pred_check
    %p93 = pneg %p15
  $region19: #{bart_forward.18} parent=0 // pred_check_branch
    %95 = sbr.rel (%p93) target = $region21
  $region20: #{bart_forward.18} parent=0 // pred_region
    %v96 = vld [vmem:[#allocation2] sm:$0xff]
    %v97 = vld [vmem:[#allocation2 + $0x8] sm:$0xff]
    %v98 = vld [vmem:[%s2] sm:$0x1]
    %v100 = vlaneseq
    %v101 = vshrl.u32 %v100, 7
    %v102 = vsub.s32 0, %v101
    %v103 = vrot.slane %v98, %v102
    %v105 = vadd.f32 %v96, %v103
    %v106 = vadd.f32 %v97, %v103
    %v107 = vmul.f32 %v105, 0.5
    %v108 = vmul.f32 %v106, 0.5
    %v109 = vmul.f32 %v105, 0.044715
    %v110 = vmul.f32 %v106, 0.044715
    %v111 = vmul.f32 %v109, %v105
    %v112 = vmul.f32 %v110, %v106
    %v113 = vmul.f32 %v111, %v105
    %v114 = vmul.f32 %v112, %v106
    %v115 = vadd.f32 %v105, %v113
    %v116 = vadd.f32 %v106, %v114
    %v117 = vmul.f32 %v115, 0.7978846
    %v118 = vmul.f32 %v116, 0.7978846
    %v119 = vtanh.pop %v117
    %v120 = vtanh.pop %v118
    %v121 = vadd.f32 %v119, 1.0
    %v122 = vadd.f32 %v120, 1.0
    %v123 = vmul.f32 %v107, %v121
    %v124 = vmul.f32 %v108, %v122
    %125 = vst.msk [vmem:[%s3] sm:$0xff] %vm90, %v123
    %126 = vst.msk [vmem:[%s3 + $0x8] sm:$0xff] %vm90, %v124
  $region21: #{bart_forward.18} parent=0 // pred_fallthru
    _
  // Predicated region
  $region22: #{bart_forward.18} parent=0 // pred_check
    _
  $region23: #{bart_forward.18} parent=0 // pred_check_branch
    %128 = sbr.rel (0) target = $region25
  $region24: #{bart_forward.18} parent=0 // pred_region
    _
  $region25: #{bart_forward.18} parent=0 // pred_fallthru
    _
  // Predicated region
  $region26: #{bart_forward.18} parent=0 // pred_check
    _
  $region27: #{bart_forward.18} parent=0 // pred_check_branch
    %130 = sbr.rel (0) target = $region29
  $region28: #{bart_forward.18} parent=0 // pred_region
    _
  $region29: #{bart_forward.18} parent=0 // pred_fallthru
    _

// kernel: bart_forward.29
$region0: #{bart_forward.29}
  #allocation0 [shape = 'u32[]', space=smem, size = 0x4, offset = 0x4, fixed_abs, tag = 'smem constant byte address 0x4 - core index']
  #allocation1 [shape = 'u32[144,128]{1,0:T(1,128)}', space=vmem, size = 0x12000, scoped, tag = 'internal scratch']
  #allocation2 [shape = 'f32[16,64]{1,0:T(8,128)}', space=vmem, size = 0x2000, scoped, tag = 'scratch operand']
  %s0 = inlined_call_operand.vmem [shape: f32[16,32], index: 0, kind: input, shape index: {}]
  %s1 = inlined_call_operand.vmem [shape: bf16[64,32], index: 1, kind: input, shape index: {}]
  %s2 = inlined_call_operand.vmem [shape: f32[1,64], index: 2, kind: input, shape index: {}]
  %s3 = inlined_call_operand.hbm [shape: f32[16,64], index: 3, kind: output, shape index: {}]
  %s4 = sld [smem:[#allocation0]]
  $region30: #{bart_forward.29} parent=0
    _
  %s6 = ssub.s32 1, %s4
  %s7 = scalar_select 0, %s6, %s4
  $region1: #{bart_forward.29} parent=0
    #allocation3 [shape = 'u8[8192]{0}', space=vmem, size = 0x2000, scoped, tag = 'output window, operand 0, single buffered']
    #allocation4 [shape = 's32[1]{0}', space=sflag, size = 0x4, scoped, tag = 'scoped memory for bart_forward.29']
    %8 = vsyncpa [#allocation4], 0
    // Predicated region
    $region2: #{bart_forward.29} parent=1 // pred_check
      _
    $region3: #{bart_forward.29} parent=1 // pred_check_branch
      %10 = sbr.rel (0) target = $region5
    $region4: #{bart_forward.29} parent=1 // pred_region
      _
    $region5: #{bart_forward.29} parent=1 // pred_fallthru
      _
    // Predicated region
    $region6: #{bart_forward.29} parent=1 // pred_check
      _
    $region7: #{bart_forward.29} parent=1 // pred_check_branch
      %12 = sbr.rel (0) target = $region9
    $region8: #{bart_forward.29} parent=1 // pred_region
      _
    $region9: #{bart_forward.29} parent=1 // pred_fallthru
      _
    // Predicated region
    $region10: #{bart_forward.29} parent=1 // pred_check
      _
    $region11: #{bart_forward.29} parent=1 // pred_check_branch
      %14 = sbr.rel (0) target = $region13
    $region12: #{bart_forward.29} parent=1 // pred_region
      _
    $region13: #{bart_forward.29} parent=1 // pred_fallthru
      _
    %p16 = scmp.eq.s32.totalorder 0, 0
    // Predicated region
    $region14: #{bart_forward.29} parent=1 // pred_check
      %p17 = pneg %p16
    $region15: #{bart_forward.29} parent=1 // pred_check_branch
      %19 = sbr.rel (%p17) target = $region17
    $region16: #{bart_forward.29} parent=1 // pred_region
      %vm20 = vcmask 523264
      %21 = vst.msk [vmem:[#allocation2] sm:$0xff] %vm20, 0.0
      %22 = vst.msk [vmem:[#allocation2 + $0x8] sm:$0xff] %vm20, 0.0
    $region17: #{bart_forward.29} parent=1 // pred_fallthru
      _
    %v23 = vld [vmem:[%s0] sm:$0xff]
    %v24 = vld [vmem:[%s0 + $0x8] sm:$0xff]
    %v25 = vpack.c.bf16 %v24, %v23
    %v26 = vld [vmem:[%s1] sm:$0xf]
    %v27 = vld [vmem:[%s1 + $0x4] sm:$0xf]
    %v28 = vld [vmem:[%s1 + $0x8] sm:$0xf]
    %v29 = vld [vmem:[%s1 + $0xc] sm:$0xf]
    %v30 = vld [vmem:[%s1 + $0x10] sm:$0xf]
    %v31 = vld [vmem:[%s1 + $0x14] sm:$0xf]
    %v32 = vld [vmem:[%s1 + $0x18] sm:$0xf]
    %v33 = vld [vmem:[%s1 + $0x1c] sm:$0xf]
    %v34 = vld [vmem:[#allocation2] sm:$0xff]
    %v35 = vld [vmem:[#allocation2 + $0x8] sm:$0xff]
    %v44 = vunpack.c.l.b16 %v26
    %v45 = vunpack.c.l.b16 %v27
    %v46 = vunpack.c.l.b16 %v28
    %v47 = vunpack.c.l.b16 %v29
    %v48 = vunpack.c.l.b16 %v30
    %v49 = vunpack.c.l.b16 %v31
    %v50 = vunpack.c.l.b16 %v32
    %v51 = vunpack.c.l.b16 %v33
    %v52 = vpack.c.b16 %v45, %v44
    %v53 = vpack.c.b16 %v47, %v46
    %v54 = vpack.c.b16 %v49, %v48
    %v55 = vpack.c.b16 %v51, %v50
    %vm56 = vcmask 261120
    %v58 = vsel %vm56, %v25, 0
    %v61 = vsel %vm56, %v52, 0
    %v64 = vsel %vm56, %v53, 0
    %v67 = vsel %vm56, %v54, 0
    %v70 = vsel %vm56, %v55, 0
    %72 = vmatprep.subr.bf16.mxu0 0
    %73 = vmatpush1.bf16.xpose.msra.mxu0 %v61
    %74 = vmatprep.subr.bf16.mxu0 0
    %75 = vmatpush1.bf16.xpose.msra.mxu0 %v64
    %76 = vmatprep.subr.bf16.mxu0 0
    %77 = vmatpush1.bf16.xpose.msra.mxu0 %v67
    %78 = vmatprep.subr.bf16.mxu0 0
    %79 = vmatpush1.bf16.xpose.msra.mxu0 %v70
    %80 = vmatprep.subr.bf16.mxu0 0
    %81 = vmatpush1.bf16.xpose.msra.mxu0 0
    %82 = vmatprep.subr.bf16.mxu0 0
    %83 = vmatpush1.bf16.xpose.msra.mxu0 0
    %84 = vmatprep.subr.bf16.mxu0 0
    %85 = vmatpush1.bf16.xpose.msra.mxu0 0
    %86 = vmatprep.subr.bf16.mxu0 0
    %87 = vmatpush1.bf16.xpose.msra.mxu0 0
    %88 = vmatprep.subr.bf16.mxu0 0
    %89 = vmatpush1.bf16.xpose.msra.mxu0 0
    %90 = vmatprep.subr.bf16.mxu0 0
    %91 = vmatpush1.bf16.xpose.msra.mxu0 0
    %92 = vmatprep.subr.bf16.mxu0 0
    %93 = vmatpush1.bf16.xpose.msra.mxu0 0
    %94 = vmatprep.subr.bf16.mxu0 0
    %95 = vmatpush1.bf16.xpose.msra.mxu0 0
    %96 = vmatprep.subr.bf16.mxu0 0
    %97 = vmatpush1.bf16.xpose.msra.mxu0 0
    %98 = vmatprep.subr.bf16.mxu0 0
    %99 = vmatpush1.bf16.xpose.msra.mxu0 0
    %100 = vmatprep.subr.bf16.mxu0 0
    %101 = vmatpush1.bf16.xpose.msra.mxu0 0
    %102 = vmatprep.subr.bf16.mxu0 0
    %103 = vmatpush1.bf16.xpose.msra.mxu0 0
    %104 = vmatprep.mubr.bf16.mxu0 0
    %105 = vmatmul.mubr.bf16.gmra.mrb[0].mxu0 %v58
    %v106 = vpop.f32.mrb[0].mxu0
    %v107 = vadd.f32 0.0, %v106
    %v108 = vpop.f32.mrb[0].mxu0
    %v109 = vpop.f32.mrb[0].mxu0
    %v110 = vadd.f32 0.0, %v109
    %v111 = vpop.f32.mrb[0].mxu0
    %112 = vdwg.mxu0
    %v113 = vadd.f32 %v34, %v107
    %v114 = vadd.f32 %v35, %v110
    %vm115 = vcmask 523264
    %116 = vst.msk [vmem:[#allocation2] sm:$0xff] %vm115, %v113
    %117 = vst.msk [vmem:[#allocation2 + $0x8] sm:$0xff] %vm115, %v114
    // Predicated region
    $region18: #{bart_forward.29} parent=1 // pred_check
      %p118 = pneg %p16
    $region19: #{bart_forward.29} parent=1 // pred_check_branch
      %120 = sbr.rel (%p118) target = $region21
    $region20: #{bart_forward.29} parent=1 // pred_region
      %v121 = vld [vmem:[#allocation2] sm:$0xff]
      %v122 = vld [vmem:[#allocation2 + $0x8] sm:$0xff]
      %v123 = vld [vmem:[%s2] sm:$0x1]
      %v125 = vlaneseq
      %v126 = vshrl.u32 %v125, 7
      %v127 = vsub.s32 0, %v126
      %v128 = vrot.slane %v123, %v127
      %v130 = vadd.f32 %v121, %v128
      %v131 = vadd.f32 %v122, %v128
      %132 = vst.msk [vmem:[#allocation3] sm:$0xff] %vm115, %v130
      %133 = vst.msk [vmem:[#allocation3 + $0x8] sm:$0xff] %vm115, %v131
    $region21: #{bart_forward.29} parent=1 // pred_fallthru
      _
    // Predicated region
    $region22: #{bart_forward.29} parent=1 // pred_check
      _
    $region23: #{bart_forward.29} parent=1 // pred_check_branch
      %135 = sbr.rel (0) target = $region25
    $region24: #{bart_forward.29} parent=1 // pred_region
      %s137 = ssub.s32 256, 256
      %138 = vsyncadd [#allocation4], %s137
      %s139 = sshll.u32 [#allocation3], 4
      %s140 = int_to_ptr.vmem [resolvable:$true] %s139
      %145 = dma.vmem_to_hbm [thread:$0]  %s140, 256, %s3, [#allocation4], 128, 128, 8
    $region25: #{bart_forward.29} parent=1 // pred_fallthru
      _
    // Predicated region
    $region26: #{bart_forward.29} parent=1 // pred_check
      _
    $region27: #{bart_forward.29} parent=1 // pred_check_branch
      %147 = sbr.rel (0) target = $region29
    $region28: #{bart_forward.29} parent=1 // pred_region
      %148 = dma.done [#allocation4], 256
    $region29: #{bart_forward.29} parent=1 // pred_fallthru
      _
    %149 = vsyncpa [#allocation4], 1

// kernel: bart_forward.19
$region0: #{bart_forward.19}
  #allocation0 [shape = 'u32[]', space=smem, size = 0x4, offset = 0x4, fixed_abs, tag = 'smem constant byte address 0x4 - core index']
  #allocation1 [shape = 'u32[144,128]{1,0:T(1,128)}', space=vmem, size = 0x12000, scoped, tag = 'internal scratch']
  #allocation2 [shape = 'f32[16,32]{1,0:T(8,128)}', space=vmem, size = 0x2000, scoped, tag = 'scratch operand']
  %s0 = inlined_call_operand.vmem [shape: f32[16,64], index: 0, kind: input, shape index: {}]
  %s1 = inlined_call_operand.vmem [shape: bf16[64,32], index: 1, kind: input, shape index: {}]
  %s2 = inlined_call_operand.vmem [shape: f32[1,32], index: 2, kind: input, shape index: {}]
  %s3 = inlined_call_operand.vmem [shape: f32[16,32], index: 3, kind: output, shape index: {}]
  %s4 = sld [smem:[#allocation0]]
  $region30: #{bart_forward.19} parent=0
    _
  %s6 = ssub.s32 1, %s4
  %s7 = scalar_select 0, %s6, %s4
  // Predicated region
  $region2: #{bart_forward.19} parent=0 // pred_check
    _
  $region3: #{bart_forward.19} parent=0 // pred_check_branch
    %9 = sbr.rel (0) target = $region5
  $region4: #{bart_forward.19} parent=0 // pred_region
    _
  $region5: #{bart_forward.19} parent=0 // pred_fallthru
    _
  // Predicated region
  $region6: #{bart_forward.19} parent=0 // pred_check
    _
  $region7: #{bart_forward.19} parent=0 // pred_check_branch
    %11 = sbr.rel (0) target = $region9
  $region8: #{bart_forward.19} parent=0 // pred_region
    _
  $region9: #{bart_forward.19} parent=0 // pred_fallthru
    _
  // Predicated region
  $region10: #{bart_forward.19} parent=0 // pred_check
    _
  $region11: #{bart_forward.19} parent=0 // pred_check_branch
    %13 = sbr.rel (0) target = $region13
  $region12: #{bart_forward.19} parent=0 // pred_region
    _
  $region13: #{bart_forward.19} parent=0 // pred_fallthru
    _
  %p15 = scmp.eq.s32.totalorder 0, 0
  // Predicated region
  $region14: #{bart_forward.19} parent=0 // pred_check
    %p16 = pneg %p15
  $region15: #{bart_forward.19} parent=0 // pred_check_branch
    %18 = sbr.rel (%p16) target = $region17
  $region16: #{bart_forward.19} parent=0 // pred_region
    %vm19 = vcmask 261120
    %20 = vst.msk [vmem:[#allocation2] sm:$0xff] %vm19, 0.0
    %21 = vst.msk [vmem:[#allocation2 + $0x8] sm:$0xff] %vm19, 0.0
  $region17: #{bart_forward.19} parent=0 // pred_fallthru
    _
  %v22 = vld [vmem:[%s0] sm:$0xff]
  %v23 = vld [vmem:[%s0 + $0x8] sm:$0xff]
  %v24 = vpack.c.bf16 %v23, %v22
  %v25 = vld [vmem:[%s1] sm:$0xf]
  %v26 = vld [vmem:[%s1 + $0x4] sm:$0xf]
  %v27 = vld [vmem:[%s1 + $0x8] sm:$0xf]
  %v28 = vld [vmem:[%s1 + $0xc] sm:$0xf]
  %v29 = vld [vmem:[%s1 + $0x10] sm:$0xf]
  %v30 = vld [vmem:[%s1 + $0x14] sm:$0xf]
  %v31 = vld [vmem:[%s1 + $0x18] sm:$0xf]
  %v32 = vld [vmem:[%s1 + $0x1c] sm:$0xf]
  %v33 = vld [vmem:[#allocation2] sm:$0xff]
  %v34 = vld [vmem:[#allocation2 + $0x8] sm:$0xff]
  %v43 = vunpack.c.l.b16 %v25
  %v44 = vunpack.c.l.b16 %v26
  %v45 = vunpack.c.l.b16 %v27
  %v46 = vunpack.c.l.b16 %v28
  %v47 = vunpack.c.l.b16 %v29
  %v48 = vunpack.c.l.b16 %v30
  %v49 = vunpack.c.l.b16 %v31
  %v50 = vunpack.c.l.b16 %v32
  %v51 = vpack.c.b16 %v44, %v43
  %v52 = vpack.c.b16 %v46, %v45
  %v53 = vpack.c.b16 %v48, %v47
  %v54 = vpack.c.b16 %v50, %v49
  %vm59 = vcmask 523264
  %v61 = vsel %vm59, %v24, 0
  %63 = vmatprep.subr.bf16.mxu0 0
  %64 = vmatpush1.bf16.msra.mxu0 %v51
  %65 = vmatprep.subr.bf16.mxu0 0
  %66 = vmatpush1.bf16.msra.mxu0 %v52
  %67 = vmatprep.subr.bf16.mxu0 0
  %68 = vmatpush1.bf16.msra.mxu0 %v53
  %69 = vmatprep.subr.bf16.mxu0 0
  %70 = vmatpush1.bf16.msra.mxu0 %v54
  %71 = vmatprep.subr.bf16.mxu0 0
  %72 = vmatpush1.bf16.msra.mxu0 0
  %73 = vmatprep.subr.bf16.mxu0 0
  %74 = vmatpush1.bf16.msra.mxu0 0
  %75 = vmatprep.subr.bf16.mxu0 0
  %76 = vmatpush1.bf16.msra.mxu0 0
  %77 = vmatprep.subr.bf16.mxu0 0
  %78 = vmatpush1.bf16.msra.mxu0 0
  %79 = vmatprep.subr.bf16.mxu0 0
  %80 = vmatpush1.bf16.msra.mxu0 0
  %81 = vmatprep.subr.bf16.mxu0 0
  %82 = vmatpush1.bf16.msra.mxu0 0
  %83 = vmatprep.subr.bf16.mxu0 0
  %84 = vmatpush1.bf16.msra.mxu0 0
  %85 = vmatprep.subr.bf16.mxu0 0
  %86 = vmatpush1.bf16.msra.mxu0 0
  %87 = vmatprep.subr.bf16.mxu0 0
  %88 = vmatpush1.bf16.msra.mxu0 0
  %89 = vmatprep.subr.bf16.mxu0 0
  %90 = vmatpush1.bf16.msra.mxu0 0
  %91 = vmatprep.subr.bf16.mxu0 0
  %92 = vmatpush1.bf16.msra.mxu0 0
  %93 = vmatprep.subr.bf16.mxu0 0
  %94 = vmatpush1.bf16.msra.mxu0 0
  %95 = vmatprep.mubr.bf16.mxu0 0
  %96 = vmatmul.mubr.bf16.gmra.mrb[0].mxu0 %v61
  %v97 = vpop.f32.mrb[0].mxu0
  %v98 = vadd.f32 0.0, %v97
  %v99 = vpop.f32.mrb[0].mxu0
  %v100 = vpop.f32.mrb[0].mxu0
  %v101 = vadd.f32 0.0, %v100
  %v102 = vpop.f32.mrb[0].mxu0
  %103 = vdwg.mxu0
  %v104 = vadd.f32 %v33, %v98
  %v105 = vadd.f32 %v34, %v101
  %vm106 = vcmask 261120
  %107 = vst.msk [vmem:[#allocation2] sm:$0xff] %vm106, %v104
  %108 = vst.msk [vmem:[#allocation2 + $0x8] sm:$0xff] %vm106, %v105
  // Predicated region
  $region18: #{bart_forward.19} parent=0 // pred_check
    %p109 = pneg %p15
  $region19: #{bart_forward.19} parent=0 // pred_check_branch
    %111 = sbr.rel (%p109) target = $region21
  $region20: #{bart_forward.19} parent=0 // pred_region
    %v112 = vld [vmem:[#allocation2] sm:$0xff]
    %v113 = vld [vmem:[#allocation2 + $0x8] sm:$0xff]
    %v114 = vld [vmem:[%s2] sm:$0x1]
    %v116 = vlaneseq
    %v117 = vshrl.u32 %v116, 7
    %v118 = vsub.s32 0, %v117
    %v119 = vrot.slane %v114, %v118
    %v121 = vadd.f32 %v112, %v119
    %v122 = vadd.f32 %v113, %v119
    %123 = vst.msk [vmem:[%s3] sm:$0xff] %vm106, %v121
    %124 = vst.msk [vmem:[%s3 + $0x8] sm:$0xff] %vm106, %v122
  $region21: #{bart_forward.19} parent=0 // pred_fallthru
    _
  // Predicated region
  $region22: #{bart_forward.19} parent=0 // pred_check
    _
  $region23: #{bart_forward.19} parent=0 // pred_check_branch
    %126 = sbr.rel (0) target = $region25
  $region24: #{bart_forward.19} parent=0 // pred_region
    _
  $region25: #{bart_forward.19} parent=0 // pred_fallthru
    _
  // Predicated region
  $region26: #{bart_forward.19} parent=0 // pred_check
    _
  $region27: #{bart_forward.19} parent=0 // pred_check_branch
    %128 = sbr.rel (0) target = $region29
  $region28: #{bart_forward.19} parent=0 // pred_region
    _
  $region29: #{bart_forward.19} parent=0 // pred_fallthru
    _

</llo_original>
